<compile_context>
chip_gen: v6e
topology: v6e:2x2x1
jax: 0.10.0
libtpu: 0.0.40
codegen_flags: <defaults>
</compile_context>

<pallas_src>
import math
import jax
import jax.numpy as jnp
from jax.experimental import pallas as pl
from jax.experimental.pallas import tpu as pltpu

DIM = 32          # embedding dim
NUM_HEADS = 4     # attention heads
FFN = 128         # dim_feedforward
LAYERS = 2        # trans_layer_num
LN_EPS = 1e-5
NEG_INF = -1e30   # additive mask value (finite to avoid NaN on padded rows)

# ---- weight-slab row layout (per layer); 128 lanes wide, bf16 ---------------
_WQKV_R = 0                 # rows [0, D)         cols [0, 3D)   (Q pre-scaled)
_WO_R   = DIM               # rows [D, 2D)        cols [0, D)
_W1_R   = 2 * DIM           # rows [2D, 3D)       cols [0, FFN)
_W2_R   = 3 * DIM           # rows [3D, 3D+FFN)   cols [0, D)
_VEC_R  = 3 * DIM + FFN     # rows [224, 232): bqkv, bf1, bo, g1, be1, g2, be2, bf2
_ROWS   = _VEC_R + 8        # 232


# ---------------------------------------------------------------------------
# Fused Pallas kernel: full encoder stack (both layers) in one call
# ---------------------------------------------------------------------------
def self_att_kernel(x_ref, mask_ref, w_ref, o_ref):
    M, D = x_ref.shape                   # M = B*S
    B, S = mask_ref.shape
    L = w_ref.shape[0]
    H = NUM_HEADS
    hd = D // H
    HB = H * B

    # Additive key-padding mask, hoisted out of all loops:
    #   (B,S) int -> (H*B, S, S) f32, h-major batch ordering (index = h*B + b).
    madd = jnp.where(mask_ref[...] != 0, NEG_INF, 0.0).reshape(B, 1, S)   # (B,1,S)
    madd = jnp.concatenate([madd] * H, axis=0)                            # (HB,1,S)
    madd = jnp.broadcast_to(madd, (HB, S, S))                             # (HB,S,S)

    def split_heads(mat, base):
        # (M, 3D) columns [base+h*hd : base+(h+1)*hd] -> (H*B, S, hd), h-major.
        return jnp.concatenate(
            [mat[:, base + h * hd: base + (h + 1) * hd].reshape(B, S, hd)
             for h in range(H)], axis=0)

    x = x_ref[...]                       # (M, D) f32, carried across layers

    for l in range(L):                   # static fused-layer loop
        # ---- static, sublane-aligned slices of the packed weight slab -------
        wqkv = w_ref[l, _WQKV_R:_WQKV_R + D, 0:3 * D]       # (D, 3D) bf16
        wo   = w_ref[l, _WO_R:_WO_R + D, 0:D]               # (D, D)  bf16
        w1   = w_ref[l, _W1_R:_W1_R + D, 0:FFN]             # (D, FFN) bf16
        w2   = w_ref[l, _W2_R:_W2_R + FFN, 0:D]             # (FFN, D) bf16
        vec  = w_ref[l, _VEC_R:_VEC_R + 8, :].astype(jnp.float32)   # (8, 128)
        bqkv = vec[0:1, 0:3 * D]        # (1, 3D)  (Q part pre-scaled)
        bf1  = vec[1:2, 0:FFN]
        bo   = vec[2:3, 0:D]
        g1   = vec[3:4, 0:D]
        be1  = vec[4:5, 0:D]
        g2   = vec[5:6, 0:D]
        be2  = vec[6:7, 0:D]
        bf2  = vec[7:8, 0:D]

        # ---- fused QKV projection: one (M,D)@(D,3D) bf16 MXU, f32 accumulate
        qkv = jnp.dot(x.astype(jnp.bfloat16), wqkv,
                      preferred_element_type=jnp.float32) + bqkv     # (M,3D) f32

        # ---- all-heads attention, batched over H*B ---------------------------
        q = split_heads(qkv, 0)          # (HB, S, hd); softmax scale folded in
        k = split_heads(qkv, D)
        v = split_heads(qkv, 2 * D)

        s = jnp.einsum("bqd,bkd->bqk",
                       q.astype(jnp.bfloat16), k.astype(jnp.bfloat16),
                       preferred_element_type=jnp.float32)           # (HB,S,S)
        s = s + madd
        mmax = jnp.max(s, axis=-1, keepdims=True)
        e = jnp.exp(s - mmax)
        denom = jnp.sum(e, axis=-1, keepdims=True)
        p = e * pl.reciprocal(denom, approx=True)                    # EUP slot
        ctx = jnp.einsum("bqk,bkd->bqd",
                         p.astype(jnp.bfloat16), v.astype(jnp.bfloat16),
                         preferred_element_type=jnp.float32)         # (HB,S,hd)

        # merge heads back to (M, D) and do ONE output projection (K = D)
        ctx_m = jnp.concatenate(
            [ctx[h * B:(h + 1) * B].reshape(M, hd) for h in range(H)],
            axis=-1)                                                 # (M, D)
        attn = jnp.dot(ctx_m.astype(jnp.bfloat16), wo,
                       preferred_element_type=jnp.float32) + bo      # (M, D)

        # ---- residual + LayerNorm 1 (post-norm) ------------------------------
        y = x + attn
        mu = jnp.mean(y, axis=-1, keepdims=True)
        var = jnp.mean((y - mu) ** 2, axis=-1, keepdims=True)
        y = (y - mu) * jax.lax.rsqrt(var + LN_EPS) * g1 + be1

        # ---- feed-forward (ReLU), whole batch at once ------------------------
        h1 = jnp.dot(y.astype(jnp.bfloat16), w1,
                     preferred_element_type=jnp.float32) + bf1
        h1 = jnp.maximum(h1, 0.0)
        ff = jnp.dot(h1.astype(jnp.bfloat16), w2,
                     preferred_element_type=jnp.float32) + bf2

        # ---- residual + LayerNorm 2 ------------------------------------------
        z = y + ff
        mu2 = jnp.mean(z, axis=-1, keepdims=True)
        var2 = jnp.mean((z - mu2) ** 2, axis=-1, keepdims=True)
        x = (z - mu2) * jax.lax.rsqrt(var2 + LN_EPS) * g2 + be2

    o_ref[...] = x                       # single lane-wise store at the end


# ---------------------------------------------------------------------------
# Host-side packing: all per-layer params into one lane-aligned bf16 slab
# ---------------------------------------------------------------------------
def pack_params(params):
    D, F = DIM, FFN
    hd = D // NUM_HEADS
    scale = 1.0 / math.sqrt(hd)
    slabs = []
    for p in params:
        # fold the softmax 1/sqrt(hd) scale into the Q projection columns
        wqkv = p["wqkv"].at[:, :D].multiply(scale)          # (D, 3D)
        bqkv = p["bqkv"].at[:D].multiply(scale)             # (3D,)
        slab = jnp.zeros((_ROWS, 128), jnp.float32)
        slab = slab.at[_WQKV_R:_WQKV_R + D, 0:3 * D].set(wqkv)
        slab = slab.at[_WO_R:_WO_R + D, 0:D].set(p["wo"])
        slab = slab.at[_W1_R:_W1_R + D, 0:F].set(p["w1"])
        slab = slab.at[_W2_R:_W2_R + F, 0:D].set(p["w2"])
        slab = slab.at[_VEC_R + 0, 0:3 * D].set(bqkv)
        slab = slab.at[_VEC_R + 1, 0:F].set(p["bf1"])
        slab = slab.at[_VEC_R + 2, 0:D].set(p["bo"])
        slab = slab.at[_VEC_R + 3, 0:D].set(p["g1"])
        slab = slab.at[_VEC_R + 4, 0:D].set(p["be1"])
        slab = slab.at[_VEC_R + 5, 0:D].set(p["g2"])
        slab = slab.at[_VEC_R + 6, 0:D].set(p["be2"])
        slab = slab.at[_VEC_R + 7, 0:D].set(p["bf2"])
        slabs.append(slab)
    return jnp.stack(slabs).astype(jnp.bfloat16)            # (L, 232, 128) bf16


def self_att_forward(fea, mask, params):
    """fea: (B, S, D) float32;  mask: (B, S) bool, True = padded key."""
    B, S, D = fea.shape
    wslab = pack_params(params)
    x2 = fea.reshape(B * S, D).astype(jnp.float32)
    mask_i32 = mask.astype(jnp.int32)

    vspec = pl.BlockSpec(memory_space=pltpu.MemorySpace.VMEM)
    out = pl.pallas_call(
        self_att_kernel,
        out_shape=jax.ShapeDtypeStruct((B * S, D), jnp.float32),
        in_specs=[vspec, vspec, vspec],
        out_specs=vspec,
    )(x2, mask_i32, wslab)
    return out.reshape(B, S, D)


# ---------------------------------------------------------------------------
# Deterministic parameter init (shapes follow nn.TransformerEncoderLayer)
# ---------------------------------------------------------------------------
def init_params(key, dim, ffn, layers):
    params = []
    for _ in range(layers):
        key, *ks = jax.random.split(key, 9)
        w_in = jax.random.normal(ks[0], (3 * dim, dim), jnp.float32) * 0.02   # in_proj_weight
        b_in = jax.random.normal(ks[1], (3 * dim,), jnp.float32) * 0.02       # in_proj_bias
        w_out = jax.random.normal(ks[2], (dim, dim), jnp.float32) * 0.02      # out_proj.weight
        b_out = jax.random.normal(ks[3], (dim,), jnp.float32) * 0.02
        w1 = jax.random.normal(ks[4], (ffn, dim), jnp.float32) * 0.02         # linear1.weight
        b1 = jax.random.normal(ks[5], (ffn,), jnp.float32) * 0.02
        w2 = jax.random.normal(ks[6], (dim, ffn), jnp.float32) * 0.02         # linear2.weight
        b2 = jax.random.normal(ks[7], (dim,), jnp.float32) * 0.02
        params.append({
            # pre-transposed / pre-fused so the kernel computes x @ W directly
            "wqkv": w_in.T,                  # (D, 3D) = [Wq^T | Wk^T | Wv^T]
            "bqkv": b_in,                    # (3D,)
            "wo": w_out.T, "bo": b_out,
            "w1": w1.T, "bf1": b1,
            "w2": w2.T, "bf2": b2,
            "g1": jnp.ones((dim,), jnp.float32), "be1": jnp.zeros((dim,), jnp.float32),
            "g2": jnp.ones((dim,), jnp.float32), "be2": jnp.zeros((dim,), jnp.float32),
        })
    return params


# ---------------------------------------------------------------------------
# Pure-JAX f32 reference (same math, unscaled weights) for correctness check
# ---------------------------------------------------------------------------
def _ln(x, g, b):
    mu = jnp.mean(x, axis=-1, keepdims=True)
    var = jnp.mean((x - mu) ** 2, axis=-1, keepdims=True)
    return (x - mu) / jnp.sqrt(var + LN_EPS) * g + b


def reference_forward(fea, mask, params):
    H = NUM_HEADS
    B, S, D = fea.shape
    hd = D // H
    mask_add = jnp.where(mask, NEG_INF, 0.0)[:, None, None, :]  # (B,1,1,S)
    x = fea.astype(jnp.float32)
    for p in params:
        wq, wk, wv = p["wqkv"][:, :D], p["wqkv"][:, D:2 * D], p["wqkv"][:, 2 * D:]
        bq, bk, bv = p["bqkv"][:D], p["bqkv"][D:2 * D], p["bqkv"][2 * D:]
        q = (x @ wq + bq).reshape(B, S, H, hd).transpose(0, 2, 1, 3)
        k = (x @ wk + bk).reshape(B, S, H, hd).transpose(0, 2, 1, 3)
        v = (x @ wv + bv).reshape(B, S, H, hd).transpose(0, 2, 1, 3)
        scores = jnp.einsum("bhqd,bhkd->bhqk", q, k) / math.sqrt(hd) + mask_add
        att = jnp.einsum("bhqk,bhkd->bhqd", jax.nn.softmax(scores, axis=-1), v)
        att = att.transpose(0, 2, 1, 3).reshape(B, S, D)
        y = _ln(x + att @ p["wo"] + p["bo"], p["g1"], p["be1"])
        ff = jax.nn.relu(y @ p["w1"] + p["bf1"]) @ p["w2"] + p["bf2"]
        x = _ln(y + ff, p["g2"], p["be2"])
    return x


if __name__ == "__main__":
    key = jax.random.PRNGKey(0)
    B, S = 2, 8
    kx, kp = jax.random.split(key)

    fea = jax.random.normal(kx, (B, S, DIM), jnp.float32)      # (batch, seq, dim)
    lengths = jnp.array([8, 6])
    mask = jnp.arange(S)[None, :] >= lengths[:, None]          # (B, S) bool, True = pad

    params = init_params(kp, DIM, FFN, LAYERS)

    out = self_att_forward(fea, mask, params)
    jax.block_until_ready(out)

    ref = reference_forward(fea, mask, params)
    assert out.shape == (B, S, DIM)
    # tolerance accounts for bf16 MXU operands + EUP approximate reciprocal in
    # the softmax (reference is exact f32); real bugs produce O(1) errors.
    assert jnp.allclose(out, ref, atol=1e-2, rtol=1e-2), "Pallas kernel mismatch vs JAX reference"

    print("KERNEL_OK")
</pallas_src>

<mosaic_0001>
module attributes {stable_mosaic.version = 11 : i64} {
  func.func @self_att_kernel(%arg0: memref<16x32xf32, #tpu.memory_space<vmem>>, %arg1: memref<2x8xi32, #tpu.memory_space<vmem>>, %arg2: memref<2x232x128xbf16, #tpu.memory_space<vmem>>, %arg3: memref<16x32xf32, #tpu.memory_space<vmem>>) attributes {dimension_semantics = [], scalar_prefetch = 0 : i64, scratch_operands = 0 : i64, tpu.core_type = #tpu.core_type<tc>} {
    %c0 = arith.constant 0 : index
    %c0_0 = arith.constant 0 : index
    %0 = vector.load %arg1[%c0, %c0_0] : memref<2x8xi32, #tpu.memory_space<vmem>>, vector<2x8xi32>
    %c0_i32 = arith.constant 0 : i32
    %1 = vector.broadcast %c0_i32 : i32 to vector<2x8xi32>
    %2 = arith.cmpi ne, %0, %1 : vector<2x8xi32>
    %cst = arith.constant -1.000000e+30 : f32
    %cst_1 = arith.constant 0.000000e+00 : f32
    %3 = vector.broadcast %cst : f32 to vector<2x8xf32>
    %4 = vector.broadcast %cst_1 : f32 to vector<2x8xf32>
    %5 = arith.select %2, %3, %4 : vector<2x8xi1>, vector<2x8xf32>
    %6 = vector.shape_cast %5 : vector<2x8xf32> to vector<2x1x8xf32>
    %7 = tpu.concatenate %6, %6, %6, %6 in 0 : vector<2x1x8xf32>, vector<2x1x8xf32>, vector<2x1x8xf32>, vector<2x1x8xf32> -> vector<8x1x8xf32>
    %8 = vector.shape_cast %7 : vector<8x1x8xf32> to vector<8x1x8xf32>
    %9 = vector.broadcast %8 : vector<8x1x8xf32> to vector<8x8x8xf32>
    %c0_2 = arith.constant 0 : index
    %c0_3 = arith.constant 0 : index
    %10 = vector.load %arg0[%c0_2, %c0_3] : memref<16x32xf32, #tpu.memory_space<vmem>>, vector<16x32xf32>
    %c0_4 = arith.constant 0 : index
    %c0_5 = arith.constant 0 : index
    %c0_6 = arith.constant 0 : index
    %11 = vector.load %arg2[%c0_4, %c0_5, %c0_6] : memref<2x232x128xbf16, #tpu.memory_space<vmem>>, vector<1x32x96xbf16>
    %12 = vector.shape_cast %11 : vector<1x32x96xbf16> to vector<32x96xbf16>
    %c0_7 = arith.constant 0 : index
    %c32 = arith.constant 32 : index
    %c0_8 = arith.constant 0 : index
    %13 = vector.load %arg2[%c0_7, %c32, %c0_8] : memref<2x232x128xbf16, #tpu.memory_space<vmem>>, vector<1x32x32xbf16>
    %14 = vector.shape_cast %13 : vector<1x32x32xbf16> to vector<32x32xbf16>
    %c0_9 = arith.constant 0 : index
    %c64 = arith.constant 64 : index
    %c0_10 = arith.constant 0 : index
    %15 = vector.load %arg2[%c0_9, %c64, %c0_10] : memref<2x232x128xbf16, #tpu.memory_space<vmem>>, vector<1x32x128xbf16>
    %16 = vector.shape_cast %15 : vector<1x32x128xbf16> to vector<32x128xbf16>
    %c0_11 = arith.constant 0 : index
    %c96 = arith.constant 96 : index
    %c0_12 = arith.constant 0 : index
    %17 = vector.load %arg2[%c0_11, %c96, %c0_12] : memref<2x232x128xbf16, #tpu.memory_space<vmem>>, vector<1x128x32xbf16>
    %18 = vector.shape_cast %17 : vector<1x128x32xbf16> to vector<128x32xbf16>
    %c0_13 = arith.constant 0 : index
    %c224 = arith.constant 224 : index
    %c0_14 = arith.constant 0 : index
    %19 = vector.load %arg2[%c0_13, %c224, %c0_14] : memref<2x232x128xbf16, #tpu.memory_space<vmem>>, vector<1x8x128xbf16>
    %20 = vector.shape_cast %19 : vector<1x8x128xbf16> to vector<8x128xbf16>
    %21 = arith.extf %20 : vector<8x128xbf16> to vector<8x128xf32>
    %22 = vector.extract_strided_slice %21 {offsets = [0, 0], sizes = [1, 96], strides = [1, 1]} : vector<8x128xf32> to vector<1x96xf32>
    %23 = vector.extract_strided_slice %21 {offsets = [1, 0], sizes = [1, 128], strides = [1, 1]} : vector<8x128xf32> to vector<1x128xf32>
    %24 = vector.extract_strided_slice %21 {offsets = [2, 0], sizes = [1, 32], strides = [1, 1]} : vector<8x128xf32> to vector<1x32xf32>
    %25 = vector.extract_strided_slice %21 {offsets = [3, 0], sizes = [1, 32], strides = [1, 1]} : vector<8x128xf32> to vector<1x32xf32>
    %26 = vector.extract_strided_slice %21 {offsets = [4, 0], sizes = [1, 32], strides = [1, 1]} : vector<8x128xf32> to vector<1x32xf32>
    %27 = vector.extract_strided_slice %21 {offsets = [5, 0], sizes = [1, 32], strides = [1, 1]} : vector<8x128xf32> to vector<1x32xf32>
    %28 = vector.extract_strided_slice %21 {offsets = [6, 0], sizes = [1, 32], strides = [1, 1]} : vector<8x128xf32> to vector<1x32xf32>
    %29 = vector.extract_strided_slice %21 {offsets = [7, 0], sizes = [1, 32], strides = [1, 1]} : vector<8x128xf32> to vector<1x32xf32>
    %30 = arith.truncf %10 : vector<16x32xf32> to vector<16x32xbf16>
    %cst_15 = arith.constant dense<0.000000e+00> : vector<16x96xf32>
    %31 = tpu.matmul %30, %12, %cst_15 {dimension_numbers = #tpu.dot_dimension_numbers<[1], [0], [0], [1], [0, 0, 1, 1], [], []>} : vector<16x32xbf16>, vector<32x96xbf16>, vector<16x96xf32> -> vector<16x96xf32>
    %32 = vector.broadcast %22 : vector<1x96xf32> to vector<16x96xf32>
    %33 = arith.addf %31, %32 : vector<16x96xf32>
    %34 = vector.extract_strided_slice %33 {offsets = [0, 0], sizes = [16, 8], strides = [1, 1]} : vector<16x96xf32> to vector<16x8xf32>
    %35 = vector.shape_cast %34 : vector<16x8xf32> to vector<2x8x8xf32>
    %36 = vector.extract_strided_slice %33 {offsets = [0, 8], sizes = [16, 8], strides = [1, 1]} : vector<16x96xf32> to vector<16x8xf32>
    %37 = vector.shape_cast %36 : vector<16x8xf32> to vector<2x8x8xf32>
    %38 = vector.extract_strided_slice %33 {offsets = [0, 16], sizes = [16, 8], strides = [1, 1]} : vector<16x96xf32> to vector<16x8xf32>
    %39 = vector.shape_cast %38 : vector<16x8xf32> to vector<2x8x8xf32>
    %40 = vector.extract_strided_slice %33 {offsets = [0, 24], sizes = [16, 8], strides = [1, 1]} : vector<16x96xf32> to vector<16x8xf32>
    %41 = vector.shape_cast %40 : vector<16x8xf32> to vector<2x8x8xf32>
    %42 = tpu.concatenate %35, %37, %39, %41 in 0 : vector<2x8x8xf32>, vector<2x8x8xf32>, vector<2x8x8xf32>, vector<2x8x8xf32> -> vector<8x8x8xf32>
    %43 = vector.extract_strided_slice %33 {offsets = [0, 32], sizes = [16, 8], strides = [1, 1]} : vector<16x96xf32> to vector<16x8xf32>
    %44 = vector.shape_cast %43 : vector<16x8xf32> to vector<2x8x8xf32>
    %45 = vector.extract_strided_slice %33 {offsets = [0, 40], sizes = [16, 8], strides = [1, 1]} : vector<16x96xf32> to vector<16x8xf32>
    %46 = vector.shape_cast %45 : vector<16x8xf32> to vector<2x8x8xf32>
    %47 = vector.extract_strided_slice %33 {offsets = [0, 48], sizes = [16, 8], strides = [1, 1]} : vector<16x96xf32> to vector<16x8xf32>
    %48 = vector.shape_cast %47 : vector<16x8xf32> to vector<2x8x8xf32>
    %49 = vector.extract_strided_slice %33 {offsets = [0, 56], sizes = [16, 8], strides = [1, 1]} : vector<16x96xf32> to vector<16x8xf32>
    %50 = vector.shape_cast %49 : vector<16x8xf32> to vector<2x8x8xf32>
    %51 = tpu.concatenate %44, %46, %48, %50 in 0 : vector<2x8x8xf32>, vector<2x8x8xf32>, vector<2x8x8xf32>, vector<2x8x8xf32> -> vector<8x8x8xf32>
    %52 = vector.extract_strided_slice %33 {offsets = [0, 64], sizes = [16, 8], strides = [1, 1]} : vector<16x96xf32> to vector<16x8xf32>
    %53 = vector.shape_cast %52 : vector<16x8xf32> to vector<2x8x8xf32>
    %54 = vector.extract_strided_slice %33 {offsets = [0, 72], sizes = [16, 8], strides = [1, 1]} : vector<16x96xf32> to vector<16x8xf32>
    %55 = vector.shape_cast %54 : vector<16x8xf32> to vector<2x8x8xf32>
    %56 = vector.extract_strided_slice %33 {offsets = [0, 80], sizes = [16, 8], strides = [1, 1]} : vector<16x96xf32> to vector<16x8xf32>
    %57 = vector.shape_cast %56 : vector<16x8xf32> to vector<2x8x8xf32>
    %58 = vector.extract_strided_slice %33 {offsets = [0, 88], sizes = [16, 8], strides = [1, 1]} : vector<16x96xf32> to vector<16x8xf32>
    %59 = vector.shape_cast %58 : vector<16x8xf32> to vector<2x8x8xf32>
    %60 = tpu.concatenate %53, %55, %57, %59 in 0 : vector<2x8x8xf32>, vector<2x8x8xf32>, vector<2x8x8xf32>, vector<2x8x8xf32> -> vector<8x8x8xf32>
    %61 = arith.truncf %42 : vector<8x8x8xf32> to vector<8x8x8xbf16>
    %62 = arith.truncf %51 : vector<8x8x8xf32> to vector<8x8x8xbf16>
    "tpu.trace_start"() <{level = 10 : i32, message = "bqd,bkd->bqk"}> : () -> ()
    %cst_16 = arith.constant dense<0.000000e+00> : vector<8x8x8xf32>
    %63 = tpu.matmul %61, %62, %cst_16 {dimension_numbers = #tpu.dot_dimension_numbers<[2], [2], [1], [1], [0, 0, 0, 1, 1, 1], [0], [0]>} : vector<8x8x8xbf16>, vector<8x8x8xbf16>, vector<8x8x8xf32> -> vector<8x8x8xf32>
    "tpu.trace_stop"() : () -> ()
    %64 = arith.addf %63, %9 : vector<8x8x8xf32>
    %cst_17 = arith.constant dense<0xFF800000> : vector<8x8xf32>
    %65 = vector.multi_reduction <maximumf>, %64, %cst_17 [2] : vector<8x8x8xf32> to vector<8x8xf32>
    %66 = vector.shape_cast %65 : vector<8x8xf32> to vector<8x8x1xf32>
    %67 = vector.broadcast %66 : vector<8x8x1xf32> to vector<8x8x8xf32>
    %68 = arith.subf %64, %67 : vector<8x8x8xf32>
    %69 = math.exp %68 : vector<8x8x8xf32>
    %cst_18 = arith.constant dense<0.000000e+00> : vector<8x8xf32>
    %70 = vector.multi_reduction <add>, %69, %cst_18 [2] : vector<8x8x8xf32> to vector<8x8xf32>
    %71 = vector.shape_cast %70 : vector<8x8xf32> to vector<8x8x1xf32>
    %72 = tpu.reciprocal %71 {approx = true} : vector<8x8x1xf32> -> vector<8x8x1xf32>
    %73 = vector.broadcast %72 : vector<8x8x1xf32> to vector<8x8x8xf32>
    %74 = arith.mulf %69, %73 : vector<8x8x8xf32>
    %75 = arith.truncf %74 : vector<8x8x8xf32> to vector<8x8x8xbf16>
    %76 = arith.truncf %60 : vector<8x8x8xf32> to vector<8x8x8xbf16>
    "tpu.trace_start"() <{level = 10 : i32, message = "bqk,bkd->bqd"}> : () -> ()
    %cst_19 = arith.constant dense<0.000000e+00> : vector<8x8x8xf32>
    %77 = tpu.matmul %75, %76, %cst_19 {dimension_numbers = #tpu.dot_dimension_numbers<[2], [1], [1], [2], [0, 0, 0, 1, 1, 2], [0], [0]>} : vector<8x8x8xbf16>, vector<8x8x8xbf16>, vector<8x8x8xf32> -> vector<8x8x8xf32>
    "tpu.trace_stop"() : () -> ()
    %78 = vector.extract_strided_slice %77 {offsets = [0, 0, 0], sizes = [2, 8, 8], strides = [1, 1, 1]} : vector<8x8x8xf32> to vector<2x8x8xf32>
    %79 = vector.shape_cast %78 : vector<2x8x8xf32> to vector<16x8xf32>
    %80 = vector.extract_strided_slice %77 {offsets = [2, 0, 0], sizes = [2, 8, 8], strides = [1, 1, 1]} : vector<8x8x8xf32> to vector<2x8x8xf32>
    %81 = vector.shape_cast %80 : vector<2x8x8xf32> to vector<16x8xf32>
    %82 = vector.extract_strided_slice %77 {offsets = [4, 0, 0], sizes = [2, 8, 8], strides = [1, 1, 1]} : vector<8x8x8xf32> to vector<2x8x8xf32>
    %83 = vector.shape_cast %82 : vector<2x8x8xf32> to vector<16x8xf32>
    %84 = vector.extract_strided_slice %77 {offsets = [6, 0, 0], sizes = [2, 8, 8], strides = [1, 1, 1]} : vector<8x8x8xf32> to vector<2x8x8xf32>
    %85 = vector.shape_cast %84 : vector<2x8x8xf32> to vector<16x8xf32>
    %86 = tpu.concatenate %79, %81, %83, %85 in 1 : vector<16x8xf32>, vector<16x8xf32>, vector<16x8xf32>, vector<16x8xf32> -> vector<16x32xf32>
    %87 = arith.truncf %86 : vector<16x32xf32> to vector<16x32xbf16>
    %cst_20 = arith.constant dense<0.000000e+00> : vector<16x32xf32>
    %88 = tpu.matmul %87, %14, %cst_20 {dimension_numbers = #tpu.dot_dimension_numbers<[1], [0], [0], [1], [0, 0, 1, 1], [], []>} : vector<16x32xbf16>, vector<32x32xbf16>, vector<16x32xf32> -> vector<16x32xf32>
    %89 = vector.broadcast %24 : vector<1x32xf32> to vector<16x32xf32>
    %90 = arith.addf %88, %89 : vector<16x32xf32>
    %91 = arith.addf %10, %90 : vector<16x32xf32>
    %cst_21 = arith.constant dense<0.000000e+00> : vector<16xf32>
    %92 = vector.multi_reduction <add>, %91, %cst_21 [1] : vector<16x32xf32> to vector<16xf32>
    %93 = vector.shape_cast %92 : vector<16xf32> to vector<16x1xf32>
    %cst_22 = arith.constant 3.200000e+01 : f32
    %94 = vector.broadcast %cst_22 : f32 to vector<16x1xf32>
    %95 = arith.divf %93, %94 : vector<16x1xf32>
    %96 = vector.broadcast %95 : vector<16x1xf32> to vector<16x32xf32>
    %97 = arith.subf %91, %96 : vector<16x32xf32>
    %98 = arith.mulf %97, %97 : vector<16x32xf32>
    %cst_23 = arith.constant dense<0.000000e+00> : vector<16xf32>
    %99 = vector.multi_reduction <add>, %98, %cst_23 [1] : vector<16x32xf32> to vector<16xf32>
    %100 = vector.shape_cast %99 : vector<16xf32> to vector<16x1xf32>
    %cst_24 = arith.constant 3.200000e+01 : f32
    %101 = vector.broadcast %cst_24 : f32 to vector<16x1xf32>
    %102 = arith.divf %100, %101 : vector<16x1xf32>
    %103 = vector.broadcast %95 : vector<16x1xf32> to vector<16x32xf32>
    %104 = arith.subf %91, %103 : vector<16x32xf32>
    %cst_25 = arith.constant 9.99999974E-6 : f32
    %105 = vector.broadcast %cst_25 : f32 to vector<16x1xf32>
    %106 = arith.addf %102, %105 : vector<16x1xf32>
    %107 = math.rsqrt %106 : vector<16x1xf32>
    %108 = vector.broadcast %107 : vector<16x1xf32> to vector<16x32xf32>
    %109 = arith.mulf %104, %108 : vector<16x32xf32>
    %110 = vector.broadcast %25 : vector<1x32xf32> to vector<16x32xf32>
    %111 = arith.mulf %109, %110 : vector<16x32xf32>
    %112 = vector.broadcast %26 : vector<1x32xf32> to vector<16x32xf32>
    %113 = arith.addf %111, %112 : vector<16x32xf32>
    %114 = arith.truncf %113 : vector<16x32xf32> to vector<16x32xbf16>
    %cst_26 = arith.constant dense<0.000000e+00> : vector<16x128xf32>
    %115 = tpu.matmul %114, %16, %cst_26 {dimension_numbers = #tpu.dot_dimension_numbers<[1], [0], [0], [1], [0, 0, 1, 1], [], []>} : vector<16x32xbf16>, vector<32x128xbf16>, vector<16x128xf32> -> vector<16x128xf32>
    %116 = vector.broadcast %23 : vector<1x128xf32> to vector<16x128xf32>
    %117 = arith.addf %115, %116 : vector<16x128xf32>
    %cst_27 = arith.constant 0.000000e+00 : f32
    %118 = vector.broadcast %cst_27 : f32 to vector<16x128xf32>
    %119 = arith.maximumf %117, %118 : vector<16x128xf32>
    %120 = arith.truncf %119 : vector<16x128xf32> to vector<16x128xbf16>
    %cst_28 = arith.constant dense<0.000000e+00> : vector<16x32xf32>
    %121 = tpu.matmul %120, %18, %cst_28 {dimension_numbers = #tpu.dot_dimension_numbers<[1], [0], [0], [1], [0, 0, 1, 1], [], []>} : vector<16x128xbf16>, vector<128x32xbf16>, vector<16x32xf32> -> vector<16x32xf32>
    %122 = vector.broadcast %29 : vector<1x32xf32> to vector<16x32xf32>
    %123 = arith.addf %121, %122 : vector<16x32xf32>
    %124 = arith.addf %113, %123 : vector<16x32xf32>
    %cst_29 = arith.constant dense<0.000000e+00> : vector<16xf32>
    %125 = vector.multi_reduction <add>, %124, %cst_29 [1] : vector<16x32xf32> to vector<16xf32>
    %126 = vector.shape_cast %125 : vector<16xf32> to vector<16x1xf32>
    %cst_30 = arith.constant 3.200000e+01 : f32
    %127 = vector.broadcast %cst_30 : f32 to vector<16x1xf32>
    %128 = arith.divf %126, %127 : vector<16x1xf32>
    %129 = vector.broadcast %128 : vector<16x1xf32> to vector<16x32xf32>
    %130 = arith.subf %124, %129 : vector<16x32xf32>
    %131 = arith.mulf %130, %130 : vector<16x32xf32>
    %cst_31 = arith.constant dense<0.000000e+00> : vector<16xf32>
    %132 = vector.multi_reduction <add>, %131, %cst_31 [1] : vector<16x32xf32> to vector<16xf32>
    %133 = vector.shape_cast %132 : vector<16xf32> to vector<16x1xf32>
    %cst_32 = arith.constant 3.200000e+01 : f32
    %134 = vector.broadcast %cst_32 : f32 to vector<16x1xf32>
    %135 = arith.divf %133, %134 : vector<16x1xf32>
    %136 = vector.broadcast %128 : vector<16x1xf32> to vector<16x32xf32>
    %137 = arith.subf %124, %136 : vector<16x32xf32>
    %cst_33 = arith.constant 9.99999974E-6 : f32
    %138 = vector.broadcast %cst_33 : f32 to vector<16x1xf32>
    %139 = arith.addf %135, %138 : vector<16x1xf32>
    %140 = math.rsqrt %139 : vector<16x1xf32>
    %141 = vector.broadcast %140 : vector<16x1xf32> to vector<16x32xf32>
    %142 = arith.mulf %137, %141 : vector<16x32xf32>
    %143 = vector.broadcast %27 : vector<1x32xf32> to vector<16x32xf32>
    %144 = arith.mulf %142, %143 : vector<16x32xf32>
    %145 = vector.broadcast %28 : vector<1x32xf32> to vector<16x32xf32>
    %146 = arith.addf %144, %145 : vector<16x32xf32>
    %c1 = arith.constant 1 : index
    %c0_34 = arith.constant 0 : index
    %c0_35 = arith.constant 0 : index
    %147 = vector.load %arg2[%c1, %c0_34, %c0_35] : memref<2x232x128xbf16, #tpu.memory_space<vmem>>, vector<1x32x96xbf16>
    %148 = vector.shape_cast %147 : vector<1x32x96xbf16> to vector<32x96xbf16>
    %c1_36 = arith.constant 1 : index
    %c32_37 = arith.constant 32 : index
    %c0_38 = arith.constant 0 : index
    %149 = vector.load %arg2[%c1_36, %c32_37, %c0_38] : memref<2x232x128xbf16, #tpu.memory_space<vmem>>, vector<1x32x32xbf16>
    %150 = vector.shape_cast %149 : vector<1x32x32xbf16> to vector<32x32xbf16>
    %c1_39 = arith.constant 1 : index
    %c64_40 = arith.constant 64 : index
    %c0_41 = arith.constant 0 : index
    %151 = vector.load %arg2[%c1_39, %c64_40, %c0_41] : memref<2x232x128xbf16, #tpu.memory_space<vmem>>, vector<1x32x128xbf16>
    %152 = vector.shape_cast %151 : vector<1x32x128xbf16> to vector<32x128xbf16>
    %c1_42 = arith.constant 1 : index
    %c96_43 = arith.constant 96 : index
    %c0_44 = arith.constant 0 : index
    %153 = vector.load %arg2[%c1_42, %c96_43, %c0_44] : memref<2x232x128xbf16, #tpu.memory_space<vmem>>, vector<1x128x32xbf16>
    %154 = vector.shape_cast %153 : vector<1x128x32xbf16> to vector<128x32xbf16>
    %c1_45 = arith.constant 1 : index
    %c224_46 = arith.constant 224 : index
    %c0_47 = arith.constant 0 : index
    %155 = vector.load %arg2[%c1_45, %c224_46, %c0_47] : memref<2x232x128xbf16, #tpu.memory_space<vmem>>, vector<1x8x128xbf16>
    %156 = vector.shape_cast %155 : vector<1x8x128xbf16> to vector<8x128xbf16>
    %157 = arith.extf %156 : vector<8x128xbf16> to vector<8x128xf32>
    %158 = vector.extract_strided_slice %157 {offsets = [0, 0], sizes = [1, 96], strides = [1, 1]} : vector<8x128xf32> to vector<1x96xf32>
    %159 = vector.extract_strided_slice %157 {offsets = [1, 0], sizes = [1, 128], strides = [1, 1]} : vector<8x128xf32> to vector<1x128xf32>
    %160 = vector.extract_strided_slice %157 {offsets = [2, 0], sizes = [1, 32], strides = [1, 1]} : vector<8x128xf32> to vector<1x32xf32>
    %161 = vector.extract_strided_slice %157 {offsets = [3, 0], sizes = [1, 32], strides = [1, 1]} : vector<8x128xf32> to vector<1x32xf32>
    %162 = vector.extract_strided_slice %157 {offsets = [4, 0], sizes = [1, 32], strides = [1, 1]} : vector<8x128xf32> to vector<1x32xf32>
    %163 = vector.extract_strided_slice %157 {offsets = [5, 0], sizes = [1, 32], strides = [1, 1]} : vector<8x128xf32> to vector<1x32xf32>
    %164 = vector.extract_strided_slice %157 {offsets = [6, 0], sizes = [1, 32], strides = [1, 1]} : vector<8x128xf32> to vector<1x32xf32>
    %165 = vector.extract_strided_slice %157 {offsets = [7, 0], sizes = [1, 32], strides = [1, 1]} : vector<8x128xf32> to vector<1x32xf32>
    %166 = arith.truncf %146 : vector<16x32xf32> to vector<16x32xbf16>
    %cst_48 = arith.constant dense<0.000000e+00> : vector<16x96xf32>
    %167 = tpu.matmul %166, %148, %cst_48 {dimension_numbers = #tpu.dot_dimension_numbers<[1], [0], [0], [1], [0, 0, 1, 1], [], []>} : vector<16x32xbf16>, vector<32x96xbf16>, vector<16x96xf32> -> vector<16x96xf32>
    %168 = vector.broadcast %158 : vector<1x96xf32> to vector<16x96xf32>
    %169 = arith.addf %167, %168 : vector<16x96xf32>
    %170 = vector.extract_strided_slice %169 {offsets = [0, 0], sizes = [16, 8], strides = [1, 1]} : vector<16x96xf32> to vector<16x8xf32>
    %171 = vector.shape_cast %170 : vector<16x8xf32> to vector<2x8x8xf32>
    %172 = vector.extract_strided_slice %169 {offsets = [0, 8], sizes = [16, 8], strides = [1, 1]} : vector<16x96xf32> to vector<16x8xf32>
    %173 = vector.shape_cast %172 : vector<16x8xf32> to vector<2x8x8xf32>
    %174 = vector.extract_strided_slice %169 {offsets = [0, 16], sizes = [16, 8], strides = [1, 1]} : vector<16x96xf32> to vector<16x8xf32>
    %175 = vector.shape_cast %174 : vector<16x8xf32> to vector<2x8x8xf32>
    %176 = vector.extract_strided_slice %169 {offsets = [0, 24], sizes = [16, 8], strides = [1, 1]} : vector<16x96xf32> to vector<16x8xf32>
    %177 = vector.shape_cast %176 : vector<16x8xf32> to vector<2x8x8xf32>
    %178 = tpu.concatenate %171, %173, %175, %177 in 0 : vector<2x8x8xf32>, vector<2x8x8xf32>, vector<2x8x8xf32>, vector<2x8x8xf32> -> vector<8x8x8xf32>
    %179 = vector.extract_strided_slice %169 {offsets = [0, 32], sizes = [16, 8], strides = [1, 1]} : vector<16x96xf32> to vector<16x8xf32>
    %180 = vector.shape_cast %179 : vector<16x8xf32> to vector<2x8x8xf32>
    %181 = vector.extract_strided_slice %169 {offsets = [0, 40], sizes = [16, 8], strides = [1, 1]} : vector<16x96xf32> to vector<16x8xf32>
    %182 = vector.shape_cast %181 : vector<16x8xf32> to vector<2x8x8xf32>
    %183 = vector.extract_strided_slice %169 {offsets = [0, 48], sizes = [16, 8], strides = [1, 1]} : vector<16x96xf32> to vector<16x8xf32>
    %184 = vector.shape_cast %183 : vector<16x8xf32> to vector<2x8x8xf32>
    %185 = vector.extract_strided_slice %169 {offsets = [0, 56], sizes = [16, 8], strides = [1, 1]} : vector<16x96xf32> to vector<16x8xf32>
    %186 = vector.shape_cast %185 : vector<16x8xf32> to vector<2x8x8xf32>
    %187 = tpu.concatenate %180, %182, %184, %186 in 0 : vector<2x8x8xf32>, vector<2x8x8xf32>, vector<2x8x8xf32>, vector<2x8x8xf32> -> vector<8x8x8xf32>
    %188 = vector.extract_strided_slice %169 {offsets = [0, 64], sizes = [16, 8], strides = [1, 1]} : vector<16x96xf32> to vector<16x8xf32>
    %189 = vector.shape_cast %188 : vector<16x8xf32> to vector<2x8x8xf32>
    %190 = vector.extract_strided_slice %169 {offsets = [0, 72], sizes = [16, 8], strides = [1, 1]} : vector<16x96xf32> to vector<16x8xf32>
    %191 = vector.shape_cast %190 : vector<16x8xf32> to vector<2x8x8xf32>
    %192 = vector.extract_strided_slice %169 {offsets = [0, 80], sizes = [16, 8], strides = [1, 1]} : vector<16x96xf32> to vector<16x8xf32>
    %193 = vector.shape_cast %192 : vector<16x8xf32> to vector<2x8x8xf32>
    %194 = vector.extract_strided_slice %169 {offsets = [0, 88], sizes = [16, 8], strides = [1, 1]} : vector<16x96xf32> to vector<16x8xf32>
    %195 = vector.shape_cast %194 : vector<16x8xf32> to vector<2x8x8xf32>
    %196 = tpu.concatenate %189, %191, %193, %195 in 0 : vector<2x8x8xf32>, vector<2x8x8xf32>, vector<2x8x8xf32>, vector<2x8x8xf32> -> vector<8x8x8xf32>
    %197 = arith.truncf %178 : vector<8x8x8xf32> to vector<8x8x8xbf16>
    %198 = arith.truncf %187 : vector<8x8x8xf32> to vector<8x8x8xbf16>
    "tpu.trace_start"() <{level = 10 : i32, message = "bqd,bkd->bqk"}> : () -> ()
    %cst_49 = arith.constant dense<0.000000e+00> : vector<8x8x8xf32>
    %199 = tpu.matmul %197, %198, %cst_49 {dimension_numbers = #tpu.dot_dimension_numbers<[2], [2], [1], [1], [0, 0, 0, 1, 1, 1], [0], [0]>} : vector<8x8x8xbf16>, vector<8x8x8xbf16>, vector<8x8x8xf32> -> vector<8x8x8xf32>
    "tpu.trace_stop"() : () -> ()
    %200 = arith.addf %199, %9 : vector<8x8x8xf32>
    %cst_50 = arith.constant dense<0xFF800000> : vector<8x8xf32>
    %201 = vector.multi_reduction <maximumf>, %200, %cst_50 [2] : vector<8x8x8xf32> to vector<8x8xf32>
    %202 = vector.shape_cast %201 : vector<8x8xf32> to vector<8x8x1xf32>
    %203 = vector.broadcast %202 : vector<8x8x1xf32> to vector<8x8x8xf32>
    %204 = arith.subf %200, %203 : vector<8x8x8xf32>
    %205 = math.exp %204 : vector<8x8x8xf32>
    %cst_51 = arith.constant dense<0.000000e+00> : vector<8x8xf32>
    %206 = vector.multi_reduction <add>, %205, %cst_51 [2] : vector<8x8x8xf32> to vector<8x8xf32>
    %207 = vector.shape_cast %206 : vector<8x8xf32> to vector<8x8x1xf32>
    %208 = tpu.reciprocal %207 {approx = true} : vector<8x8x1xf32> -> vector<8x8x1xf32>
    %209 = vector.broadcast %208 : vector<8x8x1xf32> to vector<8x8x8xf32>
    %210 = arith.mulf %205, %209 : vector<8x8x8xf32>
    %211 = arith.truncf %210 : vector<8x8x8xf32> to vector<8x8x8xbf16>
    %212 = arith.truncf %196 : vector<8x8x8xf32> to vector<8x8x8xbf16>
    "tpu.trace_start"() <{level = 10 : i32, message = "bqk,bkd->bqd"}> : () -> ()
    %cst_52 = arith.constant dense<0.000000e+00> : vector<8x8x8xf32>
    %213 = tpu.matmul %211, %212, %cst_52 {dimension_numbers = #tpu.dot_dimension_numbers<[2], [1], [1], [2], [0, 0, 0, 1, 1, 2], [0], [0]>} : vector<8x8x8xbf16>, vector<8x8x8xbf16>, vector<8x8x8xf32> -> vector<8x8x8xf32>
    "tpu.trace_stop"() : () -> ()
    %214 = vector.extract_strided_slice %213 {offsets = [0, 0, 0], sizes = [2, 8, 8], strides = [1, 1, 1]} : vector<8x8x8xf32> to vector<2x8x8xf32>
    %215 = vector.shape_cast %214 : vector<2x8x8xf32> to vector<16x8xf32>
    %216 = vector.extract_strided_slice %213 {offsets = [2, 0, 0], sizes = [2, 8, 8], strides = [1, 1, 1]} : vector<8x8x8xf32> to vector<2x8x8xf32>
    %217 = vector.shape_cast %216 : vector<2x8x8xf32> to vector<16x8xf32>
    %218 = vector.extract_strided_slice %213 {offsets = [4, 0, 0], sizes = [2, 8, 8], strides = [1, 1, 1]} : vector<8x8x8xf32> to vector<2x8x8xf32>
    %219 = vector.shape_cast %218 : vector<2x8x8xf32> to vector<16x8xf32>
    %220 = vector.extract_strided_slice %213 {offsets = [6, 0, 0], sizes = [2, 8, 8], strides = [1, 1, 1]} : vector<8x8x8xf32> to vector<2x8x8xf32>
    %221 = vector.shape_cast %220 : vector<2x8x8xf32> to vector<16x8xf32>
    %222 = tpu.concatenate %215, %217, %219, %221 in 1 : vector<16x8xf32>, vector<16x8xf32>, vector<16x8xf32>, vector<16x8xf32> -> vector<16x32xf32>
    %223 = arith.truncf %222 : vector<16x32xf32> to vector<16x32xbf16>
    %cst_53 = arith.constant dense<0.000000e+00> : vector<16x32xf32>
    %224 = tpu.matmul %223, %150, %cst_53 {dimension_numbers = #tpu.dot_dimension_numbers<[1], [0], [0], [1], [0, 0, 1, 1], [], []>} : vector<16x32xbf16>, vector<32x32xbf16>, vector<16x32xf32> -> vector<16x32xf32>
    %225 = vector.broadcast %160 : vector<1x32xf32> to vector<16x32xf32>
    %226 = arith.addf %224, %225 : vector<16x32xf32>
    %227 = arith.addf %146, %226 : vector<16x32xf32>
    %cst_54 = arith.constant dense<0.000000e+00> : vector<16xf32>
    %228 = vector.multi_reduction <add>, %227, %cst_54 [1] : vector<16x32xf32> to vector<16xf32>
    %229 = vector.shape_cast %228 : vector<16xf32> to vector<16x1xf32>
    %cst_55 = arith.constant 3.200000e+01 : f32
    %230 = vector.broadcast %cst_55 : f32 to vector<16x1xf32>
    %231 = arith.divf %229, %230 : vector<16x1xf32>
    %232 = vector.broadcast %231 : vector<16x1xf32> to vector<16x32xf32>
    %233 = arith.subf %227, %232 : vector<16x32xf32>
    %234 = arith.mulf %233, %233 : vector<16x32xf32>
    %cst_56 = arith.constant dense<0.000000e+00> : vector<16xf32>
    %235 = vector.multi_reduction <add>, %234, %cst_56 [1] : vector<16x32xf32> to vector<16xf32>
    %236 = vector.shape_cast %235 : vector<16xf32> to vector<16x1xf32>
    %cst_57 = arith.constant 3.200000e+01 : f32
    %237 = vector.broadcast %cst_57 : f32 to vector<16x1xf32>
    %238 = arith.divf %236, %237 : vector<16x1xf32>
    %239 = vector.broadcast %231 : vector<16x1xf32> to vector<16x32xf32>
    %240 = arith.subf %227, %239 : vector<16x32xf32>
    %cst_58 = arith.constant 9.99999974E-6 : f32
    %241 = vector.broadcast %cst_58 : f32 to vector<16x1xf32>
    %242 = arith.addf %238, %241 : vector<16x1xf32>
    %243 = math.rsqrt %242 : vector<16x1xf32>
    %244 = vector.broadcast %243 : vector<16x1xf32> to vector<16x32xf32>
    %245 = arith.mulf %240, %244 : vector<16x32xf32>
    %246 = vector.broadcast %161 : vector<1x32xf32> to vector<16x32xf32>
    %247 = arith.mulf %245, %246 : vector<16x32xf32>
    %248 = vector.broadcast %162 : vector<1x32xf32> to vector<16x32xf32>
    %249 = arith.addf %247, %248 : vector<16x32xf32>
    %250 = arith.truncf %249 : vector<16x32xf32> to vector<16x32xbf16>
    %cst_59 = arith.constant dense<0.000000e+00> : vector<16x128xf32>
    %251 = tpu.matmul %250, %152, %cst_59 {dimension_numbers = #tpu.dot_dimension_numbers<[1], [0], [0], [1], [0, 0, 1, 1], [], []>} : vector<16x32xbf16>, vector<32x128xbf16>, vector<16x128xf32> -> vector<16x128xf32>
    %252 = vector.broadcast %159 : vector<1x128xf32> to vector<16x128xf32>
    %253 = arith.addf %251, %252 : vector<16x128xf32>
    %cst_60 = arith.constant 0.000000e+00 : f32
    %254 = vector.broadcast %cst_60 : f32 to vector<16x128xf32>
    %255 = arith.maximumf %253, %254 : vector<16x128xf32>
    %256 = arith.truncf %255 : vector<16x128xf32> to vector<16x128xbf16>
    %cst_61 = arith.constant dense<0.000000e+00> : vector<16x32xf32>
    %257 = tpu.matmul %256, %154, %cst_61 {dimension_numbers = #tpu.dot_dimension_numbers<[1], [0], [0], [1], [0, 0, 1, 1], [], []>} : vector<16x128xbf16>, vector<128x32xbf16>, vector<16x32xf32> -> vector<16x32xf32>
    %258 = vector.broadcast %165 : vector<1x32xf32> to vector<16x32xf32>
    %259 = arith.addf %257, %258 : vector<16x32xf32>
    %260 = arith.addf %249, %259 : vector<16x32xf32>
    %cst_62 = arith.constant dense<0.000000e+00> : vector<16xf32>
    %261 = vector.multi_reduction <add>, %260, %cst_62 [1] : vector<16x32xf32> to vector<16xf32>
    %262 = vector.shape_cast %261 : vector<16xf32> to vector<16x1xf32>
    %cst_63 = arith.constant 3.200000e+01 : f32
    %263 = vector.broadcast %cst_63 : f32 to vector<16x1xf32>
    %264 = arith.divf %262, %263 : vector<16x1xf32>
    %265 = vector.broadcast %264 : vector<16x1xf32> to vector<16x32xf32>
    %266 = arith.subf %260, %265 : vector<16x32xf32>
    %267 = arith.mulf %266, %266 : vector<16x32xf32>
    %cst_64 = arith.constant dense<0.000000e+00> : vector<16xf32>
    %268 = vector.multi_reduction <add>, %267, %cst_64 [1] : vector<16x32xf32> to vector<16xf32>
    %269 = vector.shape_cast %268 : vector<16xf32> to vector<16x1xf32>
    %cst_65 = arith.constant 3.200000e+01 : f32
    %270 = vector.broadcast %cst_65 : f32 to vector<16x1xf32>
    %271 = arith.divf %269, %270 : vector<16x1xf32>
    %272 = vector.broadcast %264 : vector<16x1xf32> to vector<16x32xf32>
    %273 = arith.subf %260, %272 : vector<16x32xf32>
    %cst_66 = arith.constant 9.99999974E-6 : f32
    %274 = vector.broadcast %cst_66 : f32 to vector<16x1xf32>
    %275 = arith.addf %271, %274 : vector<16x1xf32>
    %276 = math.rsqrt %275 : vector<16x1xf32>
    %277 = vector.broadcast %276 : vector<16x1xf32> to vector<16x32xf32>
    %278 = arith.mulf %273, %277 : vector<16x32xf32>
    %279 = vector.broadcast %163 : vector<1x32xf32> to vector<16x32xf32>
    %280 = arith.mulf %278, %279 : vector<16x32xf32>
    %281 = vector.broadcast %164 : vector<1x32xf32> to vector<16x32xf32>
    %282 = arith.addf %280, %281 : vector<16x32xf32>
    %c0_67 = arith.constant 0 : index
    %c0_68 = arith.constant 0 : index
    %283 = vector.load %arg3[%c0_67, %c0_68] : memref<16x32xf32, #tpu.memory_space<vmem>>, vector<16x32xf32>
    tpu.vector_store %arg3[%c0_67, %c0_68], %282 {strides = array<i32>} : memref<16x32xf32, #tpu.memory_space<vmem>>, vector<16x32xf32>,
    return
  }
}

</mosaic_0001>

<llo_original>
// kernel: tpu_custom_call.1
$region0: #{tpu_custom_call.1}
  #allocation0 [shape = 'u32[]', space=smem, size = 0x4, offset = 0x4, fixed_abs, tag = 'smem constant byte address 0x4 - core index']
  #allocation1 [shape = 'u32[144,128]{1,0:T(1,128)}', space=vmem, size = 0x12000, scoped, tag = 'internal scratch']
  %s0 = inlined_call_operand.hbm [shape: f32[16,32], index: 0, kind: input, shape index: {}]
  %s1 = inlined_call_operand.hbm [shape: s32[2,8], index: 1, kind: input, shape index: {}]
  %s2 = inlined_call_operand.hbm [shape: bf16[2,232,128], index: 2, kind: input, shape index: {}]
  %s3 = inlined_call_operand.hbm [shape: f32[16,32], index: 3, kind: output, shape index: {}]
  %s4 = sld [smem:[#allocation0]]
  $region34: #{tpu_custom_call.1} parent=0
    _
  %s6 = ssub.s32 1, %s4
  %s7 = scalar_select 0, %s6, %s4
  $region1: #{tpu_custom_call.1} parent=0
    #allocation2 [shape = 'u8[8192]{0}', space=vmem, size = 0x2000, scoped, tag = 'input window, operand 0, single buffered']
    #allocation3 [shape = 's32[1]{0}', space=sflag, size = 0x4, scoped, tag = 'scoped memory for tpu_custom_call.1']
    #allocation4 [shape = 's32[1]{0}', space=sflag, size = 0x4, scoped, tag = 'scoped memory for tpu_custom_call.1']
    #allocation5 [shape = 'u8[1024]{0}', space=vmem, size = 0x400, scoped, tag = 'input window, operand 1, single buffered']
    #allocation6 [shape = 's32[1]{0}', space=sflag, size = 0x4, scoped, tag = 'scoped memory for tpu_custom_call.1']
    #allocation7 [shape = 'u8[118784]{0}', space=vmem, size = 0x1d000, scoped, tag = 'input window, operand 2, single buffered']
    #allocation8 [shape = 'u8[8192]{0}', space=vmem, size = 0x2000, scoped, tag = 'output window, operand 0, single buffered']
    %8 = vsyncpa [#allocation3], 0
    %9 = vsyncpa [#allocation6], 0
    %10 = vsyncpa [#allocation4], 0
    // Predicated region
    $region2: #{tpu_custom_call.1} parent=1 // pred_check
      _
    $region3: #{tpu_custom_call.1} parent=1 // pred_check_branch
      %12 = sbr.rel (0) target = $region5
    $region4: #{tpu_custom_call.1} parent=1 // pred_region
      %s14 = ssub.s32 256, 256
      %15 = vsyncadd [#allocation3], %s14
      %s16 = sshll.u32 [#allocation2], 4
      %s17 = int_to_ptr.vmem [resolvable:$true] %s16
      %22 = dma.hbm_to_vmem [thread:$0]  %s0, 256, %s17, [#allocation3], 128, 128, 8
    $region5: #{tpu_custom_call.1} parent=1 // pred_fallthru
      _
    // Predicated region
    $region6: #{tpu_custom_call.1} parent=1 // pred_check
      _
    $region7: #{tpu_custom_call.1} parent=1 // pred_check_branch
      %24 = sbr.rel (0) target = $region9
    $region8: #{tpu_custom_call.1} parent=1 // pred_region
      %s26 = ssub.s32 32, 32
      %27 = vsyncadd [#allocation6], %s26
      %s29 = sshll.u32 [#allocation5], 4
      %s30 = int_to_ptr.vmem [resolvable:$true] %s29
      %32 = dma.hbm_to_vmem [thread:$0]  %s1, 32, %s30, [#allocation6]
    $region9: #{tpu_custom_call.1} parent=1 // pred_fallthru
      _
    // Predicated region
    $region10: #{tpu_custom_call.1} parent=1 // pred_check
      _
    $region11: #{tpu_custom_call.1} parent=1 // pred_check_branch
      %34 = sbr.rel (0) target = $region13
    $region12: #{tpu_custom_call.1} parent=1 // pred_region
      %s36 = ssub.s32 3712, 3712
      %37 = vsyncadd [#allocation6], %s36
      %s38 = sshll.u32 [#allocation7], 4
      %s39 = int_to_ptr.vmem [resolvable:$true] %s38
      %44 = dma.hbm_to_vmem [thread:$0]  %s2, 3712, %s39, [#allocation6], 64, 64, 4
    $region13: #{tpu_custom_call.1} parent=1 // pred_fallthru
      _
    // Predicated region
    $region14: #{tpu_custom_call.1} parent=1 // pred_check
      _
    $region15: #{tpu_custom_call.1} parent=1 // pred_check_branch
      %46 = sbr.rel (0) target = $region17
    $region16: #{tpu_custom_call.1} parent=1 // pred_region
      %47 = dma.done [#allocation3], 256
    $region17: #{tpu_custom_call.1} parent=1 // pred_fallthru
      _
    // Predicated region
    $region18: #{tpu_custom_call.1} parent=1 // pred_check
      _
    $region19: #{tpu_custom_call.1} parent=1 // pred_check_branch
      %49 = sbr.rel (0) target = $region21
    $region20: #{tpu_custom_call.1} parent=1 // pred_region
      %50 = dma.done [#allocation6], 32
    $region21: #{tpu_custom_call.1} parent=1 // pred_fallthru
      _
    // Predicated region
    $region22: #{tpu_custom_call.1} parent=1 // pred_check
      _
    $region23: #{tpu_custom_call.1} parent=1 // pred_check_branch
      %52 = sbr.rel (0) target = $region25
    $region24: #{tpu_custom_call.1} parent=1 // pred_region
      %53 = dma.done [#allocation6], 3712
    $region25: #{tpu_custom_call.1} parent=1 // pred_fallthru
      _
    %v55 = vld [vmem:[#allocation5] sm:$0x3]
    %vm56 = vcmp.ne.s32.totalorder %v55, 0
    %v57 = vsel %vm56, -1e+30, 0.0
    %v60 = vunpack.c.l.s4 1966171168
    %v61 = vunpack.c.0.s8 %v60
    %v62 = vlaneseq
    %v63 = vshrl.u32 %v62, 7
    %v64 = vsub.s32 %v61, %v63
    %v65 = vrot.slane %v57, %v64
    %v66 = vcombine.high %v65, %v65
    %v68 = vunpack.c.l.s4 1966171168
    %v69 = vunpack.c.0.s8 %v68
    %v70 = vlaneseq
    %v71 = vshrl.u32 %v70, 7
    %v72 = vsub.s32 %v69, %v71
    %v73 = vrot.slane %v65, %v72
    %v75 = vunpack.c.l.s4 1966171168
    %v76 = vunpack.c.0.s8 %v75
    %v77 = vlaneseq
    %v78 = vshrl.u32 %v77, 7
    %v79 = vsub.s32 %v76, %v78
    %v80 = vrot.slane %v66, %v79
    %v81 = vlaneseq
    %v82 = vshrl.u32 %v81, 7
    %v83 = vsub.s32 0, %v82
    %v84 = vrot.slane %v73, %v83
    %v85 = vlaneseq
    %v86 = vshrl.u32 %v85, 7
    %v87 = vsub.s32 0, %v86
    %v88 = vrot.slane %v80, %v87
    %v91 = vld [vmem:[#allocation2] sm:$0xff]
    %v92 = vld [vmem:[#allocation2 + $0x8] sm:$0xff]
    %v93 = vld [vmem:[#allocation7] sm:$0xf]
    %v94 = vld [vmem:[#allocation7 + $0x4] sm:$0xf]
    %v95 = vld [vmem:[#allocation7 + $0x8] sm:$0xf]
    %v96 = vld [vmem:[#allocation7 + $0xc] sm:$0xf]
    %v97 = vld [vmem:[#allocation7 + $0x10] sm:$0xf]
    %v98 = vld [vmem:[#allocation7 + $0x14] sm:$0xf]
    %v99 = vld [vmem:[#allocation7 + $0x18] sm:$0xf]
    %v100 = vld [vmem:[#allocation7 + $0x1c] sm:$0xf]
    %v101 = vld [vmem:[#allocation7 + $0x20] sm:$0xf]
    %v102 = vld [vmem:[#allocation7 + $0x24] sm:$0xf]
    %v103 = vld [vmem:[#allocation7 + $0x28] sm:$0xf]
    %v104 = vld [vmem:[#allocation7 + $0x2c] sm:$0xf]
    %v105 = vld [vmem:[#allocation7 + $0x30] sm:$0xf]
    %v106 = vld [vmem:[#allocation7 + $0x34] sm:$0xf]
    %v107 = vld [vmem:[#allocation7 + $0x38] sm:$0xf]
    %v108 = vld [vmem:[#allocation7 + $0x3c] sm:$0xf]
    %v109 = vld [vmem:[#allocation7 + $0x40] sm:$0xf]
    %v110 = vld [vmem:[#allocation7 + $0x44] sm:$0xf]
    %v111 = vld [vmem:[#allocation7 + $0x48] sm:$0xf]
    %v112 = vld [vmem:[#allocation7 + $0x4c] sm:$0xf]
    %v113 = vld [vmem:[#allocation7 + $0x50] sm:$0xf]
    %v114 = vld [vmem:[#allocation7 + $0x54] sm:$0xf]
    %v115 = vld [vmem:[#allocation7 + $0x58] sm:$0xf]
    %v116 = vld [vmem:[#allocation7 + $0x5c] sm:$0xf]
    %v117 = vld [vmem:[#allocation7 + $0x60] sm:$0xf]
    %v118 = vld [vmem:[#allocation7 + $0x64] sm:$0xf]
    %v119 = vld [vmem:[#allocation7 + $0x68] sm:$0xf]
    %v120 = vld [vmem:[#allocation7 + $0x6c] sm:$0xf]
    %v121 = vld [vmem:[#allocation7 + $0x70] sm:$0xf]
    %v122 = vunpack.c.l.bf16 %v121
    %v123 = vpack.c.bf16 %v92, %v91
    %v124 = vlaneseq
    %v125 = vshrl.u32 %v124, 7
    %v126 = vsub.s32 0, %v125
    %v127 = vrot.slane %v122, %v126
    %v132 = vunpack.c.l.b16 %v93
    %v133 = vunpack.c.l.b16 %v94
    %v134 = vunpack.c.l.b16 %v95
    %v135 = vunpack.c.l.b16 %v96
    %v136 = vpack.c.b16 %v133, %v132
    %v137 = vpack.c.b16 %v135, %v134
    %vm140 = vcmask 261120
    %v142 = vsel %vm140, %v123, 0
    %144 = vmatprep.subr.bf16.mxu0 0
    %145 = vmatpush1.bf16.msra.mxu0 0
    %146 = vmatprep.subr.bf16.mxu0 0
    %147 = vmatpush1.bf16.msra.mxu0 0
    %148 = vmatprep.subr.bf16.mxu0 0
    %149 = vmatpush1.bf16.msra.mxu0 0
    %150 = vmatprep.subr.bf16.mxu0 0
    %151 = vmatpush1.bf16.msra.mxu0 0
    %152 = vmatprep.subr.bf16.mxu0 0
    %153 = vmatpush1.bf16.msra.mxu0 0
    %154 = vmatprep.subr.bf16.mxu0 0
    %155 = vmatpush1.bf16.msra.mxu0 0
    %156 = vmatprep.subr.bf16.mxu0 0
    %157 = vmatpush1.bf16.msra.mxu0 %v137
    %158 = vmatprep.subr.bf16.mxu0 0
    %159 = vmatpush1.bf16.msra.mxu0 %v136
    %160 = vmatprep.subr.bf16.mxu0 0
    %161 = vmatpush2.bf16.msra.mxu0 0
    %162 = vmatprep.subr.bf16.mxu0 0
    %163 = vmatpush2.bf16.msra.mxu0 0
    %164 = vmatprep.subr.bf16.mxu0 0
    %165 = vmatpush2.bf16.msra.mxu0 0
    %166 = vmatprep.subr.bf16.mxu0 0
    %167 = vmatpush2.bf16.msra.mxu0 0
    %168 = vmatprep.subr.bf16.mxu0 0
    %169 = vmatpush2.bf16.msra.mxu0 0
    %170 = vmatprep.subr.bf16.mxu0 0
    %171 = vmatpush2.bf16.msra.mxu0 0
    %172 = vmatprep.subr.bf16.mxu0 0
    %173 = vmatpush2.bf16.msra.mxu0 0
    %174 = vmatprep.subr.bf16.mxu0 0
    %175 = vmatpush2.bf16.msra.mxu0 0
    %176 = vmatprep.mubr.bf16.mxu0 0
    %177 = vmatmul.mubr.bf16.gmra.mxu0 %v142
    %v178 = vpop.f32.mrf.mxu0
    %v179 = vadd.f32 %v127, %v178
    %v180 = vpop.f32.mrf.mxu0
    %v181 = vpop.f32.mrf.mxu0
    %v182 = vadd.f32 %v127, %v181
    %v183 = vpop.f32.mrf.mxu0
    %184 = vdwg.mxu0
    %187 = vrot.lane.b32.xlu0 %v179, 120
    %v188 = vpop.permute.xlu0 %187
    %189 = vrot.lane.b32.xlu0 %v182, 120
    %v190 = vpop.permute.xlu0 %189
    %193 = vrot.lane.b32.xlu0 %v179, 112
    %v194 = vpop.permute.xlu0 %193
    %195 = vrot.lane.b32.xlu0 %v182, 112
    %v196 = vpop.permute.xlu0 %195
    %199 = vrot.lane.b32.xlu0 %v179, 104
    %v200 = vpop.permute.xlu0 %199
    %201 = vrot.lane.b32.xlu0 %v182, 104
    %v202 = vpop.permute.xlu0 %201
    %v205 = vpack.c.bf16 %v179, %v179
    %v206 = vpack.c.bf16 %v182, %v182
    %v207 = vpack.c.bf16 %v188, %v188
    %v208 = vpack.c.bf16 %v190, %v190
    %v209 = vpack.c.bf16 %v194, %v194
    %v210 = vpack.c.bf16 %v196, %v196
    %v211 = vpack.c.bf16 %v200, %v200
    %v212 = vpack.c.bf16 %v202, %v202
    %214 = vrot.lane.b32.xlu0 %v205, 96
    %v215 = vpop.permute.xlu0 %214
    %vm216 = vcmask 64512
    %v218 = vsel %vm216, %v205, 0
    %v221 = vsel %vm216, %v215, 0
    %223 = vmatprep.subr.bf16.mxu0 0
    %224 = vmatpush1.bf16.xpose.msra.mxu0 0
    %225 = vmatprep.subr.bf16.mxu0 0
    %226 = vmatpush1.bf16.xpose.msra.mxu0 0
    %227 = vmatprep.subr.bf16.mxu0 0
    %228 = vmatpush1.bf16.xpose.msra.mxu0 0
    %229 = vmatprep.subr.bf16.mxu0 0
    %230 = vmatpush1.bf16.xpose.msra.mxu0 0
    %231 = vmatprep.subr.bf16.mxu0 0
    %232 = vmatpush1.bf16.xpose.msra.mxu0 0
    %233 = vmatprep.subr.bf16.mxu0 0
    %234 = vmatpush1.bf16.xpose.msra.mxu0 0
    %235 = vmatprep.subr.bf16.mxu0 0
    %236 = vmatpush1.bf16.xpose.msra.mxu0 0
    %237 = vmatprep.subr.bf16.mxu0 0
    %238 = vmatpush1.bf16.xpose.msra.mxu0 %v221
    %239 = vmatprep.subr.bf16.mxu0 0
    %240 = vmatpush2.bf16.xpose.msra.mxu0 0
    %241 = vmatprep.subr.bf16.mxu0 0
    %242 = vmatpush2.bf16.xpose.msra.mxu0 0
    %243 = vmatprep.subr.bf16.mxu0 0
    %244 = vmatpush2.bf16.xpose.msra.mxu0 0
    %245 = vmatprep.subr.bf16.mxu0 0
    %246 = vmatpush2.bf16.xpose.msra.mxu0 0
    %247 = vmatprep.subr.bf16.mxu0 0
    %248 = vmatpush2.bf16.xpose.msra.mxu0 0
    %249 = vmatprep.subr.bf16.mxu0 0
    %250 = vmatpush2.bf16.xpose.msra.mxu0 0
    %251 = vmatprep.subr.bf16.mxu0 0
    %252 = vmatpush2.bf16.xpose.msra.mxu0 0
    %253 = vmatprep.subr.bf16.mxu0 0
    %254 = vmatpush2.bf16.xpose.msra.mxu0 0
    %255 = vmatprep.mubr.bf16.mxu0 0
    %256 = vmatmul.mubr.bf16.gmra.mxu0 %v218
    %v257 = vpop.f32.mrf.mxu0
    %v258 = vadd.f32 %v84, %v257
    %v259 = vpop.f32.mrf.mxu0
    %v260 = vpop.f32.mrf.mxu0
    %v261 = vpop.f32.mrf.mxu0
    %262 = vdwg.mxu0
    %264 = vrot.lane.b32.xlu0 %v206, 96
    %v265 = vpop.permute.xlu0 %264
    %v267 = vsel %vm216, %v206, 0
    %v270 = vsel %vm216, %v265, 0
    %272 = vmatprep.subr.bf16.mxu0 0
    %273 = vmatpush1.bf16.xpose.msra.mxu0 0
    %274 = vmatprep.subr.bf16.mxu0 0
    %275 = vmatpush1.bf16.xpose.msra.mxu0 0
    %276 = vmatprep.subr.bf16.mxu0 0
    %277 = vmatpush1.bf16.xpose.msra.mxu0 0
    %278 = vmatprep.subr.bf16.mxu0 0
    %279 = vmatpush1.bf16.xpose.msra.mxu0 0
    %280 = vmatprep.subr.bf16.mxu0 0
    %281 = vmatpush1.bf16.xpose.msra.mxu0 0
    %282 = vmatprep.subr.bf16.mxu0 0
    %283 = vmatpush1.bf16.xpose.msra.mxu0 0
    %284 = vmatprep.subr.bf16.mxu0 0
    %285 = vmatpush1.bf16.xpose.msra.mxu0 0
    %286 = vmatprep.subr.bf16.mxu0 0
    %287 = vmatpush1.bf16.xpose.msra.mxu0 %v270
    %288 = vmatprep.subr.bf16.mxu0 0
    %289 = vmatpush2.bf16.xpose.msra.mxu0 0
    %290 = vmatprep.subr.bf16.mxu0 0
    %291 = vmatpush2.bf16.xpose.msra.mxu0 0
    %292 = vmatprep.subr.bf16.mxu0 0
    %293 = vmatpush2.bf16.xpose.msra.mxu0 0
    %294 = vmatprep.subr.bf16.mxu0 0
    %295 = vmatpush2.bf16.xpose.msra.mxu0 0
    %296 = vmatprep.subr.bf16.mxu0 0
    %297 = vmatpush2.bf16.xpose.msra.mxu0 0
    %298 = vmatprep.subr.bf16.mxu0 0
    %299 = vmatpush2.bf16.xpose.msra.mxu0 0
    %300 = vmatprep.subr.bf16.mxu0 0
    %301 = vmatpush2.bf16.xpose.msra.mxu0 0
    %302 = vmatprep.subr.bf16.mxu0 0
    %303 = vmatpush2.bf16.xpose.msra.mxu0 0
    %304 = vmatprep.mubr.bf16.mxu0 0
    %305 = vmatmul.mubr.bf16.gmra.mxu0 %v267
    %v306 = vpop.f32.mrf.mxu0
    %v307 = vadd.f32 %v88, %v306
    %v308 = vpop.f32.mrf.mxu0
    %v309 = vpop.f32.mrf.mxu0
    %v310 = vpop.f32.mrf.mxu0
    %311 = vdwg.mxu0
    %313 = vrot.lane.b32.xlu0 %v207, 96
    %v314 = vpop.permute.xlu0 %313
    %v316 = vsel %vm216, %v207, 0
    %v319 = vsel %vm216, %v314, 0
    %321 = vmatprep.subr.bf16.mxu0 0
    %322 = vmatpush1.bf16.xpose.msra.mxu0 0
    %323 = vmatprep.subr.bf16.mxu0 0
    %324 = vmatpush1.bf16.xpose.msra.mxu0 0
    %325 = vmatprep.subr.bf16.mxu0 0
    %326 = vmatpush1.bf16.xpose.msra.mxu0 0
    %327 = vmatprep.subr.bf16.mxu0 0
    %328 = vmatpush1.bf16.xpose.msra.mxu0 0
    %329 = vmatprep.subr.bf16.mxu0 0
    %330 = vmatpush1.bf16.xpose.msra.mxu0 0
    %331 = vmatprep.subr.bf16.mxu0 0
    %332 = vmatpush1.bf16.xpose.msra.mxu0 0
    %333 = vmatprep.subr.bf16.mxu0 0
    %334 = vmatpush1.bf16.xpose.msra.mxu0 0
    %335 = vmatprep.subr.bf16.mxu0 0
    %336 = vmatpush1.bf16.xpose.msra.mxu0 %v319
    %337 = vmatprep.subr.bf16.mxu0 0
    %338 = vmatpush2.bf16.xpose.msra.mxu0 0
    %339 = vmatprep.subr.bf16.mxu0 0
    %340 = vmatpush2.bf16.xpose.msra.mxu0 0
    %341 = vmatprep.subr.bf16.mxu0 0
    %342 = vmatpush2.bf16.xpose.msra.mxu0 0
    %343 = vmatprep.subr.bf16.mxu0 0
    %344 = vmatpush2.bf16.xpose.msra.mxu0 0
    %345 = vmatprep.subr.bf16.mxu0 0
    %346 = vmatpush2.bf16.xpose.msra.mxu0 0
    %347 = vmatprep.subr.bf16.mxu0 0
    %348 = vmatpush2.bf16.xpose.msra.mxu0 0
    %349 = vmatprep.subr.bf16.mxu0 0
    %350 = vmatpush2.bf16.xpose.msra.mxu0 0
    %351 = vmatprep.subr.bf16.mxu0 0
    %352 = vmatpush2.bf16.xpose.msra.mxu0 0
    %353 = vmatprep.mubr.bf16.mxu0 0
    %354 = vmatmul.mubr.bf16.gmra.mxu0 %v316
    %v355 = vpop.f32.mrf.mxu0
    %v356 = vadd.f32 %v84, %v355
    %v357 = vpop.f32.mrf.mxu0
    %v358 = vpop.f32.mrf.mxu0
    %v359 = vpop.f32.mrf.mxu0
    %360 = vdwg.mxu0
    %362 = vrot.lane.b32.xlu0 %v208, 96
    %v363 = vpop.permute.xlu0 %362
    %v365 = vsel %vm216, %v208, 0
    %v368 = vsel %vm216, %v363, 0
    %370 = vmatprep.subr.bf16.mxu0 0
    %371 = vmatpush1.bf16.xpose.msra.mxu0 0
    %372 = vmatprep.subr.bf16.mxu0 0
    %373 = vmatpush1.bf16.xpose.msra.mxu0 0
    %374 = vmatprep.subr.bf16.mxu0 0
    %375 = vmatpush1.bf16.xpose.msra.mxu0 0
    %376 = vmatprep.subr.bf16.mxu0 0
    %377 = vmatpush1.bf16.xpose.msra.mxu0 0
    %378 = vmatprep.subr.bf16.mxu0 0
    %379 = vmatpush1.bf16.xpose.msra.mxu0 0
    %380 = vmatprep.subr.bf16.mxu0 0
    %381 = vmatpush1.bf16.xpose.msra.mxu0 0
    %382 = vmatprep.subr.bf16.mxu0 0
    %383 = vmatpush1.bf16.xpose.msra.mxu0 0
    %384 = vmatprep.subr.bf16.mxu0 0
    %385 = vmatpush1.bf16.xpose.msra.mxu0 %v368
    %386 = vmatprep.subr.bf16.mxu0 0
    %387 = vmatpush2.bf16.xpose.msra.mxu0 0
    %388 = vmatprep.subr.bf16.mxu0 0
    %389 = vmatpush2.bf16.xpose.msra.mxu0 0
    %390 = vmatprep.subr.bf16.mxu0 0
    %391 = vmatpush2.bf16.xpose.msra.mxu0 0
    %392 = vmatprep.subr.bf16.mxu0 0
    %393 = vmatpush2.bf16.xpose.msra.mxu0 0
    %394 = vmatprep.subr.bf16.mxu0 0
    %395 = vmatpush2.bf16.xpose.msra.mxu0 0
    %396 = vmatprep.subr.bf16.mxu0 0
    %397 = vmatpush2.bf16.xpose.msra.mxu0 0
    %398 = vmatprep.subr.bf16.mxu0 0
    %399 = vmatpush2.bf16.xpose.msra.mxu0 0
    %400 = vmatprep.subr.bf16.mxu0 0
    %401 = vmatpush2.bf16.xpose.msra.mxu0 0
    %402 = vmatprep.mubr.bf16.mxu0 0
    %403 = vmatmul.mubr.bf16.gmra.mxu0 %v365
    %v404 = vpop.f32.mrf.mxu0
    %v405 = vadd.f32 %v88, %v404
    %v406 = vpop.f32.mrf.mxu0
    %v407 = vpop.f32.mrf.mxu0
    %v408 = vpop.f32.mrf.mxu0
    %409 = vdwg.mxu0
    %411 = vrot.lane.b32.xlu0 %v209, 96
    %v412 = vpop.permute.xlu0 %411
    %v414 = vsel %vm216, %v209, 0
    %v417 = vsel %vm216, %v412, 0
    %419 = vmatprep.subr.bf16.mxu0 0
    %420 = vmatpush1.bf16.xpose.msra.mxu0 0
    %421 = vmatprep.subr.bf16.mxu0 0
    %422 = vmatpush1.bf16.xpose.msra.mxu0 0
    %423 = vmatprep.subr.bf16.mxu0 0
    %424 = vmatpush1.bf16.xpose.msra.mxu0 0
    %425 = vmatprep.subr.bf16.mxu0 0
    %426 = vmatpush1.bf16.xpose.msra.mxu0 0
    %427 = vmatprep.subr.bf16.mxu0 0
    %428 = vmatpush1.bf16.xpose.msra.mxu0 0
    %429 = vmatprep.subr.bf16.mxu0 0
    %430 = vmatpush1.bf16.xpose.msra.mxu0 0
    %431 = vmatprep.subr.bf16.mxu0 0
    %432 = vmatpush1.bf16.xpose.msra.mxu0 0
    %433 = vmatprep.subr.bf16.mxu0 0
    %434 = vmatpush1.bf16.xpose.msra.mxu0 %v417
    %435 = vmatprep.subr.bf16.mxu0 0
    %436 = vmatpush2.bf16.xpose.msra.mxu0 0
    %437 = vmatprep.subr.bf16.mxu0 0
    %438 = vmatpush2.bf16.xpose.msra.mxu0 0
    %439 = vmatprep.subr.bf16.mxu0 0
    %440 = vmatpush2.bf16.xpose.msra.mxu0 0
    %441 = vmatprep.subr.bf16.mxu0 0
    %442 = vmatpush2.bf16.xpose.msra.mxu0 0
    %443 = vmatprep.subr.bf16.mxu0 0
    %444 = vmatpush2.bf16.xpose.msra.mxu0 0
    %445 = vmatprep.subr.bf16.mxu0 0
    %446 = vmatpush2.bf16.xpose.msra.mxu0 0
    %447 = vmatprep.subr.bf16.mxu0 0
    %448 = vmatpush2.bf16.xpose.msra.mxu0 0
    %449 = vmatprep.subr.bf16.mxu0 0
    %450 = vmatpush2.bf16.xpose.msra.mxu0 0
    %451 = vmatprep.mubr.bf16.mxu0 0
    %452 = vmatmul.mubr.bf16.gmra.mxu0 %v414
    %v453 = vpop.f32.mrf.mxu0
    %v454 = vadd.f32 %v84, %v453
    %v455 = vpop.f32.mrf.mxu0
    %v456 = vpop.f32.mrf.mxu0
    %v457 = vpop.f32.mrf.mxu0
    %458 = vdwg.mxu0
    %460 = vrot.lane.b32.xlu0 %v210, 96
    %v461 = vpop.permute.xlu0 %460
    %v463 = vsel %vm216, %v210, 0
    %v466 = vsel %vm216, %v461, 0
    %468 = vmatprep.subr.bf16.mxu0 0
    %469 = vmatpush1.bf16.xpose.msra.mxu0 0
    %470 = vmatprep.subr.bf16.mxu0 0
    %471 = vmatpush1.bf16.xpose.msra.mxu0 0
    %472 = vmatprep.subr.bf16.mxu0 0
    %473 = vmatpush1.bf16.xpose.msra.mxu0 0
    %474 = vmatprep.subr.bf16.mxu0 0
    %475 = vmatpush1.bf16.xpose.msra.mxu0 0
    %476 = vmatprep.subr.bf16.mxu0 0
    %477 = vmatpush1.bf16.xpose.msra.mxu0 0
    %478 = vmatprep.subr.bf16.mxu0 0
    %479 = vmatpush1.bf16.xpose.msra.mxu0 0
    %480 = vmatprep.subr.bf16.mxu0 0
    %481 = vmatpush1.bf16.xpose.msra.mxu0 0
    %482 = vmatprep.subr.bf16.mxu0 0
    %483 = vmatpush1.bf16.xpose.msra.mxu0 %v466
    %484 = vmatprep.subr.bf16.mxu0 0
    %485 = vmatpush2.bf16.xpose.msra.mxu0 0
    %486 = vmatprep.subr.bf16.mxu0 0
    %487 = vmatpush2.bf16.xpose.msra.mxu0 0
    %488 = vmatprep.subr.bf16.mxu0 0
    %489 = vmatpush2.bf16.xpose.msra.mxu0 0
    %490 = vmatprep.subr.bf16.mxu0 0
    %491 = vmatpush2.bf16.xpose.msra.mxu0 0
    %492 = vmatprep.subr.bf16.mxu0 0
    %493 = vmatpush2.bf16.xpose.msra.mxu0 0
    %494 = vmatprep.subr.bf16.mxu0 0
    %495 = vmatpush2.bf16.xpose.msra.mxu0 0
    %496 = vmatprep.subr.bf16.mxu0 0
    %497 = vmatpush2.bf16.xpose.msra.mxu0 0
    %498 = vmatprep.subr.bf16.mxu0 0
    %499 = vmatpush2.bf16.xpose.msra.mxu0 0
    %500 = vmatprep.mubr.bf16.mxu0 0
    %501 = vmatmul.mubr.bf16.gmra.mxu0 %v463
    %v502 = vpop.f32.mrf.mxu0
    %v503 = vadd.f32 %v88, %v502
    %v504 = vpop.f32.mrf.mxu0
    %v505 = vpop.f32.mrf.mxu0
    %v506 = vpop.f32.mrf.mxu0
    %507 = vdwg.mxu0
    %509 = vrot.lane.b32.xlu0 %v211, 96
    %v510 = vpop.permute.xlu0 %509
    %v512 = vsel %vm216, %v211, 0
    %v515 = vsel %vm216, %v510, 0
    %517 = vmatprep.subr.bf16.mxu0 0
    %518 = vmatpush1.bf16.xpose.msra.mxu0 0
    %519 = vmatprep.subr.bf16.mxu0 0
    %520 = vmatpush1.bf16.xpose.msra.mxu0 0
    %521 = vmatprep.subr.bf16.mxu0 0
    %522 = vmatpush1.bf16.xpose.msra.mxu0 0
    %523 = vmatprep.subr.bf16.mxu0 0
    %524 = vmatpush1.bf16.xpose.msra.mxu0 0
    %525 = vmatprep.subr.bf16.mxu0 0
    %526 = vmatpush1.bf16.xpose.msra.mxu0 0
    %527 = vmatprep.subr.bf16.mxu0 0
    %528 = vmatpush1.bf16.xpose.msra.mxu0 0
    %529 = vmatprep.subr.bf16.mxu0 0
    %530 = vmatpush1.bf16.xpose.msra.mxu0 0
    %531 = vmatprep.subr.bf16.mxu0 0
    %532 = vmatpush1.bf16.xpose.msra.mxu0 %v515
    %533 = vmatprep.subr.bf16.mxu0 0
    %534 = vmatpush2.bf16.xpose.msra.mxu0 0
    %535 = vmatprep.subr.bf16.mxu0 0
    %536 = vmatpush2.bf16.xpose.msra.mxu0 0
    %537 = vmatprep.subr.bf16.mxu0 0
    %538 = vmatpush2.bf16.xpose.msra.mxu0 0
    %539 = vmatprep.subr.bf16.mxu0 0
    %540 = vmatpush2.bf16.xpose.msra.mxu0 0
    %541 = vmatprep.subr.bf16.mxu0 0
    %542 = vmatpush2.bf16.xpose.msra.mxu0 0
    %543 = vmatprep.subr.bf16.mxu0 0
    %544 = vmatpush2.bf16.xpose.msra.mxu0 0
    %545 = vmatprep.subr.bf16.mxu0 0
    %546 = vmatpush2.bf16.xpose.msra.mxu0 0
    %547 = vmatprep.subr.bf16.mxu0 0
    %548 = vmatpush2.bf16.xpose.msra.mxu0 0
    %549 = vmatprep.mubr.bf16.mxu0 0
    %550 = vmatmul.mubr.bf16.gmra.mxu0 %v512
    %v551 = vpop.f32.mrf.mxu0
    %v552 = vadd.f32 %v84, %v551
    %v553 = vpop.f32.mrf.mxu0
    %v554 = vpop.f32.mrf.mxu0
    %v555 = vpop.f32.mrf.mxu0
    %556 = vdwg.mxu0
    %558 = vrot.lane.b32.xlu0 %v212, 96
    %v559 = vpop.permute.xlu0 %558
    %v561 = vsel %vm216, %v212, 0
    %v564 = vsel %vm216, %v559, 0
    %566 = vmatprep.subr.bf16.mxu0 0
    %567 = vmatpush1.bf16.xpose.msra.mxu0 0
    %568 = vmatprep.subr.bf16.mxu0 0
    %569 = vmatpush1.bf16.xpose.msra.mxu0 0
    %570 = vmatprep.subr.bf16.mxu0 0
    %571 = vmatpush1.bf16.xpose.msra.mxu0 0
    %572 = vmatprep.subr.bf16.mxu0 0
    %573 = vmatpush1.bf16.xpose.msra.mxu0 0
    %574 = vmatprep.subr.bf16.mxu0 0
    %575 = vmatpush1.bf16.xpose.msra.mxu0 0
    %576 = vmatprep.subr.bf16.mxu0 0
    %577 = vmatpush1.bf16.xpose.msra.mxu0 0
    %578 = vmatprep.subr.bf16.mxu0 0
    %579 = vmatpush1.bf16.xpose.msra.mxu0 0
    %580 = vmatprep.subr.bf16.mxu0 0
    %581 = vmatpush1.bf16.xpose.msra.mxu0 %v564
    %582 = vmatprep.subr.bf16.mxu0 0
    %583 = vmatpush2.bf16.xpose.msra.mxu0 0
    %584 = vmatprep.subr.bf16.mxu0 0
    %585 = vmatpush2.bf16.xpose.msra.mxu0 0
    %586 = vmatprep.subr.bf16.mxu0 0
    %587 = vmatpush2.bf16.xpose.msra.mxu0 0
    %588 = vmatprep.subr.bf16.mxu0 0
    %589 = vmatpush2.bf16.xpose.msra.mxu0 0
    %590 = vmatprep.subr.bf16.mxu0 0
    %591 = vmatpush2.bf16.xpose.msra.mxu0 0
    %592 = vmatprep.subr.bf16.mxu0 0
    %593 = vmatpush2.bf16.xpose.msra.mxu0 0
    %594 = vmatprep.subr.bf16.mxu0 0
    %595 = vmatpush2.bf16.xpose.msra.mxu0 0
    %596 = vmatprep.subr.bf16.mxu0 0
    %597 = vmatpush2.bf16.xpose.msra.mxu0 0
    %598 = vmatprep.mubr.bf16.mxu0 0
    %599 = vmatmul.mubr.bf16.gmra.mxu0 %v561
    %v600 = vpop.f32.mrf.mxu0
    %v601 = vadd.f32 %v88, %v600
    %v602 = vpop.f32.mrf.mxu0
    %v603 = vpop.f32.mrf.mxu0
    %v604 = vpop.f32.mrf.mxu0
    %605 = vdwg.mxu0
    %v606 = vsel %vm216, %v258, -inf
    %607 = vmax.xlane.f32.xlu0 %v606
    %v608 = vpop.xlane.xlu0 %607
    %v609 = vsel %vm216, %v307, -inf
    %610 = vmax.xlane.f32.xlu0 %v609
    %v611 = vpop.xlane.xlu0 %610
    %v612 = vsel %vm216, %v356, -inf
    %613 = vmax.xlane.f32.xlu0 %v612
    %v614 = vpop.xlane.xlu0 %613
    %v615 = vsel %vm216, %v405, -inf
    %616 = vmax.xlane.f32.xlu0 %v615
    %v617 = vpop.xlane.xlu0 %616
    %v618 = vsel %vm216, %v454, -inf
    %619 = vmax.xlane.f32.xlu0 %v618
    %v620 = vpop.xlane.xlu0 %619
    %v621 = vsel %vm216, %v503, -inf
    %622 = vmax.xlane.f32.xlu0 %v621
    %v623 = vpop.xlane.xlu0 %622
    %v624 = vsel %vm216, %v552, -inf
    %625 = vmax.xlane.f32.xlu0 %v624
    %v626 = vpop.xlane.xlu0 %625
    %v627 = vsel %vm216, %v601, -inf
    %628 = vmax.xlane.f32.xlu0 %v627
    %v629 = vpop.xlane.xlu0 %628
    %v630 = vsub.f32 %v258, %v608
    %v631 = vsub.f32 %v307, %v611
    %v632 = vsub.f32 %v356, %v614
    %v633 = vsub.f32 %v405, %v617
    %v634 = vsub.f32 %v454, %v620
    %v635 = vsub.f32 %v503, %v623
    %v636 = vsub.f32 %v552, %v626
    %v637 = vsub.f32 %v601, %v629
    %v638 = vmul.f32 %v630, 1.442695
    %v639 = vpow.pop %v638
    %v640 = vmul.f32 %v631, 1.442695
    %v641 = vpow.pop %v640
    %v642 = vmul.f32 %v632, 1.442695
    %v643 = vpow.pop %v642
    %v644 = vmul.f32 %v633, 1.442695
    %v645 = vpow.pop %v644
    %v646 = vmul.f32 %v634, 1.442695
    %v647 = vpow.pop %v646
    %v648 = vmul.f32 %v635, 1.442695
    %v649 = vpow.pop %v648
    %v650 = vmul.f32 %v636, 1.442695
    %v651 = vpow.pop %v650
    %v652 = vmul.f32 %v637, 1.442695
    %v653 = vpow.pop %v652
    %v654 = vsel %vm216, %v639, 0.0
    %655 = vadd.xlane.f32.xlu0 %v654
    %v656 = vpop.xlane.xlu0 %655
    %v657 = vsel %vm216, %v641, 0.0
    %658 = vadd.xlane.f32.xlu0 %v657
    %v659 = vpop.xlane.xlu0 %658
    %v660 = vsel %vm216, %v643, 0.0
    %661 = vadd.xlane.f32.xlu0 %v660
    %v662 = vpop.xlane.xlu0 %661
    %v663 = vsel %vm216, %v645, 0.0
    %664 = vadd.xlane.f32.xlu0 %v663
    %v665 = vpop.xlane.xlu0 %664
    %v666 = vsel %vm216, %v647, 0.0
    %667 = vadd.xlane.f32.xlu0 %v666
    %v668 = vpop.xlane.xlu0 %667
    %v669 = vsel %vm216, %v649, 0.0
    %670 = vadd.xlane.f32.xlu0 %v669
    %v671 = vpop.xlane.xlu0 %670
    %v672 = vsel %vm216, %v651, 0.0
    %673 = vadd.xlane.f32.xlu0 %v672
    %v674 = vpop.xlane.xlu0 %673
    %v675 = vsel %vm216, %v653, 0.0
    %676 = vadd.xlane.f32.xlu0 %v675
    %v677 = vpop.xlane.xlu0 %676
    %v678 = vrcp.pop %v656
    %v679 = vrcp.pop %v659
    %v680 = vrcp.pop %v662
    %v681 = vrcp.pop %v665
    %v682 = vrcp.pop %v668
    %v683 = vrcp.pop %v671
    %v684 = vrcp.pop %v674
    %v685 = vrcp.pop %v677
    %v686 = vmul.f32 %v639, %v678
    %v687 = vmul.f32 %v641, %v679
    %v688 = vmul.f32 %v643, %v680
    %v689 = vmul.f32 %v645, %v681
    %v690 = vmul.f32 %v647, %v682
    %v691 = vmul.f32 %v649, %v683
    %v692 = vmul.f32 %v651, %v684
    %v693 = vmul.f32 %v653, %v685
    %v694 = vpack.c.bf16 %v686, %v686
    %v695 = vpack.c.bf16 %v687, %v687
    %v696 = vpack.c.bf16 %v688, %v688
    %v697 = vpack.c.bf16 %v689, %v689
    %v698 = vpack.c.bf16 %v690, %v690
    %v699 = vpack.c.bf16 %v691, %v691
    %v700 = vpack.c.bf16 %v692, %v692
    %v701 = vpack.c.bf16 %v693, %v693
    %702 = vrot.lane.b32.xlu0 %v205, 64
    %v703 = vpop.permute.xlu0 %702
    %v705 = vsel %vm216, %v694, 0
    %vm707 = vcmask 1043456
    %v709 = vsel %vm707, %v703, 0
    %711 = vmatprep.subr.bf16.mxu0 0
    %712 = vmatpush1.bf16.msra.mxu0 0
    %713 = vmatprep.subr.bf16.mxu0 0
    %714 = vmatpush1.bf16.msra.mxu0 0
    %715 = vmatprep.subr.bf16.mxu0 0
    %716 = vmatpush1.bf16.msra.mxu0 0
    %717 = vmatprep.subr.bf16.mxu0 0
    %718 = vmatpush1.bf16.msra.mxu0 0
    %719 = vmatprep.subr.bf16.mxu0 0
    %720 = vmatpush1.bf16.msra.mxu0 0
    %721 = vmatprep.subr.bf16.mxu0 0
    %722 = vmatpush1.bf16.msra.mxu0 0
    %723 = vmatprep.subr.bf16.mxu0 0
    %724 = vmatpush1.bf16.msra.mxu0 0
    %725 = vmatprep.subr.bf16.mxu0 0
    %726 = vmatpush1.bf16.msra.mxu0 %v709
    %727 = vmatprep.subr.bf16.mxu0 0
    %728 = vmatpush2.bf16.msra.mxu0 0
    %729 = vmatprep.subr.bf16.mxu0 0
    %730 = vmatpush2.bf16.msra.mxu0 0
    %731 = vmatprep.subr.bf16.mxu0 0
    %732 = vmatpush2.bf16.msra.mxu0 0
    %733 = vmatprep.subr.bf16.mxu0 0
    %734 = vmatpush2.bf16.msra.mxu0 0
    %735 = vmatprep.subr.bf16.mxu0 0
    %736 = vmatpush2.bf16.msra.mxu0 0
    %737 = vmatprep.subr.bf16.mxu0 0
    %738 = vmatpush2.bf16.msra.mxu0 0
    %739 = vmatprep.subr.bf16.mxu0 0
    %740 = vmatpush2.bf16.msra.mxu0 0
    %741 = vmatprep.subr.bf16.mxu0 0
    %742 = vmatpush2.bf16.msra.mxu0 0
    %743 = vmatprep.mubr.bf16.mxu0 0
    %744 = vmatmul.mubr.bf16.gmra.mxu0 %v705
    %v745 = vpop.f32.mrf.mxu0
    %v746 = vadd.f32 0.0, %v745
    %v747 = vpop.f32.mrf.mxu0
    %v748 = vpop.f32.mrf.mxu0
    %v749 = vpop.f32.mrf.mxu0
    %750 = vdwg.mxu0
    %751 = vrot.lane.b32.xlu0 %v206, 64
    %v752 = vpop.permute.xlu0 %751
    %v754 = vsel %vm216, %v695, 0
    %v757 = vsel %vm707, %v752, 0
    %759 = vmatprep.subr.bf16.mxu0 0
    %760 = vmatpush1.bf16.msra.mxu0 0
    %761 = vmatprep.subr.bf16.mxu0 0
    %762 = vmatpush1.bf16.msra.mxu0 0
    %763 = vmatprep.subr.bf16.mxu0 0
    %764 = vmatpush1.bf16.msra.mxu0 0
    %765 = vmatprep.subr.bf16.mxu0 0
    %766 = vmatpush1.bf16.msra.mxu0 0
    %767 = vmatprep.subr.bf16.mxu0 0
    %768 = vmatpush1.bf16.msra.mxu0 0
    %769 = vmatprep.subr.bf16.mxu0 0
    %770 = vmatpush1.bf16.msra.mxu0 0
    %771 = vmatprep.subr.bf16.mxu0 0
    %772 = vmatpush1.bf16.msra.mxu0 0
    %773 = vmatprep.subr.bf16.mxu0 0
    %774 = vmatpush1.bf16.msra.mxu0 %v757
    %775 = vmatprep.subr.bf16.mxu0 0
    %776 = vmatpush2.bf16.msra.mxu0 0
    %777 = vmatprep.subr.bf16.mxu0 0
    %778 = vmatpush2.bf16.msra.mxu0 0
    %779 = vmatprep.subr.bf16.mxu0 0
    %780 = vmatpush2.bf16.msra.mxu0 0
    %781 = vmatprep.subr.bf16.mxu0 0
    %782 = vmatpush2.bf16.msra.mxu0 0
    %783 = vmatprep.subr.bf16.mxu0 0
    %784 = vmatpush2.bf16.msra.mxu0 0
    %785 = vmatprep.subr.bf16.mxu0 0
    %786 = vmatpush2.bf16.msra.mxu0 0
    %787 = vmatprep.subr.bf16.mxu0 0
    %788 = vmatpush2.bf16.msra.mxu0 0
    %789 = vmatprep.subr.bf16.mxu0 0
    %790 = vmatpush2.bf16.msra.mxu0 0
    %791 = vmatprep.mubr.bf16.mxu0 0
    %792 = vmatmul.mubr.bf16.gmra.mxu0 %v754
    %v793 = vpop.f32.mrf.mxu0
    %v794 = vadd.f32 0.0, %v793
    %v795 = vpop.f32.mrf.mxu0
    %v796 = vpop.f32.mrf.mxu0
    %v797 = vpop.f32.mrf.mxu0
    %798 = vdwg.mxu0
    %799 = vrot.lane.b32.xlu0 %v207, 64
    %v800 = vpop.permute.xlu0 %799
    %v802 = vsel %vm216, %v696, 0
    %v805 = vsel %vm707, %v800, 0
    %807 = vmatprep.subr.bf16.mxu0 0
    %808 = vmatpush1.bf16.msra.mxu0 0
    %809 = vmatprep.subr.bf16.mxu0 0
    %810 = vmatpush1.bf16.msra.mxu0 0
    %811 = vmatprep.subr.bf16.mxu0 0
    %812 = vmatpush1.bf16.msra.mxu0 0
    %813 = vmatprep.subr.bf16.mxu0 0
    %814 = vmatpush1.bf16.msra.mxu0 0
    %815 = vmatprep.subr.bf16.mxu0 0
    %816 = vmatpush1.bf16.msra.mxu0 0
    %817 = vmatprep.subr.bf16.mxu0 0
    %818 = vmatpush1.bf16.msra.mxu0 0
    %819 = vmatprep.subr.bf16.mxu0 0
    %820 = vmatpush1.bf16.msra.mxu0 0
    %821 = vmatprep.subr.bf16.mxu0 0
    %822 = vmatpush1.bf16.msra.mxu0 %v805
    %823 = vmatprep.subr.bf16.mxu0 0
    %824 = vmatpush2.bf16.msra.mxu0 0
    %825 = vmatprep.subr.bf16.mxu0 0
    %826 = vmatpush2.bf16.msra.mxu0 0
    %827 = vmatprep.subr.bf16.mxu0 0
    %828 = vmatpush2.bf16.msra.mxu0 0
    %829 = vmatprep.subr.bf16.mxu0 0
    %830 = vmatpush2.bf16.msra.mxu0 0
    %831 = vmatprep.subr.bf16.mxu0 0
    %832 = vmatpush2.bf16.msra.mxu0 0
    %833 = vmatprep.subr.bf16.mxu0 0
    %834 = vmatpush2.bf16.msra.mxu0 0
    %835 = vmatprep.subr.bf16.mxu0 0
    %836 = vmatpush2.bf16.msra.mxu0 0
    %837 = vmatprep.subr.bf16.mxu0 0
    %838 = vmatpush2.bf16.msra.mxu0 0
    %839 = vmatprep.mubr.bf16.mxu0 0
    %840 = vmatmul.mubr.bf16.gmra.mxu0 %v802
    %v841 = vpop.f32.mrf.mxu0
    %v842 = vadd.f32 0.0, %v841
    %v843 = vpop.f32.mrf.mxu0
    %v844 = vpop.f32.mrf.mxu0
    %v845 = vpop.f32.mrf.mxu0
    %846 = vdwg.mxu0
    %847 = vrot.lane.b32.xlu0 %v208, 64
    %v848 = vpop.permute.xlu0 %847
    %v850 = vsel %vm216, %v697, 0
    %v853 = vsel %vm707, %v848, 0
    %855 = vmatprep.subr.bf16.mxu0 0
    %856 = vmatpush1.bf16.msra.mxu0 0
    %857 = vmatprep.subr.bf16.mxu0 0
    %858 = vmatpush1.bf16.msra.mxu0 0
    %859 = vmatprep.subr.bf16.mxu0 0
    %860 = vmatpush1.bf16.msra.mxu0 0
    %861 = vmatprep.subr.bf16.mxu0 0
    %862 = vmatpush1.bf16.msra.mxu0 0
    %863 = vmatprep.subr.bf16.mxu0 0
    %864 = vmatpush1.bf16.msra.mxu0 0
    %865 = vmatprep.subr.bf16.mxu0 0
    %866 = vmatpush1.bf16.msra.mxu0 0
    %867 = vmatprep.subr.bf16.mxu0 0
    %868 = vmatpush1.bf16.msra.mxu0 0
    %869 = vmatprep.subr.bf16.mxu0 0
    %870 = vmatpush1.bf16.msra.mxu0 %v853
    %871 = vmatprep.subr.bf16.mxu0 0
    %872 = vmatpush2.bf16.msra.mxu0 0
    %873 = vmatprep.subr.bf16.mxu0 0
    %874 = vmatpush2.bf16.msra.mxu0 0
    %875 = vmatprep.subr.bf16.mxu0 0
    %876 = vmatpush2.bf16.msra.mxu0 0
    %877 = vmatprep.subr.bf16.mxu0 0
    %878 = vmatpush2.bf16.msra.mxu0 0
    %879 = vmatprep.subr.bf16.mxu0 0
    %880 = vmatpush2.bf16.msra.mxu0 0
    %881 = vmatprep.subr.bf16.mxu0 0
    %882 = vmatpush2.bf16.msra.mxu0 0
    %883 = vmatprep.subr.bf16.mxu0 0
    %884 = vmatpush2.bf16.msra.mxu0 0
    %885 = vmatprep.subr.bf16.mxu0 0
    %886 = vmatpush2.bf16.msra.mxu0 0
    %887 = vmatprep.mubr.bf16.mxu0 0
    %888 = vmatmul.mubr.bf16.gmra.mxu0 %v850
    %v889 = vpop.f32.mrf.mxu0
    %v890 = vadd.f32 0.0, %v889
    %v891 = vpop.f32.mrf.mxu0
    %v892 = vpop.f32.mrf.mxu0
    %v893 = vpop.f32.mrf.mxu0
    %894 = vdwg.mxu0
    %895 = vrot.lane.b32.xlu0 %v209, 64
    %v896 = vpop.permute.xlu0 %895
    %v898 = vsel %vm216, %v698, 0
    %v901 = vsel %vm707, %v896, 0
    %903 = vmatprep.subr.bf16.mxu0 0
    %904 = vmatpush1.bf16.msra.mxu0 0
    %905 = vmatprep.subr.bf16.mxu0 0
    %906 = vmatpush1.bf16.msra.mxu0 0
    %907 = vmatprep.subr.bf16.mxu0 0
    %908 = vmatpush1.bf16.msra.mxu0 0
    %909 = vmatprep.subr.bf16.mxu0 0
    %910 = vmatpush1.bf16.msra.mxu0 0
    %911 = vmatprep.subr.bf16.mxu0 0
    %912 = vmatpush1.bf16.msra.mxu0 0
    %913 = vmatprep.subr.bf16.mxu0 0
    %914 = vmatpush1.bf16.msra.mxu0 0
    %915 = vmatprep.subr.bf16.mxu0 0
    %916 = vmatpush1.bf16.msra.mxu0 0
    %917 = vmatprep.subr.bf16.mxu0 0
    %918 = vmatpush1.bf16.msra.mxu0 %v901
    %919 = vmatprep.subr.bf16.mxu0 0
    %920 = vmatpush2.bf16.msra.mxu0 0
    %921 = vmatprep.subr.bf16.mxu0 0
    %922 = vmatpush2.bf16.msra.mxu0 0
    %923 = vmatprep.subr.bf16.mxu0 0
    %924 = vmatpush2.bf16.msra.mxu0 0
    %925 = vmatprep.subr.bf16.mxu0 0
    %926 = vmatpush2.bf16.msra.mxu0 0
    %927 = vmatprep.subr.bf16.mxu0 0
    %928 = vmatpush2.bf16.msra.mxu0 0
    %929 = vmatprep.subr.bf16.mxu0 0
    %930 = vmatpush2.bf16.msra.mxu0 0
    %931 = vmatprep.subr.bf16.mxu0 0
    %932 = vmatpush2.bf16.msra.mxu0 0
    %933 = vmatprep.subr.bf16.mxu0 0
    %934 = vmatpush2.bf16.msra.mxu0 0
    %935 = vmatprep.mubr.bf16.mxu0 0
    %936 = vmatmul.mubr.bf16.gmra.mxu0 %v898
    %v937 = vpop.f32.mrf.mxu0
    %v938 = vadd.f32 0.0, %v937
    %v939 = vpop.f32.mrf.mxu0
    %v940 = vpop.f32.mrf.mxu0
    %v941 = vpop.f32.mrf.mxu0
    %942 = vdwg.mxu0
    %943 = vrot.lane.b32.xlu0 %v210, 64
    %v944 = vpop.permute.xlu0 %943
    %v946 = vsel %vm216, %v699, 0
    %v949 = vsel %vm707, %v944, 0
    %951 = vmatprep.subr.bf16.mxu0 0
    %952 = vmatpush1.bf16.msra.mxu0 0
    %953 = vmatprep.subr.bf16.mxu0 0
    %954 = vmatpush1.bf16.msra.mxu0 0
    %955 = vmatprep.subr.bf16.mxu0 0
    %956 = vmatpush1.bf16.msra.mxu0 0
    %957 = vmatprep.subr.bf16.mxu0 0
    %958 = vmatpush1.bf16.msra.mxu0 0
    %959 = vmatprep.subr.bf16.mxu0 0
    %960 = vmatpush1.bf16.msra.mxu0 0
    %961 = vmatprep.subr.bf16.mxu0 0
    %962 = vmatpush1.bf16.msra.mxu0 0
    %963 = vmatprep.subr.bf16.mxu0 0
    %964 = vmatpush1.bf16.msra.mxu0 0
    %965 = vmatprep.subr.bf16.mxu0 0
    %966 = vmatpush1.bf16.msra.mxu0 %v949
    %967 = vmatprep.subr.bf16.mxu0 0
    %968 = vmatpush2.bf16.msra.mxu0 0
    %969 = vmatprep.subr.bf16.mxu0 0
    %970 = vmatpush2.bf16.msra.mxu0 0
    %971 = vmatprep.subr.bf16.mxu0 0
    %972 = vmatpush2.bf16.msra.mxu0 0
    %973 = vmatprep.subr.bf16.mxu0 0
    %974 = vmatpush2.bf16.msra.mxu0 0
    %975 = vmatprep.subr.bf16.mxu0 0
    %976 = vmatpush2.bf16.msra.mxu0 0
    %977 = vmatprep.subr.bf16.mxu0 0
    %978 = vmatpush2.bf16.msra.mxu0 0
    %979 = vmatprep.subr.bf16.mxu0 0
    %980 = vmatpush2.bf16.msra.mxu0 0
    %981 = vmatprep.subr.bf16.mxu0 0
    %982 = vmatpush2.bf16.msra.mxu0 0
    %983 = vmatprep.mubr.bf16.mxu0 0
    %984 = vmatmul.mubr.bf16.gmra.mxu0 %v946
    %v985 = vpop.f32.mrf.mxu0
    %v986 = vadd.f32 0.0, %v985
    %v987 = vpop.f32.mrf.mxu0
    %v988 = vpop.f32.mrf.mxu0
    %v989 = vpop.f32.mrf.mxu0
    %990 = vdwg.mxu0
    %991 = vrot.lane.b32.xlu0 %v211, 64
    %v992 = vpop.permute.xlu0 %991
    %v994 = vsel %vm216, %v700, 0
    %v997 = vsel %vm707, %v992, 0
    %999 = vmatprep.subr.bf16.mxu0 0
    %1000 = vmatpush1.bf16.msra.mxu0 0
    %1001 = vmatprep.subr.bf16.mxu0 0
    %1002 = vmatpush1.bf16.msra.mxu0 0
    %1003 = vmatprep.subr.bf16.mxu0 0
    %1004 = vmatpush1.bf16.msra.mxu0 0
    %1005 = vmatprep.subr.bf16.mxu0 0
    %1006 = vmatpush1.bf16.msra.mxu0 0
    %1007 = vmatprep.subr.bf16.mxu0 0
    %1008 = vmatpush1.bf16.msra.mxu0 0
    %1009 = vmatprep.subr.bf16.mxu0 0
    %1010 = vmatpush1.bf16.msra.mxu0 0
    %1011 = vmatprep.subr.bf16.mxu0 0
    %1012 = vmatpush1.bf16.msra.mxu0 0
    %1013 = vmatprep.subr.bf16.mxu0 0
    %1014 = vmatpush1.bf16.msra.mxu0 %v997
    %1015 = vmatprep.subr.bf16.mxu0 0
    %1016 = vmatpush2.bf16.msra.mxu0 0
    %1017 = vmatprep.subr.bf16.mxu0 0
    %1018 = vmatpush2.bf16.msra.mxu0 0
    %1019 = vmatprep.subr.bf16.mxu0 0
    %1020 = vmatpush2.bf16.msra.mxu0 0
    %1021 = vmatprep.subr.bf16.mxu0 0
    %1022 = vmatpush2.bf16.msra.mxu0 0
    %1023 = vmatprep.subr.bf16.mxu0 0
    %1024 = vmatpush2.bf16.msra.mxu0 0
    %1025 = vmatprep.subr.bf16.mxu0 0
    %1026 = vmatpush2.bf16.msra.mxu0 0
    %1027 = vmatprep.subr.bf16.mxu0 0
    %1028 = vmatpush2.bf16.msra.mxu0 0
    %1029 = vmatprep.subr.bf16.mxu0 0
    %1030 = vmatpush2.bf16.msra.mxu0 0
    %1031 = vmatprep.mubr.bf16.mxu0 0
    %1032 = vmatmul.mubr.bf16.gmra.mxu0 %v994
    %v1033 = vpop.f32.mrf.mxu0
    %v1034 = vadd.f32 0.0, %v1033
    %v1035 = vpop.f32.mrf.mxu0
    %v1036 = vpop.f32.mrf.mxu0
    %v1037 = vpop.f32.mrf.mxu0
    %1038 = vdwg.mxu0
    %1039 = vrot.lane.b32.xlu0 %v212, 64
    %v1040 = vpop.permute.xlu0 %1039
    %v1042 = vsel %vm216, %v701, 0
    %v1045 = vsel %vm707, %v1040, 0
    %1047 = vmatprep.subr.bf16.mxu0 0
    %1048 = vmatpush1.bf16.msra.mxu0 0
    %1049 = vmatprep.subr.bf16.mxu0 0
    %1050 = vmatpush1.bf16.msra.mxu0 0
    %1051 = vmatprep.subr.bf16.mxu0 0
    %1052 = vmatpush1.bf16.msra.mxu0 0
    %1053 = vmatprep.subr.bf16.mxu0 0
    %1054 = vmatpush1.bf16.msra.mxu0 0
    %1055 = vmatprep.subr.bf16.mxu0 0
    %1056 = vmatpush1.bf16.msra.mxu0 0
    %1057 = vmatprep.subr.bf16.mxu0 0
    %1058 = vmatpush1.bf16.msra.mxu0 0
    %1059 = vmatprep.subr.bf16.mxu0 0
    %1060 = vmatpush1.bf16.msra.mxu0 0
    %1061 = vmatprep.subr.bf16.mxu0 0
    %1062 = vmatpush1.bf16.msra.mxu0 %v1045
    %1063 = vmatprep.subr.bf16.mxu0 0
    %1064 = vmatpush2.bf16.msra.mxu0 0
    %1065 = vmatprep.subr.bf16.mxu0 0
    %1066 = vmatpush2.bf16.msra.mxu0 0
    %1067 = vmatprep.subr.bf16.mxu0 0
    %1068 = vmatpush2.bf16.msra.mxu0 0
    %1069 = vmatprep.subr.bf16.mxu0 0
    %1070 = vmatpush2.bf16.msra.mxu0 0
    %1071 = vmatprep.subr.bf16.mxu0 0
    %1072 = vmatpush2.bf16.msra.mxu0 0
    %1073 = vmatprep.subr.bf16.mxu0 0
    %1074 = vmatpush2.bf16.msra.mxu0 0
    %1075 = vmatprep.subr.bf16.mxu0 0
    %1076 = vmatpush2.bf16.msra.mxu0 0
    %1077 = vmatprep.subr.bf16.mxu0 0
    %1078 = vmatpush2.bf16.msra.mxu0 0
    %1079 = vmatprep.mubr.bf16.mxu0 0
    %1080 = vmatmul.mubr.bf16.gmra.mxu0 %v1042
    %v1081 = vpop.f32.mrf.mxu0
    %v1082 = vadd.f32 0.0, %v1081
    %v1083 = vpop.f32.mrf.mxu0
    %v1084 = vpop.f32.mrf.mxu0
    %v1085 = vpop.f32.mrf.mxu0
    %1086 = vdwg.mxu0
    %1089 = vrot.lane.b32.xlu0 %v842, 8
    %v1090 = vpop.permute.xlu0 %1089
    %1091 = vrot.lane.b32.xlu0 %v890, 8
    %v1092 = vpop.permute.xlu0 %1091
    %1097 = vrot.lane.b32.xlu0 %v938, 16
    %v1098 = vpop.permute.xlu0 %1097
    %1099 = vrot.lane.b32.xlu0 %v986, 16
    %v1100 = vpop.permute.xlu0 %1099
    %1105 = vrot.lane.b32.xlu0 %v1034, 24
    %v1106 = vpop.permute.xlu0 %1105
    %1107 = vrot.lane.b32.xlu0 %v1082, 24
    %v1108 = vpop.permute.xlu0 %1107
    %v1111 = vsel %vm216, %v746, %v1090
    %v1112 = vsel %vm216, %v794, %v1092
    %vm1113 = vcmask 130048
    %v1114 = vsel %vm1113, %v1111, %v1098
    %v1115 = vsel %vm1113, %v1112, %v1100
    %vm1116 = vcmask 195584
    %v1117 = vsel %vm1116, %v1114, %v1106
    %v1118 = vsel %vm1116, %v1115, %v1108
    %v1119 = vpack.c.bf16 %v1118, %v1117
    %v1120 = vlaneseq
    %v1121 = vshrl.u32 %v1120, 7
    %v1122 = vsub.s32 2, %v1121
    %v1123 = vrot.slane %v122, %v1122
    %v1128 = vunpack.c.l.b16 %v97
    %v1129 = vunpack.c.l.b16 %v98
    %v1130 = vunpack.c.l.b16 %v99
    %v1131 = vunpack.c.l.b16 %v100
    %v1132 = vpack.c.b16 %v1129, %v1128
    %v1133 = vpack.c.b16 %v1131, %v1130
    %v1137 = vsel %vm140, %v1119, 0
    %1139 = vmatprep.subr.bf16.mxu0 0
    %1140 = vmatpush1.bf16.msra.mxu0 0
    %1141 = vmatprep.subr.bf16.mxu0 0
    %1142 = vmatpush1.bf16.msra.mxu0 0
    %1143 = vmatprep.subr.bf16.mxu0 0
    %1144 = vmatpush1.bf16.msra.mxu0 0
    %1145 = vmatprep.subr.bf16.mxu0 0
    %1146 = vmatpush1.bf16.msra.mxu0 0
    %1147 = vmatprep.subr.bf16.mxu0 0
    %1148 = vmatpush1.bf16.msra.mxu0 0
    %1149 = vmatprep.subr.bf16.mxu0 0
    %1150 = vmatpush1.bf16.msra.mxu0 0
    %1151 = vmatprep.subr.bf16.mxu0 0
    %1152 = vmatpush1.bf16.msra.mxu0 %v1133
    %1153 = vmatprep.subr.bf16.mxu0 0
    %1154 = vmatpush1.bf16.msra.mxu0 %v1132
    %1155 = vmatprep.subr.bf16.mxu0 0
    %1156 = vmatpush2.bf16.msra.mxu0 0
    %1157 = vmatprep.subr.bf16.mxu0 0
    %1158 = vmatpush2.bf16.msra.mxu0 0
    %1159 = vmatprep.subr.bf16.mxu0 0
    %1160 = vmatpush2.bf16.msra.mxu0 0
    %1161 = vmatprep.subr.bf16.mxu0 0
    %1162 = vmatpush2.bf16.msra.mxu0 0
    %1163 = vmatprep.subr.bf16.mxu0 0
    %1164 = vmatpush2.bf16.msra.mxu0 0
    %1165 = vmatprep.subr.bf16.mxu0 0
    %1166 = vmatpush2.bf16.msra.mxu0 0
    %1167 = vmatprep.subr.bf16.mxu0 0
    %1168 = vmatpush2.bf16.msra.mxu0 0
    %1169 = vmatprep.subr.bf16.mxu0 0
    %1170 = vmatpush2.bf16.msra.mxu0 0
    %1171 = vmatprep.mubr.bf16.mxu0 0
    %1172 = vmatmul.mubr.bf16.gmra.mxu0 %v1137
    %v1173 = vpop.f32.mrf.mxu0
    %v1174 = vadd.f32 %v1123, %v1173
    %v1175 = vpop.f32.mrf.mxu0
    %v1176 = vpop.f32.mrf.mxu0
    %v1177 = vadd.f32 %v1123, %v1176
    %v1178 = vpop.f32.mrf.mxu0
    %1179 = vdwg.mxu0
    %v1180 = vadd.f32 %v91, %v1174
    %v1181 = vadd.f32 %v92, %v1177
    %v1182 = vsel %vm140, %v1180, 0.0
    %1183 = vadd.xlane.f32.xlu0 %v1182
    %v1184 = vpop.xlane.xlu0 %1183
    %v1185 = vsel %vm140, %v1181, 0.0
    %1186 = vadd.xlane.f32.xlu0 %v1185
    %v1187 = vpop.xlane.xlu0 %1186
    %v1188 = vrcp.pop 32.0
    %v1189 = vmul.f32 %v1184, %v1188
    %v1190 = vmul.f32 %v1187, %v1188
    %v1191 = vsub.f32 %v1180, %v1189
    %v1192 = vsub.f32 %v1181, %v1190
    %v1193 = vmul.f32 %v1191, %v1191
    %v1194 = vmul.f32 %v1192, %v1192
    %v1195 = vsel %vm140, %v1193, 0.0
    %1196 = vadd.xlane.f32.xlu0 %v1195
    %v1197 = vpop.xlane.xlu0 %1196
    %v1198 = vsel %vm140, %v1194, 0.0
    %1199 = vadd.xlane.f32.xlu0 %v1198
    %v1200 = vpop.xlane.xlu0 %1199
    %v1201 = vmul.f32 %v1197, %v1188
    %v1202 = vmul.f32 %v1200, %v1188
    %v1203 = vadd.f32 %v1201, 1e-05
    %v1204 = vadd.f32 %v1202, 1e-05
    %v1205 = vrsqrt.pop %v1203
    %v1206 = vrsqrt.pop %v1204
    %v1207 = vmul.f32 %v1191, %v1205
    %v1208 = vmul.f32 %v1192, %v1206
    %v1209 = vlaneseq
    %v1210 = vshrl.u32 %v1209, 7
    %v1211 = vsub.s32 3, %v1210
    %v1212 = vrot.slane %v122, %v1211
    %v1213 = vmul.f32 %v1207, %v1212
    %v1214 = vmul.f32 %v1208, %v1212
    %v1215 = vlaneseq
    %v1216 = vshrl.u32 %v1215, 7
    %v1217 = vsub.s32 4, %v1216
    %v1218 = vrot.slane %v122, %v1217
    %v1219 = vadd.f32 %v1213, %v1218
    %v1220 = vadd.f32 %v1214, %v1218
    %v1221 = vpack.c.bf16 %v1220, %v1219
    %v1222 = vlaneseq
    %v1223 = vshrl.u32 %v1222, 7
    %v1224 = vsub.s32 1, %v1223
    %v1225 = vrot.slane %v122, %v1224
    %v1230 = vunpack.c.l.b16 %v101
    %v1231 = vunpack.c.l.b16 %v102
    %v1232 = vunpack.c.l.b16 %v103
    %v1233 = vunpack.c.l.b16 %v104
    %v1234 = vpack.c.b16 %v1231, %v1230
    %v1235 = vpack.c.b16 %v1233, %v1232
    %v1239 = vsel %vm140, %v1221, 0
    %1241 = vmatprep.subr.bf16.mxu0 0
    %1242 = vmatpush1.bf16.msra.mxu0 0
    %1243 = vmatprep.subr.bf16.mxu0 0
    %1244 = vmatpush1.bf16.msra.mxu0 0
    %1245 = vmatprep.subr.bf16.mxu0 0
    %1246 = vmatpush1.bf16.msra.mxu0 0
    %1247 = vmatprep.subr.bf16.mxu0 0
    %1248 = vmatpush1.bf16.msra.mxu0 0
    %1249 = vmatprep.subr.bf16.mxu0 0
    %1250 = vmatpush1.bf16.msra.mxu0 0
    %1251 = vmatprep.subr.bf16.mxu0 0
    %1252 = vmatpush1.bf16.msra.mxu0 0
    %1253 = vmatprep.subr.bf16.mxu0 0
    %1254 = vmatpush1.bf16.msra.mxu0 %v1235
    %1255 = vmatprep.subr.bf16.mxu0 0
    %1256 = vmatpush1.bf16.msra.mxu0 %v1234
    %1257 = vmatprep.subr.bf16.mxu0 0
    %1258 = vmatpush2.bf16.msra.mxu0 0
    %1259 = vmatprep.subr.bf16.mxu0 0
    %1260 = vmatpush2.bf16.msra.mxu0 0
    %1261 = vmatprep.subr.bf16.mxu0 0
    %1262 = vmatpush2.bf16.msra.mxu0 0
    %1263 = vmatprep.subr.bf16.mxu0 0
    %1264 = vmatpush2.bf16.msra.mxu0 0
    %1265 = vmatprep.subr.bf16.mxu0 0
    %1266 = vmatpush2.bf16.msra.mxu0 0
    %1267 = vmatprep.subr.bf16.mxu0 0
    %1268 = vmatpush2.bf16.msra.mxu0 0
    %1269 = vmatprep.subr.bf16.mxu0 0
    %1270 = vmatpush2.bf16.msra.mxu0 0
    %1271 = vmatprep.subr.bf16.mxu0 0
    %1272 = vmatpush2.bf16.msra.mxu0 0
    %1273 = vmatprep.mubr.bf16.mxu0 0
    %1274 = vmatmul.mubr.bf16.gmra.mxu0 %v1239
    %v1275 = vpop.f32.mrf.mxu0
    %v1276 = vadd.f32 %v1225, %v1275
    %v1277 = vpop.f32.mrf.mxu0
    %v1278 = vpop.f32.mrf.mxu0
    %v1279 = vadd.f32 %v1225, %v1278
    %v1280 = vpop.f32.mrf.mxu0
    %1281 = vdwg.mxu0
    %v1282 = vmax.f32 %v1276, 0.0
    %v1283 = vmax.f32 %v1279, 0.0
    %v1284 = vpack.c.bf16 %v1283, %v1282
    %v1285 = vlaneseq
    %v1286 = vshrl.u32 %v1285, 7
    %v1287 = vsub.s32 7, %v1286
    %v1288 = vrot.slane %v122, %v1287
    %v1305 = vunpack.c.l.b16 %v105
    %v1306 = vunpack.c.l.b16 %v106
    %v1307 = vunpack.c.l.b16 %v107
    %v1308 = vunpack.c.l.b16 %v108
    %v1309 = vunpack.c.l.b16 %v109
    %v1310 = vunpack.c.l.b16 %v110
    %v1311 = vunpack.c.l.b16 %v111
    %v1312 = vunpack.c.l.b16 %v112
    %v1313 = vunpack.c.l.b16 %v113
    %v1314 = vunpack.c.l.b16 %v114
    %v1315 = vunpack.c.l.b16 %v115
    %v1316 = vunpack.c.l.b16 %v116
    %v1317 = vunpack.c.l.b16 %v117
    %v1318 = vunpack.c.l.b16 %v118
    %v1319 = vunpack.c.l.b16 %v119
    %v1320 = vunpack.c.l.b16 %v120
    %v1321 = vpack.c.b16 %v1306, %v1305
    %v1322 = vpack.c.b16 %v1308, %v1307
    %v1323 = vpack.c.b16 %v1310, %v1309
    %v1324 = vpack.c.b16 %v1312, %v1311
    %v1325 = vpack.c.b16 %v1314, %v1313
    %v1326 = vpack.c.b16 %v1316, %v1315
    %v1327 = vpack.c.b16 %v1318, %v1317
    %v1328 = vpack.c.b16 %v1320, %v1319
    %1337 = vmatprep.subr.bf16.mxu0 0
    %1338 = vmatpush1.bf16.msra.mxu0 %v1328
    %1339 = vmatprep.subr.bf16.mxu0 0
    %1340 = vmatpush1.bf16.msra.mxu0 %v1327
    %1341 = vmatprep.subr.bf16.mxu0 0
    %1342 = vmatpush1.bf16.msra.mxu0 %v1326
    %1343 = vmatprep.subr.bf16.mxu0 0
    %1344 = vmatpush1.bf16.msra.mxu0 %v1325
    %1345 = vmatprep.subr.bf16.mxu0 0
    %1346 = vmatpush1.bf16.msra.mxu0 %v1324
    %1347 = vmatprep.subr.bf16.mxu0 0
    %1348 = vmatpush1.bf16.msra.mxu0 %v1323
    %1349 = vmatprep.subr.bf16.mxu0 0
    %1350 = vmatpush1.bf16.msra.mxu0 %v1322
    %1351 = vmatprep.subr.bf16.mxu0 0
    %1352 = vmatpush1.bf16.msra.mxu0 %v1321
    %1353 = vmatprep.subr.bf16.mxu0 0
    %1354 = vmatpush2.bf16.msra.mxu0 0
    %1355 = vmatprep.subr.bf16.mxu0 0
    %1356 = vmatpush2.bf16.msra.mxu0 0
    %1357 = vmatprep.subr.bf16.mxu0 0
    %1358 = vmatpush2.bf16.msra.mxu0 0
    %1359 = vmatprep.subr.bf16.mxu0 0
    %1360 = vmatpush2.bf16.msra.mxu0 0
    %1361 = vmatprep.subr.bf16.mxu0 0
    %1362 = vmatpush2.bf16.msra.mxu0 0
    %1363 = vmatprep.subr.bf16.mxu0 0
    %1364 = vmatpush2.bf16.msra.mxu0 0
    %1365 = vmatprep.subr.bf16.mxu0 0
    %1366 = vmatpush2.bf16.msra.mxu0 0
    %1367 = vmatprep.subr.bf16.mxu0 0
    %1368 = vmatpush2.bf16.msra.mxu0 0
    %1369 = vmatprep.mubr.bf16.mxu0 0
    %1370 = vmatmul.mubr.bf16.gmra.mxu0 %v1284
    %v1371 = vpop.f32.mrf.mxu0
    %v1372 = vadd.f32 %v1288, %v1371
    %v1373 = vpop.f32.mrf.mxu0
    %v1374 = vpop.f32.mrf.mxu0
    %v1375 = vadd.f32 %v1288, %v1374
    %v1376 = vpop.f32.mrf.mxu0
    %1377 = vdwg.mxu0
    %v1378 = vadd.f32 %v1219, %v1372
    %v1379 = vadd.f32 %v1220, %v1375
    %v1380 = vsel %vm140, %v1378, 0.0
    %1381 = vadd.xlane.f32.xlu0 %v1380
    %v1382 = vpop.xlane.xlu0 %1381
    %v1383 = vsel %vm140, %v1379, 0.0
    %1384 = vadd.xlane.f32.xlu0 %v1383
    %v1385 = vpop.xlane.xlu0 %1384
    %v1386 = vmul.f32 %v1382, %v1188
    %v1387 = vmul.f32 %v1385, %v1188
    %v1388 = vsub.f32 %v1378, %v1386
    %v1389 = vsub.f32 %v1379, %v1387
    %v1390 = vmul.f32 %v1388, %v1388
    %v1391 = vmul.f32 %v1389, %v1389
    %v1392 = vsel %vm140, %v1390, 0.0
    %1393 = vadd.xlane.f32.xlu0 %v1392
    %v1394 = vpop.xlane.xlu0 %1393
    %v1395 = vsel %vm140, %v1391, 0.0
    %1396 = vadd.xlane.f32.xlu0 %v1395
    %v1397 = vpop.xlane.xlu0 %1396
    %v1398 = vmul.f32 %v1394, %v1188
    %v1399 = vmul.f32 %v1397, %v1188
    %v1400 = vadd.f32 %v1398, 1e-05
    %v1401 = vadd.f32 %v1399, 1e-05
    %v1402 = vrsqrt.pop %v1400
    %v1403 = vrsqrt.pop %v1401
    %v1404 = vmul.f32 %v1388, %v1402
    %v1405 = vmul.f32 %v1389, %v1403
    %v1406 = vlaneseq
    %v1407 = vshrl.u32 %v1406, 7
    %v1408 = vsub.s32 5, %v1407
    %v1409 = vrot.slane %v122, %v1408
    %v1410 = vmul.f32 %v1404, %v1409
    %v1411 = vmul.f32 %v1405, %v1409
    %v1412 = vlaneseq
    %v1413 = vshrl.u32 %v1412, 7
    %v1414 = vsub.s32 6, %v1413
    %v1415 = vrot.slane %v122, %v1414
    %v1416 = vadd.f32 %v1410, %v1415
    %v1417 = vadd.f32 %v1411, %v1415
    %s1418 = scalar_lea.vmem [#allocation7], 116
    %v1419 = vld [vmem:[%s1418] sm:$0xf]
    %v1420 = vld [vmem:[%s1418 + $0x4] sm:$0xf]
    %v1421 = vld [vmem:[%s1418 + $0x8] sm:$0xf]
    %v1422 = vld [vmem:[%s1418 + $0xc] sm:$0xf]
    %v1423 = vld [vmem:[%s1418 + $0x10] sm:$0xf]
    %v1424 = vld [vmem:[%s1418 + $0x14] sm:$0xf]
    %v1425 = vld [vmem:[%s1418 + $0x18] sm:$0xf]
    %v1426 = vld [vmem:[%s1418 + $0x1c] sm:$0xf]
    %v1427 = vld [vmem:[%s1418 + $0x20] sm:$0xf]
    %v1428 = vld [vmem:[%s1418 + $0x24] sm:$0xf]
    %v1429 = vld [vmem:[%s1418 + $0x28] sm:$0xf]
    %v1430 = vld [vmem:[%s1418 + $0x2c] sm:$0xf]
    %v1431 = vld [vmem:[%s1418 + $0x30] sm:$0xf]
    %v1432 = vld [vmem:[%s1418 + $0x34] sm:$0xf]
    %v1433 = vld [vmem:[%s1418 + $0x38] sm:$0xf]
    %v1434 = vld [vmem:[%s1418 + $0x3c] sm:$0xf]
    %v1435 = vld [vmem:[%s1418 + $0x40] sm:$0xf]
    %v1436 = vld [vmem:[%s1418 + $0x44] sm:$0xf]
    %v1437 = vld [vmem:[%s1418 + $0x48] sm:$0xf]
    %v1438 = vld [vmem:[%s1418 + $0x4c] sm:$0xf]
    %v1439 = vld [vmem:[%s1418 + $0x50] sm:$0xf]
    %v1440 = vld [vmem:[%s1418 + $0x54] sm:$0xf]
    %v1441 = vld [vmem:[%s1418 + $0x58] sm:$0xf]
    %v1442 = vld [vmem:[%s1418 + $0x5c] sm:$0xf]
    %v1443 = vld [vmem:[%s1418 + $0x60] sm:$0xf]
    %v1444 = vld [vmem:[%s1418 + $0x64] sm:$0xf]
    %v1445 = vld [vmem:[%s1418 + $0x68] sm:$0xf]
    %v1446 = vld [vmem:[%s1418 + $0x6c] sm:$0xf]
    %v1447 = vld [vmem:[%s1418 + $0x70] sm:$0xf]
    %v1448 = vunpack.c.l.bf16 %v1447
    %v1449 = vpack.c.bf16 %v1417, %v1416
    %v1450 = vlaneseq
    %v1451 = vshrl.u32 %v1450, 7
    %v1452 = vsub.s32 0, %v1451
    %v1453 = vrot.slane %v1448, %v1452
    %v1458 = vunpack.c.l.b16 %v1419
    %v1459 = vunpack.c.l.b16 %v1420
    %v1460 = vunpack.c.l.b16 %v1421
    %v1461 = vunpack.c.l.b16 %v1422
    %v1462 = vpack.c.b16 %v1459, %v1458
    %v1463 = vpack.c.b16 %v1461, %v1460
    %v1467 = vsel %vm140, %v1449, 0
    %1469 = vmatprep.subr.bf16.mxu0 0
    %1470 = vmatpush1.bf16.msra.mxu0 0
    %1471 = vmatprep.subr.bf16.mxu0 0
    %1472 = vmatpush1.bf16.msra.mxu0 0
    %1473 = vmatprep.subr.bf16.mxu0 0
    %1474 = vmatpush1.bf16.msra.mxu0 0
    %1475 = vmatprep.subr.bf16.mxu0 0
    %1476 = vmatpush1.bf16.msra.mxu0 0
    %1477 = vmatprep.subr.bf16.mxu0 0
    %1478 = vmatpush1.bf16.msra.mxu0 0
    %1479 = vmatprep.subr.bf16.mxu0 0
    %1480 = vmatpush1.bf16.msra.mxu0 0
    %1481 = vmatprep.subr.bf16.mxu0 0
    %1482 = vmatpush1.bf16.msra.mxu0 %v1463
    %1483 = vmatprep.subr.bf16.mxu0 0
    %1484 = vmatpush1.bf16.msra.mxu0 %v1462
    %1485 = vmatprep.subr.bf16.mxu0 0
    %1486 = vmatpush2.bf16.msra.mxu0 0
    %1487 = vmatprep.subr.bf16.mxu0 0
    %1488 = vmatpush2.bf16.msra.mxu0 0
    %1489 = vmatprep.subr.bf16.mxu0 0
    %1490 = vmatpush2.bf16.msra.mxu0 0
    %1491 = vmatprep.subr.bf16.mxu0 0
    %1492 = vmatpush2.bf16.msra.mxu0 0
    %1493 = vmatprep.subr.bf16.mxu0 0
    %1494 = vmatpush2.bf16.msra.mxu0 0
    %1495 = vmatprep.subr.bf16.mxu0 0
    %1496 = vmatpush2.bf16.msra.mxu0 0
    %1497 = vmatprep.subr.bf16.mxu0 0
    %1498 = vmatpush2.bf16.msra.mxu0 0
    %1499 = vmatprep.subr.bf16.mxu0 0
    %1500 = vmatpush2.bf16.msra.mxu0 0
    %1501 = vmatprep.mubr.bf16.mxu0 0
    %1502 = vmatmul.mubr.bf16.gmra.mxu0 %v1467
    %v1503 = vpop.f32.mrf.mxu0
    %v1504 = vadd.f32 %v1453, %v1503
    %v1505 = vpop.f32.mrf.mxu0
    %v1506 = vpop.f32.mrf.mxu0
    %v1507 = vadd.f32 %v1453, %v1506
    %v1508 = vpop.f32.mrf.mxu0
    %1509 = vdwg.mxu0
    %1512 = vrot.lane.b32.xlu0 %v1504, 120
    %v1513 = vpop.permute.xlu0 %1512
    %1514 = vrot.lane.b32.xlu0 %v1507, 120
    %v1515 = vpop.permute.xlu0 %1514
    %1518 = vrot.lane.b32.xlu0 %v1504, 112
    %v1519 = vpop.permute.xlu0 %1518
    %1520 = vrot.lane.b32.xlu0 %v1507, 112
    %v1521 = vpop.permute.xlu0 %1520
    %1524 = vrot.lane.b32.xlu0 %v1504, 104
    %v1525 = vpop.permute.xlu0 %1524
    %1526 = vrot.lane.b32.xlu0 %v1507, 104
    %v1527 = vpop.permute.xlu0 %1526
    %v1530 = vpack.c.bf16 %v1504, %v1504
    %v1531 = vpack.c.bf16 %v1507, %v1507
    %v1532 = vpack.c.bf16 %v1513, %v1513
    %v1533 = vpack.c.bf16 %v1515, %v1515
    %v1534 = vpack.c.bf16 %v1519, %v1519
    %v1535 = vpack.c.bf16 %v1521, %v1521
    %v1536 = vpack.c.bf16 %v1525, %v1525
    %v1537 = vpack.c.bf16 %v1527, %v1527
    %1539 = vrot.lane.b32.xlu0 %v1530, 96
    %v1540 = vpop.permute.xlu0 %1539
    %v1542 = vsel %vm216, %v1530, 0
    %v1545 = vsel %vm216, %v1540, 0
    %1547 = vmatprep.subr.bf16.mxu0 0
    %1548 = vmatpush1.bf16.xpose.msra.mxu0 0
    %1549 = vmatprep.subr.bf16.mxu0 0
    %1550 = vmatpush1.bf16.xpose.msra.mxu0 0
    %1551 = vmatprep.subr.bf16.mxu0 0
    %1552 = vmatpush1.bf16.xpose.msra.mxu0 0
    %1553 = vmatprep.subr.bf16.mxu0 0
    %1554 = vmatpush1.bf16.xpose.msra.mxu0 0
    %1555 = vmatprep.subr.bf16.mxu0 0
    %1556 = vmatpush1.bf16.xpose.msra.mxu0 0
    %1557 = vmatprep.subr.bf16.mxu0 0
    %1558 = vmatpush1.bf16.xpose.msra.mxu0 0
    %1559 = vmatprep.subr.bf16.mxu0 0
    %1560 = vmatpush1.bf16.xpose.msra.mxu0 0
    %1561 = vmatprep.subr.bf16.mxu0 0
    %1562 = vmatpush1.bf16.xpose.msra.mxu0 %v1545
    %1563 = vmatprep.subr.bf16.mxu0 0
    %1564 = vmatpush2.bf16.xpose.msra.mxu0 0
    %1565 = vmatprep.subr.bf16.mxu0 0
    %1566 = vmatpush2.bf16.xpose.msra.mxu0 0
    %1567 = vmatprep.subr.bf16.mxu0 0
    %1568 = vmatpush2.bf16.xpose.msra.mxu0 0
    %1569 = vmatprep.subr.bf16.mxu0 0
    %1570 = vmatpush2.bf16.xpose.msra.mxu0 0
    %1571 = vmatprep.subr.bf16.mxu0 0
    %1572 = vmatpush2.bf16.xpose.msra.mxu0 0
    %1573 = vmatprep.subr.bf16.mxu0 0
    %1574 = vmatpush2.bf16.xpose.msra.mxu0 0
    %1575 = vmatprep.subr.bf16.mxu0 0
    %1576 = vmatpush2.bf16.xpose.msra.mxu0 0
    %1577 = vmatprep.subr.bf16.mxu0 0
    %1578 = vmatpush2.bf16.xpose.msra.mxu0 0
    %1579 = vmatprep.mubr.bf16.mxu0 0
    %1580 = vmatmul.mubr.bf16.gmra.mxu0 %v1542
    %v1581 = vpop.f32.mrf.mxu0
    %v1582 = vadd.f32 %v84, %v1581
    %v1583 = vpop.f32.mrf.mxu0
    %v1584 = vpop.f32.mrf.mxu0
    %v1585 = vpop.f32.mrf.mxu0
    %1586 = vdwg.mxu0
    %1588 = vrot.lane.b32.xlu0 %v1531, 96
    %v1589 = vpop.permute.xlu0 %1588
    %v1591 = vsel %vm216, %v1531, 0
    %v1594 = vsel %vm216, %v1589, 0
    %1596 = vmatprep.subr.bf16.mxu0 0
    %1597 = vmatpush1.bf16.xpose.msra.mxu0 0
    %1598 = vmatprep.subr.bf16.mxu0 0
    %1599 = vmatpush1.bf16.xpose.msra.mxu0 0
    %1600 = vmatprep.subr.bf16.mxu0 0
    %1601 = vmatpush1.bf16.xpose.msra.mxu0 0
    %1602 = vmatprep.subr.bf16.mxu0 0
    %1603 = vmatpush1.bf16.xpose.msra.mxu0 0
    %1604 = vmatprep.subr.bf16.mxu0 0
    %1605 = vmatpush1.bf16.xpose.msra.mxu0 0
    %1606 = vmatprep.subr.bf16.mxu0 0
    %1607 = vmatpush1.bf16.xpose.msra.mxu0 0
    %1608 = vmatprep.subr.bf16.mxu0 0
    %1609 = vmatpush1.bf16.xpose.msra.mxu0 0
    %1610 = vmatprep.subr.bf16.mxu0 0
    %1611 = vmatpush1.bf16.xpose.msra.mxu0 %v1594
    %1612 = vmatprep.subr.bf16.mxu0 0
    %1613 = vmatpush2.bf16.xpose.msra.mxu0 0
    %1614 = vmatprep.subr.bf16.mxu0 0
    %1615 = vmatpush2.bf16.xpose.msra.mxu0 0
    %1616 = vmatprep.subr.bf16.mxu0 0
    %1617 = vmatpush2.bf16.xpose.msra.mxu0 0
    %1618 = vmatprep.subr.bf16.mxu0 0
    %1619 = vmatpush2.bf16.xpose.msra.mxu0 0
    %1620 = vmatprep.subr.bf16.mxu0 0
    %1621 = vmatpush2.bf16.xpose.msra.mxu0 0
    %1622 = vmatprep.subr.bf16.mxu0 0
    %1623 = vmatpush2.bf16.xpose.msra.mxu0 0
    %1624 = vmatprep.subr.bf16.mxu0 0
    %1625 = vmatpush2.bf16.xpose.msra.mxu0 0
    %1626 = vmatprep.subr.bf16.mxu0 0
    %1627 = vmatpush2.bf16.xpose.msra.mxu0 0
    %1628 = vmatprep.mubr.bf16.mxu0 0
    %1629 = vmatmul.mubr.bf16.gmra.mxu0 %v1591
    %v1630 = vpop.f32.mrf.mxu0
    %v1631 = vadd.f32 %v88, %v1630
    %v1632 = vpop.f32.mrf.mxu0
    %v1633 = vpop.f32.mrf.mxu0
    %v1634 = vpop.f32.mrf.mxu0
    %1635 = vdwg.mxu0
    %1637 = vrot.lane.b32.xlu0 %v1532, 96
    %v1638 = vpop.permute.xlu0 %1637
    %v1640 = vsel %vm216, %v1532, 0
    %v1643 = vsel %vm216, %v1638, 0
    %1645 = vmatprep.subr.bf16.mxu0 0
    %1646 = vmatpush1.bf16.xpose.msra.mxu0 0
    %1647 = vmatprep.subr.bf16.mxu0 0
    %1648 = vmatpush1.bf16.xpose.msra.mxu0 0
    %1649 = vmatprep.subr.bf16.mxu0 0
    %1650 = vmatpush1.bf16.xpose.msra.mxu0 0
    %1651 = vmatprep.subr.bf16.mxu0 0
    %1652 = vmatpush1.bf16.xpose.msra.mxu0 0
    %1653 = vmatprep.subr.bf16.mxu0 0
    %1654 = vmatpush1.bf16.xpose.msra.mxu0 0
    %1655 = vmatprep.subr.bf16.mxu0 0
    %1656 = vmatpush1.bf16.xpose.msra.mxu0 0
    %1657 = vmatprep.subr.bf16.mxu0 0
    %1658 = vmatpush1.bf16.xpose.msra.mxu0 0
    %1659 = vmatprep.subr.bf16.mxu0 0
    %1660 = vmatpush1.bf16.xpose.msra.mxu0 %v1643
    %1661 = vmatprep.subr.bf16.mxu0 0
    %1662 = vmatpush2.bf16.xpose.msra.mxu0 0
    %1663 = vmatprep.subr.bf16.mxu0 0
    %1664 = vmatpush2.bf16.xpose.msra.mxu0 0
    %1665 = vmatprep.subr.bf16.mxu0 0
    %1666 = vmatpush2.bf16.xpose.msra.mxu0 0
    %1667 = vmatprep.subr.bf16.mxu0 0
    %1668 = vmatpush2.bf16.xpose.msra.mxu0 0
    %1669 = vmatprep.subr.bf16.mxu0 0
    %1670 = vmatpush2.bf16.xpose.msra.mxu0 0
    %1671 = vmatprep.subr.bf16.mxu0 0
    %1672 = vmatpush2.bf16.xpose.msra.mxu0 0
    %1673 = vmatprep.subr.bf16.mxu0 0
    %1674 = vmatpush2.bf16.xpose.msra.mxu0 0
    %1675 = vmatprep.subr.bf16.mxu0 0
    %1676 = vmatpush2.bf16.xpose.msra.mxu0 0
    %1677 = vmatprep.mubr.bf16.mxu0 0
    %1678 = vmatmul.mubr.bf16.gmra.mxu0 %v1640
    %v1679 = vpop.f32.mrf.mxu0
    %v1680 = vadd.f32 %v84, %v1679
    %v1681 = vpop.f32.mrf.mxu0
    %v1682 = vpop.f32.mrf.mxu0
    %v1683 = vpop.f32.mrf.mxu0
    %1684 = vdwg.mxu0
    %1686 = vrot.lane.b32.xlu0 %v1533, 96
    %v1687 = vpop.permute.xlu0 %1686
    %v1689 = vsel %vm216, %v1533, 0
    %v1692 = vsel %vm216, %v1687, 0
    %1694 = vmatprep.subr.bf16.mxu0 0
    %1695 = vmatpush1.bf16.xpose.msra.mxu0 0
    %1696 = vmatprep.subr.bf16.mxu0 0
    %1697 = vmatpush1.bf16.xpose.msra.mxu0 0
    %1698 = vmatprep.subr.bf16.mxu0 0
    %1699 = vmatpush1.bf16.xpose.msra.mxu0 0
    %1700 = vmatprep.subr.bf16.mxu0 0
    %1701 = vmatpush1.bf16.xpose.msra.mxu0 0
    %1702 = vmatprep.subr.bf16.mxu0 0
    %1703 = vmatpush1.bf16.xpose.msra.mxu0 0
    %1704 = vmatprep.subr.bf16.mxu0 0
    %1705 = vmatpush1.bf16.xpose.msra.mxu0 0
    %1706 = vmatprep.subr.bf16.mxu0 0
    %1707 = vmatpush1.bf16.xpose.msra.mxu0 0
    %1708 = vmatprep.subr.bf16.mxu0 0
    %1709 = vmatpush1.bf16.xpose.msra.mxu0 %v1692
    %1710 = vmatprep.subr.bf16.mxu0 0
    %1711 = vmatpush2.bf16.xpose.msra.mxu0 0
    %1712 = vmatprep.subr.bf16.mxu0 0
    %1713 = vmatpush2.bf16.xpose.msra.mxu0 0
    %1714 = vmatprep.subr.bf16.mxu0 0
    %1715 = vmatpush2.bf16.xpose.msra.mxu0 0
    %1716 = vmatprep.subr.bf16.mxu0 0
    %1717 = vmatpush2.bf16.xpose.msra.mxu0 0
    %1718 = vmatprep.subr.bf16.mxu0 0
    %1719 = vmatpush2.bf16.xpose.msra.mxu0 0
    %1720 = vmatprep.subr.bf16.mxu0 0
    %1721 = vmatpush2.bf16.xpose.msra.mxu0 0
    %1722 = vmatprep.subr.bf16.mxu0 0
    %1723 = vmatpush2.bf16.xpose.msra.mxu0 0
    %1724 = vmatprep.subr.bf16.mxu0 0
    %1725 = vmatpush2.bf16.xpose.msra.mxu0 0
    %1726 = vmatprep.mubr.bf16.mxu0 0
    %1727 = vmatmul.mubr.bf16.gmra.mxu0 %v1689
    %v1728 = vpop.f32.mrf.mxu0
    %v1729 = vadd.f32 %v88, %v1728
    %v1730 = vpop.f32.mrf.mxu0
    %v1731 = vpop.f32.mrf.mxu0
    %v1732 = vpop.f32.mrf.mxu0
    %1733 = vdwg.mxu0
    %1735 = vrot.lane.b32.xlu0 %v1534, 96
    %v1736 = vpop.permute.xlu0 %1735
    %v1738 = vsel %vm216, %v1534, 0
    %v1741 = vsel %vm216, %v1736, 0
    %1743 = vmatprep.subr.bf16.mxu0 0
    %1744 = vmatpush1.bf16.xpose.msra.mxu0 0
    %1745 = vmatprep.subr.bf16.mxu0 0
    %1746 = vmatpush1.bf16.xpose.msra.mxu0 0
    %1747 = vmatprep.subr.bf16.mxu0 0
    %1748 = vmatpush1.bf16.xpose.msra.mxu0 0
    %1749 = vmatprep.subr.bf16.mxu0 0
    %1750 = vmatpush1.bf16.xpose.msra.mxu0 0
    %1751 = vmatprep.subr.bf16.mxu0 0
    %1752 = vmatpush1.bf16.xpose.msra.mxu0 0
    %1753 = vmatprep.subr.bf16.mxu0 0
    %1754 = vmatpush1.bf16.xpose.msra.mxu0 0
    %1755 = vmatprep.subr.bf16.mxu0 0
    %1756 = vmatpush1.bf16.xpose.msra.mxu0 0
    %1757 = vmatprep.subr.bf16.mxu0 0
    %1758 = vmatpush1.bf16.xpose.msra.mxu0 %v1741
    %1759 = vmatprep.subr.bf16.mxu0 0
    %1760 = vmatpush2.bf16.xpose.msra.mxu0 0
    %1761 = vmatprep.subr.bf16.mxu0 0
    %1762 = vmatpush2.bf16.xpose.msra.mxu0 0
    %1763 = vmatprep.subr.bf16.mxu0 0
    %1764 = vmatpush2.bf16.xpose.msra.mxu0 0
    %1765 = vmatprep.subr.bf16.mxu0 0
    %1766 = vmatpush2.bf16.xpose.msra.mxu0 0
    %1767 = vmatprep.subr.bf16.mxu0 0
    %1768 = vmatpush2.bf16.xpose.msra.mxu0 0
    %1769 = vmatprep.subr.bf16.mxu0 0
    %1770 = vmatpush2.bf16.xpose.msra.mxu0 0
    %1771 = vmatprep.subr.bf16.mxu0 0
    %1772 = vmatpush2.bf16.xpose.msra.mxu0 0
    %1773 = vmatprep.subr.bf16.mxu0 0
    %1774 = vmatpush2.bf16.xpose.msra.mxu0 0
    %1775 = vmatprep.mubr.bf16.mxu0 0
    %1776 = vmatmul.mubr.bf16.gmra.mxu0 %v1738
    %v1777 = vpop.f32.mrf.mxu0
    %v1778 = vadd.f32 %v84, %v1777
    %v1779 = vpop.f32.mrf.mxu0
    %v1780 = vpop.f32.mrf.mxu0
    %v1781 = vpop.f32.mrf.mxu0
    %1782 = vdwg.mxu0
    %1784 = vrot.lane.b32.xlu0 %v1535, 96
    %v1785 = vpop.permute.xlu0 %1784
    %v1787 = vsel %vm216, %v1535, 0
    %v1790 = vsel %vm216, %v1785, 0
    %1792 = vmatprep.subr.bf16.mxu0 0
    %1793 = vmatpush1.bf16.xpose.msra.mxu0 0
    %1794 = vmatprep.subr.bf16.mxu0 0
    %1795 = vmatpush1.bf16.xpose.msra.mxu0 0
    %1796 = vmatprep.subr.bf16.mxu0 0
    %1797 = vmatpush1.bf16.xpose.msra.mxu0 0
    %1798 = vmatprep.subr.bf16.mxu0 0
    %1799 = vmatpush1.bf16.xpose.msra.mxu0 0
    %1800 = vmatprep.subr.bf16.mxu0 0
    %1801 = vmatpush1.bf16.xpose.msra.mxu0 0
    %1802 = vmatprep.subr.bf16.mxu0 0
    %1803 = vmatpush1.bf16.xpose.msra.mxu0 0
    %1804 = vmatprep.subr.bf16.mxu0 0
    %1805 = vmatpush1.bf16.xpose.msra.mxu0 0
    %1806 = vmatprep.subr.bf16.mxu0 0
    %1807 = vmatpush1.bf16.xpose.msra.mxu0 %v1790
    %1808 = vmatprep.subr.bf16.mxu0 0
    %1809 = vmatpush2.bf16.xpose.msra.mxu0 0
    %1810 = vmatprep.subr.bf16.mxu0 0
    %1811 = vmatpush2.bf16.xpose.msra.mxu0 0
    %1812 = vmatprep.subr.bf16.mxu0 0
    %1813 = vmatpush2.bf16.xpose.msra.mxu0 0
    %1814 = vmatprep.subr.bf16.mxu0 0
    %1815 = vmatpush2.bf16.xpose.msra.mxu0 0
    %1816 = vmatprep.subr.bf16.mxu0 0
    %1817 = vmatpush2.bf16.xpose.msra.mxu0 0
    %1818 = vmatprep.subr.bf16.mxu0 0
    %1819 = vmatpush2.bf16.xpose.msra.mxu0 0
    %1820 = vmatprep.subr.bf16.mxu0 0
    %1821 = vmatpush2.bf16.xpose.msra.mxu0 0
    %1822 = vmatprep.subr.bf16.mxu0 0
    %1823 = vmatpush2.bf16.xpose.msra.mxu0 0
    %1824 = vmatprep.mubr.bf16.mxu0 0
    %1825 = vmatmul.mubr.bf16.gmra.mxu0 %v1787
    %v1826 = vpop.f32.mrf.mxu0
    %v1827 = vadd.f32 %v88, %v1826
    %v1828 = vpop.f32.mrf.mxu0
    %v1829 = vpop.f32.mrf.mxu0
    %v1830 = vpop.f32.mrf.mxu0
    %1831 = vdwg.mxu0
    %1833 = vrot.lane.b32.xlu0 %v1536, 96
    %v1834 = vpop.permute.xlu0 %1833
    %v1836 = vsel %vm216, %v1536, 0
    %v1839 = vsel %vm216, %v1834, 0
    %1841 = vmatprep.subr.bf16.mxu0 0
    %1842 = vmatpush1.bf16.xpose.msra.mxu0 0
    %1843 = vmatprep.subr.bf16.mxu0 0
    %1844 = vmatpush1.bf16.xpose.msra.mxu0 0
    %1845 = vmatprep.subr.bf16.mxu0 0
    %1846 = vmatpush1.bf16.xpose.msra.mxu0 0
    %1847 = vmatprep.subr.bf16.mxu0 0
    %1848 = vmatpush1.bf16.xpose.msra.mxu0 0
    %1849 = vmatprep.subr.bf16.mxu0 0
    %1850 = vmatpush1.bf16.xpose.msra.mxu0 0
    %1851 = vmatprep.subr.bf16.mxu0 0
    %1852 = vmatpush1.bf16.xpose.msra.mxu0 0
    %1853 = vmatprep.subr.bf16.mxu0 0
    %1854 = vmatpush1.bf16.xpose.msra.mxu0 0
    %1855 = vmatprep.subr.bf16.mxu0 0
    %1856 = vmatpush1.bf16.xpose.msra.mxu0 %v1839
    %1857 = vmatprep.subr.bf16.mxu0 0
    %1858 = vmatpush2.bf16.xpose.msra.mxu0 0
    %1859 = vmatprep.subr.bf16.mxu0 0
    %1860 = vmatpush2.bf16.xpose.msra.mxu0 0
    %1861 = vmatprep.subr.bf16.mxu0 0
    %1862 = vmatpush2.bf16.xpose.msra.mxu0 0
    %1863 = vmatprep.subr.bf16.mxu0 0
    %1864 = vmatpush2.bf16.xpose.msra.mxu0 0
    %1865 = vmatprep.subr.bf16.mxu0 0
    %1866 = vmatpush2.bf16.xpose.msra.mxu0 0
    %1867 = vmatprep.subr.bf16.mxu0 0
    %1868 = vmatpush2.bf16.xpose.msra.mxu0 0
    %1869 = vmatprep.subr.bf16.mxu0 0
    %1870 = vmatpush2.bf16.xpose.msra.mxu0 0
    %1871 = vmatprep.subr.bf16.mxu0 0
    %1872 = vmatpush2.bf16.xpose.msra.mxu0 0
    %1873 = vmatprep.mubr.bf16.mxu0 0
    %1874 = vmatmul.mubr.bf16.gmra.mxu0 %v1836
    %v1875 = vpop.f32.mrf.mxu0
    %v1876 = vadd.f32 %v84, %v1875
    %v1877 = vpop.f32.mrf.mxu0
    %v1878 = vpop.f32.mrf.mxu0
    %v1879 = vpop.f32.mrf.mxu0
    %1880 = vdwg.mxu0
    %1882 = vrot.lane.b32.xlu0 %v1537, 96
    %v1883 = vpop.permute.xlu0 %1882
    %v1885 = vsel %vm216, %v1537, 0
    %v1888 = vsel %vm216, %v1883, 0
    %1890 = vmatprep.subr.bf16.mxu0 0
    %1891 = vmatpush1.bf16.xpose.msra.mxu0 0
    %1892 = vmatprep.subr.bf16.mxu0 0
    %1893 = vmatpush1.bf16.xpose.msra.mxu0 0
    %1894 = vmatprep.subr.bf16.mxu0 0
    %1895 = vmatpush1.bf16.xpose.msra.mxu0 0
    %1896 = vmatprep.subr.bf16.mxu0 0
    %1897 = vmatpush1.bf16.xpose.msra.mxu0 0
    %1898 = vmatprep.subr.bf16.mxu0 0
    %1899 = vmatpush1.bf16.xpose.msra.mxu0 0
    %1900 = vmatprep.subr.bf16.mxu0 0
    %1901 = vmatpush1.bf16.xpose.msra.mxu0 0
    %1902 = vmatprep.subr.bf16.mxu0 0
    %1903 = vmatpush1.bf16.xpose.msra.mxu0 0
    %1904 = vmatprep.subr.bf16.mxu0 0
    %1905 = vmatpush1.bf16.xpose.msra.mxu0 %v1888
    %1906 = vmatprep.subr.bf16.mxu0 0
    %1907 = vmatpush2.bf16.xpose.msra.mxu0 0
    %1908 = vmatprep.subr.bf16.mxu0 0
    %1909 = vmatpush2.bf16.xpose.msra.mxu0 0
    %1910 = vmatprep.subr.bf16.mxu0 0
    %1911 = vmatpush2.bf16.xpose.msra.mxu0 0
    %1912 = vmatprep.subr.bf16.mxu0 0
    %1913 = vmatpush2.bf16.xpose.msra.mxu0 0
    %1914 = vmatprep.subr.bf16.mxu0 0
    %1915 = vmatpush2.bf16.xpose.msra.mxu0 0
    %1916 = vmatprep.subr.bf16.mxu0 0
    %1917 = vmatpush2.bf16.xpose.msra.mxu0 0
    %1918 = vmatprep.subr.bf16.mxu0 0
    %1919 = vmatpush2.bf16.xpose.msra.mxu0 0
    %1920 = vmatprep.subr.bf16.mxu0 0
    %1921 = vmatpush2.bf16.xpose.msra.mxu0 0
    %1922 = vmatprep.mubr.bf16.mxu0 0
    %1923 = vmatmul.mubr.bf16.gmra.mxu0 %v1885
    %v1924 = vpop.f32.mrf.mxu0
    %v1925 = vadd.f32 %v88, %v1924
    %v1926 = vpop.f32.mrf.mxu0
    %v1927 = vpop.f32.mrf.mxu0
    %v1928 = vpop.f32.mrf.mxu0
    %1929 = vdwg.mxu0
    %v1930 = vsel %vm216, %v1582, -inf
    %1931 = vmax.xlane.f32.xlu0 %v1930
    %v1932 = vpop.xlane.xlu0 %1931
    %v1933 = vsel %vm216, %v1631, -inf
    %1934 = vmax.xlane.f32.xlu0 %v1933
    %v1935 = vpop.xlane.xlu0 %1934
    %v1936 = vsel %vm216, %v1680, -inf
    %1937 = vmax.xlane.f32.xlu0 %v1936
    %v1938 = vpop.xlane.xlu0 %1937
    %v1939 = vsel %vm216, %v1729, -inf
    %1940 = vmax.xlane.f32.xlu0 %v1939
    %v1941 = vpop.xlane.xlu0 %1940
    %v1942 = vsel %vm216, %v1778, -inf
    %1943 = vmax.xlane.f32.xlu0 %v1942
    %v1944 = vpop.xlane.xlu0 %1943
    %v1945 = vsel %vm216, %v1827, -inf
    %1946 = vmax.xlane.f32.xlu0 %v1945
    %v1947 = vpop.xlane.xlu0 %1946
    %v1948 = vsel %vm216, %v1876, -inf
    %1949 = vmax.xlane.f32.xlu0 %v1948
    %v1950 = vpop.xlane.xlu0 %1949
    %v1951 = vsel %vm216, %v1925, -inf
    %1952 = vmax.xlane.f32.xlu0 %v1951
    %v1953 = vpop.xlane.xlu0 %1952
    %v1954 = vsub.f32 %v1582, %v1932
    %v1955 = vsub.f32 %v1631, %v1935
    %v1956 = vsub.f32 %v1680, %v1938
    %v1957 = vsub.f32 %v1729, %v1941
    %v1958 = vsub.f32 %v1778, %v1944
    %v1959 = vsub.f32 %v1827, %v1947
    %v1960 = vsub.f32 %v1876, %v1950
    %v1961 = vsub.f32 %v1925, %v1953
    %v1962 = vmul.f32 %v1954, 1.442695
    %v1963 = vpow.pop %v1962
    %v1964 = vmul.f32 %v1955, 1.442695
    %v1965 = vpow.pop %v1964
    %v1966 = vmul.f32 %v1956, 1.442695
    %v1967 = vpow.pop %v1966
    %v1968 = vmul.f32 %v1957, 1.442695
    %v1969 = vpow.pop %v1968
    %v1970 = vmul.f32 %v1958, 1.442695
    %v1971 = vpow.pop %v1970
    %v1972 = vmul.f32 %v1959, 1.442695
    %v1973 = vpow.pop %v1972
    %v1974 = vmul.f32 %v1960, 1.442695
    %v1975 = vpow.pop %v1974
    %v1976 = vmul.f32 %v1961, 1.442695
    %v1977 = vpow.pop %v1976
    %v1978 = vsel %vm216, %v1963, 0.0
    %1979 = vadd.xlane.f32.xlu0 %v1978
    %v1980 = vpop.xlane.xlu0 %1979
    %v1981 = vsel %vm216, %v1965, 0.0
    %1982 = vadd.xlane.f32.xlu0 %v1981
    %v1983 = vpop.xlane.xlu0 %1982
    %v1984 = vsel %vm216, %v1967, 0.0
    %1985 = vadd.xlane.f32.xlu0 %v1984
    %v1986 = vpop.xlane.xlu0 %1985
    %v1987 = vsel %vm216, %v1969, 0.0
    %1988 = vadd.xlane.f32.xlu0 %v1987
    %v1989 = vpop.xlane.xlu0 %1988
    %v1990 = vsel %vm216, %v1971, 0.0
    %1991 = vadd.xlane.f32.xlu0 %v1990
    %v1992 = vpop.xlane.xlu0 %1991
    %v1993 = vsel %vm216, %v1973, 0.0
    %1994 = vadd.xlane.f32.xlu0 %v1993
    %v1995 = vpop.xlane.xlu0 %1994
    %v1996 = vsel %vm216, %v1975, 0.0
    %1997 = vadd.xlane.f32.xlu0 %v1996
    %v1998 = vpop.xlane.xlu0 %1997
    %v1999 = vsel %vm216, %v1977, 0.0
    %2000 = vadd.xlane.f32.xlu0 %v1999
    %v2001 = vpop.xlane.xlu0 %2000
    %v2002 = vrcp.pop %v1980
    %v2003 = vrcp.pop %v1983
    %v2004 = vrcp.pop %v1986
    %v2005 = vrcp.pop %v1989
    %v2006 = vrcp.pop %v1992
    %v2007 = vrcp.pop %v1995
    %v2008 = vrcp.pop %v1998
    %v2009 = vrcp.pop %v2001
    %v2010 = vmul.f32 %v1963, %v2002
    %v2011 = vmul.f32 %v1965, %v2003
    %v2012 = vmul.f32 %v1967, %v2004
    %v2013 = vmul.f32 %v1969, %v2005
    %v2014 = vmul.f32 %v1971, %v2006
    %v2015 = vmul.f32 %v1973, %v2007
    %v2016 = vmul.f32 %v1975, %v2008
    %v2017 = vmul.f32 %v1977, %v2009
    %v2018 = vpack.c.bf16 %v2010, %v2010
    %v2019 = vpack.c.bf16 %v2011, %v2011
    %v2020 = vpack.c.bf16 %v2012, %v2012
    %v2021 = vpack.c.bf16 %v2013, %v2013
    %v2022 = vpack.c.bf16 %v2014, %v2014
    %v2023 = vpack.c.bf16 %v2015, %v2015
    %v2024 = vpack.c.bf16 %v2016, %v2016
    %v2025 = vpack.c.bf16 %v2017, %v2017
    %2026 = vrot.lane.b32.xlu0 %v1530, 64
    %v2027 = vpop.permute.xlu0 %2026
    %v2029 = vsel %vm216, %v2018, 0
    %v2032 = vsel %vm707, %v2027, 0
    %2034 = vmatprep.subr.bf16.mxu0 0
    %2035 = vmatpush1.bf16.msra.mxu0 0
    %2036 = vmatprep.subr.bf16.mxu0 0
    %2037 = vmatpush1.bf16.msra.mxu0 0
    %2038 = vmatprep.subr.bf16.mxu0 0
    %2039 = vmatpush1.bf16.msra.mxu0 0
    %2040 = vmatprep.subr.bf16.mxu0 0
    %2041 = vmatpush1.bf16.msra.mxu0 0
    %2042 = vmatprep.subr.bf16.mxu0 0
    %2043 = vmatpush1.bf16.msra.mxu0 0
    %2044 = vmatprep.subr.bf16.mxu0 0
    %2045 = vmatpush1.bf16.msra.mxu0 0
    %2046 = vmatprep.subr.bf16.mxu0 0
    %2047 = vmatpush1.bf16.msra.mxu0 0
    %2048 = vmatprep.subr.bf16.mxu0 0
    %2049 = vmatpush1.bf16.msra.mxu0 %v2032
    %2050 = vmatprep.subr.bf16.mxu0 0
    %2051 = vmatpush2.bf16.msra.mxu0 0
    %2052 = vmatprep.subr.bf16.mxu0 0
    %2053 = vmatpush2.bf16.msra.mxu0 0
    %2054 = vmatprep.subr.bf16.mxu0 0
    %2055 = vmatpush2.bf16.msra.mxu0 0
    %2056 = vmatprep.subr.bf16.mxu0 0
    %2057 = vmatpush2.bf16.msra.mxu0 0
    %2058 = vmatprep.subr.bf16.mxu0 0
    %2059 = vmatpush2.bf16.msra.mxu0 0
    %2060 = vmatprep.subr.bf16.mxu0 0
    %2061 = vmatpush2.bf16.msra.mxu0 0
    %2062 = vmatprep.subr.bf16.mxu0 0
    %2063 = vmatpush2.bf16.msra.mxu0 0
    %2064 = vmatprep.subr.bf16.mxu0 0
    %2065 = vmatpush2.bf16.msra.mxu0 0
    %2066 = vmatprep.mubr.bf16.mxu0 0
    %2067 = vmatmul.mubr.bf16.gmra.mxu0 %v2029
    %v2068 = vpop.f32.mrf.mxu0
    %v2069 = vadd.f32 0.0, %v2068
    %v2070 = vpop.f32.mrf.mxu0
    %v2071 = vpop.f32.mrf.mxu0
    %v2072 = vpop.f32.mrf.mxu0
    %2073 = vdwg.mxu0
    %2074 = vrot.lane.b32.xlu0 %v1531, 64
    %v2075 = vpop.permute.xlu0 %2074
    %v2077 = vsel %vm216, %v2019, 0
    %v2080 = vsel %vm707, %v2075, 0
    %2082 = vmatprep.subr.bf16.mxu0 0
    %2083 = vmatpush1.bf16.msra.mxu0 0
    %2084 = vmatprep.subr.bf16.mxu0 0
    %2085 = vmatpush1.bf16.msra.mxu0 0
    %2086 = vmatprep.subr.bf16.mxu0 0
    %2087 = vmatpush1.bf16.msra.mxu0 0
    %2088 = vmatprep.subr.bf16.mxu0 0
    %2089 = vmatpush1.bf16.msra.mxu0 0
    %2090 = vmatprep.subr.bf16.mxu0 0
    %2091 = vmatpush1.bf16.msra.mxu0 0
    %2092 = vmatprep.subr.bf16.mxu0 0
    %2093 = vmatpush1.bf16.msra.mxu0 0
    %2094 = vmatprep.subr.bf16.mxu0 0
    %2095 = vmatpush1.bf16.msra.mxu0 0
    %2096 = vmatprep.subr.bf16.mxu0 0
    %2097 = vmatpush1.bf16.msra.mxu0 %v2080
    %2098 = vmatprep.subr.bf16.mxu0 0
    %2099 = vmatpush2.bf16.msra.mxu0 0
    %2100 = vmatprep.subr.bf16.mxu0 0
    %2101 = vmatpush2.bf16.msra.mxu0 0
    %2102 = vmatprep.subr.bf16.mxu0 0
    %2103 = vmatpush2.bf16.msra.mxu0 0
    %2104 = vmatprep.subr.bf16.mxu0 0
    %2105 = vmatpush2.bf16.msra.mxu0 0
    %2106 = vmatprep.subr.bf16.mxu0 0
    %2107 = vmatpush2.bf16.msra.mxu0 0
    %2108 = vmatprep.subr.bf16.mxu0 0
    %2109 = vmatpush2.bf16.msra.mxu0 0
    %2110 = vmatprep.subr.bf16.mxu0 0
    %2111 = vmatpush2.bf16.msra.mxu0 0
    %2112 = vmatprep.subr.bf16.mxu0 0
    %2113 = vmatpush2.bf16.msra.mxu0 0
    %2114 = vmatprep.mubr.bf16.mxu0 0
    %2115 = vmatmul.mubr.bf16.gmra.mxu0 %v2077
    %v2116 = vpop.f32.mrf.mxu0
    %v2117 = vadd.f32 0.0, %v2116
    %v2118 = vpop.f32.mrf.mxu0
    %v2119 = vpop.f32.mrf.mxu0
    %v2120 = vpop.f32.mrf.mxu0
    %2121 = vdwg.mxu0
    %2122 = vrot.lane.b32.xlu0 %v1532, 64
    %v2123 = vpop.permute.xlu0 %2122
    %v2125 = vsel %vm216, %v2020, 0
    %v2128 = vsel %vm707, %v2123, 0
    %2130 = vmatprep.subr.bf16.mxu0 0
    %2131 = vmatpush1.bf16.msra.mxu0 0
    %2132 = vmatprep.subr.bf16.mxu0 0
    %2133 = vmatpush1.bf16.msra.mxu0 0
    %2134 = vmatprep.subr.bf16.mxu0 0
    %2135 = vmatpush1.bf16.msra.mxu0 0
    %2136 = vmatprep.subr.bf16.mxu0 0
    %2137 = vmatpush1.bf16.msra.mxu0 0
    %2138 = vmatprep.subr.bf16.mxu0 0
    %2139 = vmatpush1.bf16.msra.mxu0 0
    %2140 = vmatprep.subr.bf16.mxu0 0
    %2141 = vmatpush1.bf16.msra.mxu0 0
    %2142 = vmatprep.subr.bf16.mxu0 0
    %2143 = vmatpush1.bf16.msra.mxu0 0
    %2144 = vmatprep.subr.bf16.mxu0 0
    %2145 = vmatpush1.bf16.msra.mxu0 %v2128
    %2146 = vmatprep.subr.bf16.mxu0 0
    %2147 = vmatpush2.bf16.msra.mxu0 0
    %2148 = vmatprep.subr.bf16.mxu0 0
    %2149 = vmatpush2.bf16.msra.mxu0 0
    %2150 = vmatprep.subr.bf16.mxu0 0
    %2151 = vmatpush2.bf16.msra.mxu0 0
    %2152 = vmatprep.subr.bf16.mxu0 0
    %2153 = vmatpush2.bf16.msra.mxu0 0
    %2154 = vmatprep.subr.bf16.mxu0 0
    %2155 = vmatpush2.bf16.msra.mxu0 0
    %2156 = vmatprep.subr.bf16.mxu0 0
    %2157 = vmatpush2.bf16.msra.mxu0 0
    %2158 = vmatprep.subr.bf16.mxu0 0
    %2159 = vmatpush2.bf16.msra.mxu0 0
    %2160 = vmatprep.subr.bf16.mxu0 0
    %2161 = vmatpush2.bf16.msra.mxu0 0
    %2162 = vmatprep.mubr.bf16.mxu0 0
    %2163 = vmatmul.mubr.bf16.gmra.mxu0 %v2125
    %v2164 = vpop.f32.mrf.mxu0
    %v2165 = vadd.f32 0.0, %v2164
    %v2166 = vpop.f32.mrf.mxu0
    %v2167 = vpop.f32.mrf.mxu0
    %v2168 = vpop.f32.mrf.mxu0
    %2169 = vdwg.mxu0
    %2170 = vrot.lane.b32.xlu0 %v1533, 64
    %v2171 = vpop.permute.xlu0 %2170
    %v2173 = vsel %vm216, %v2021, 0
    %v2176 = vsel %vm707, %v2171, 0
    %2178 = vmatprep.subr.bf16.mxu0 0
    %2179 = vmatpush1.bf16.msra.mxu0 0
    %2180 = vmatprep.subr.bf16.mxu0 0
    %2181 = vmatpush1.bf16.msra.mxu0 0
    %2182 = vmatprep.subr.bf16.mxu0 0
    %2183 = vmatpush1.bf16.msra.mxu0 0
    %2184 = vmatprep.subr.bf16.mxu0 0
    %2185 = vmatpush1.bf16.msra.mxu0 0
    %2186 = vmatprep.subr.bf16.mxu0 0
    %2187 = vmatpush1.bf16.msra.mxu0 0
    %2188 = vmatprep.subr.bf16.mxu0 0
    %2189 = vmatpush1.bf16.msra.mxu0 0
    %2190 = vmatprep.subr.bf16.mxu0 0
    %2191 = vmatpush1.bf16.msra.mxu0 0
    %2192 = vmatprep.subr.bf16.mxu0 0
    %2193 = vmatpush1.bf16.msra.mxu0 %v2176
    %2194 = vmatprep.subr.bf16.mxu0 0
    %2195 = vmatpush2.bf16.msra.mxu0 0
    %2196 = vmatprep.subr.bf16.mxu0 0
    %2197 = vmatpush2.bf16.msra.mxu0 0
    %2198 = vmatprep.subr.bf16.mxu0 0
    %2199 = vmatpush2.bf16.msra.mxu0 0
    %2200 = vmatprep.subr.bf16.mxu0 0
    %2201 = vmatpush2.bf16.msra.mxu0 0
    %2202 = vmatprep.subr.bf16.mxu0 0
    %2203 = vmatpush2.bf16.msra.mxu0 0
    %2204 = vmatprep.subr.bf16.mxu0 0
    %2205 = vmatpush2.bf16.msra.mxu0 0
    %2206 = vmatprep.subr.bf16.mxu0 0
    %2207 = vmatpush2.bf16.msra.mxu0 0
    %2208 = vmatprep.subr.bf16.mxu0 0
    %2209 = vmatpush2.bf16.msra.mxu0 0
    %2210 = vmatprep.mubr.bf16.mxu0 0
    %2211 = vmatmul.mubr.bf16.gmra.mxu0 %v2173
    %v2212 = vpop.f32.mrf.mxu0
    %v2213 = vadd.f32 0.0, %v2212
    %v2214 = vpop.f32.mrf.mxu0
    %v2215 = vpop.f32.mrf.mxu0
    %v2216 = vpop.f32.mrf.mxu0
    %2217 = vdwg.mxu0
    %2218 = vrot.lane.b32.xlu0 %v1534, 64
    %v2219 = vpop.permute.xlu0 %2218
    %v2221 = vsel %vm216, %v2022, 0
    %v2224 = vsel %vm707, %v2219, 0
    %2226 = vmatprep.subr.bf16.mxu0 0
    %2227 = vmatpush1.bf16.msra.mxu0 0
    %2228 = vmatprep.subr.bf16.mxu0 0
    %2229 = vmatpush1.bf16.msra.mxu0 0
    %2230 = vmatprep.subr.bf16.mxu0 0
    %2231 = vmatpush1.bf16.msra.mxu0 0
    %2232 = vmatprep.subr.bf16.mxu0 0
    %2233 = vmatpush1.bf16.msra.mxu0 0
    %2234 = vmatprep.subr.bf16.mxu0 0
    %2235 = vmatpush1.bf16.msra.mxu0 0
    %2236 = vmatprep.subr.bf16.mxu0 0
    %2237 = vmatpush1.bf16.msra.mxu0 0
    %2238 = vmatprep.subr.bf16.mxu0 0
    %2239 = vmatpush1.bf16.msra.mxu0 0
    %2240 = vmatprep.subr.bf16.mxu0 0
    %2241 = vmatpush1.bf16.msra.mxu0 %v2224
    %2242 = vmatprep.subr.bf16.mxu0 0
    %2243 = vmatpush2.bf16.msra.mxu0 0
    %2244 = vmatprep.subr.bf16.mxu0 0
    %2245 = vmatpush2.bf16.msra.mxu0 0
    %2246 = vmatprep.subr.bf16.mxu0 0
    %2247 = vmatpush2.bf16.msra.mxu0 0
    %2248 = vmatprep.subr.bf16.mxu0 0
    %2249 = vmatpush2.bf16.msra.mxu0 0
    %2250 = vmatprep.subr.bf16.mxu0 0
    %2251 = vmatpush2.bf16.msra.mxu0 0
    %2252 = vmatprep.subr.bf16.mxu0 0
    %2253 = vmatpush2.bf16.msra.mxu0 0
    %2254 = vmatprep.subr.bf16.mxu0 0
    %2255 = vmatpush2.bf16.msra.mxu0 0
    %2256 = vmatprep.subr.bf16.mxu0 0
    %2257 = vmatpush2.bf16.msra.mxu0 0
    %2258 = vmatprep.mubr.bf16.mxu0 0
    %2259 = vmatmul.mubr.bf16.gmra.mxu0 %v2221
    %v2260 = vpop.f32.mrf.mxu0
    %v2261 = vadd.f32 0.0, %v2260
    %v2262 = vpop.f32.mrf.mxu0
    %v2263 = vpop.f32.mrf.mxu0
    %v2264 = vpop.f32.mrf.mxu0
    %2265 = vdwg.mxu0
    %2266 = vrot.lane.b32.xlu0 %v1535, 64
    %v2267 = vpop.permute.xlu0 %2266
    %v2269 = vsel %vm216, %v2023, 0
    %v2272 = vsel %vm707, %v2267, 0
    %2274 = vmatprep.subr.bf16.mxu0 0
    %2275 = vmatpush1.bf16.msra.mxu0 0
    %2276 = vmatprep.subr.bf16.mxu0 0
    %2277 = vmatpush1.bf16.msra.mxu0 0
    %2278 = vmatprep.subr.bf16.mxu0 0
    %2279 = vmatpush1.bf16.msra.mxu0 0
    %2280 = vmatprep.subr.bf16.mxu0 0
    %2281 = vmatpush1.bf16.msra.mxu0 0
    %2282 = vmatprep.subr.bf16.mxu0 0
    %2283 = vmatpush1.bf16.msra.mxu0 0
    %2284 = vmatprep.subr.bf16.mxu0 0
    %2285 = vmatpush1.bf16.msra.mxu0 0
    %2286 = vmatprep.subr.bf16.mxu0 0
    %2287 = vmatpush1.bf16.msra.mxu0 0
    %2288 = vmatprep.subr.bf16.mxu0 0
    %2289 = vmatpush1.bf16.msra.mxu0 %v2272
    %2290 = vmatprep.subr.bf16.mxu0 0
    %2291 = vmatpush2.bf16.msra.mxu0 0
    %2292 = vmatprep.subr.bf16.mxu0 0
    %2293 = vmatpush2.bf16.msra.mxu0 0
    %2294 = vmatprep.subr.bf16.mxu0 0
    %2295 = vmatpush2.bf16.msra.mxu0 0
    %2296 = vmatprep.subr.bf16.mxu0 0
    %2297 = vmatpush2.bf16.msra.mxu0 0
    %2298 = vmatprep.subr.bf16.mxu0 0
    %2299 = vmatpush2.bf16.msra.mxu0 0
    %2300 = vmatprep.subr.bf16.mxu0 0
    %2301 = vmatpush2.bf16.msra.mxu0 0
    %2302 = vmatprep.subr.bf16.mxu0 0
    %2303 = vmatpush2.bf16.msra.mxu0 0
    %2304 = vmatprep.subr.bf16.mxu0 0
    %2305 = vmatpush2.bf16.msra.mxu0 0
    %2306 = vmatprep.mubr.bf16.mxu0 0
    %2307 = vmatmul.mubr.bf16.gmra.mxu0 %v2269
    %v2308 = vpop.f32.mrf.mxu0
    %v2309 = vadd.f32 0.0, %v2308
    %v2310 = vpop.f32.mrf.mxu0
    %v2311 = vpop.f32.mrf.mxu0
    %v2312 = vpop.f32.mrf.mxu0
    %2313 = vdwg.mxu0
    %2314 = vrot.lane.b32.xlu0 %v1536, 64
    %v2315 = vpop.permute.xlu0 %2314
    %v2317 = vsel %vm216, %v2024, 0
    %v2320 = vsel %vm707, %v2315, 0
    %2322 = vmatprep.subr.bf16.mxu0 0
    %2323 = vmatpush1.bf16.msra.mxu0 0
    %2324 = vmatprep.subr.bf16.mxu0 0
    %2325 = vmatpush1.bf16.msra.mxu0 0
    %2326 = vmatprep.subr.bf16.mxu0 0
    %2327 = vmatpush1.bf16.msra.mxu0 0
    %2328 = vmatprep.subr.bf16.mxu0 0
    %2329 = vmatpush1.bf16.msra.mxu0 0
    %2330 = vmatprep.subr.bf16.mxu0 0
    %2331 = vmatpush1.bf16.msra.mxu0 0
    %2332 = vmatprep.subr.bf16.mxu0 0
    %2333 = vmatpush1.bf16.msra.mxu0 0
    %2334 = vmatprep.subr.bf16.mxu0 0
    %2335 = vmatpush1.bf16.msra.mxu0 0
    %2336 = vmatprep.subr.bf16.mxu0 0
    %2337 = vmatpush1.bf16.msra.mxu0 %v2320
    %2338 = vmatprep.subr.bf16.mxu0 0
    %2339 = vmatpush2.bf16.msra.mxu0 0
    %2340 = vmatprep.subr.bf16.mxu0 0
    %2341 = vmatpush2.bf16.msra.mxu0 0
    %2342 = vmatprep.subr.bf16.mxu0 0
    %2343 = vmatpush2.bf16.msra.mxu0 0
    %2344 = vmatprep.subr.bf16.mxu0 0
    %2345 = vmatpush2.bf16.msra.mxu0 0
    %2346 = vmatprep.subr.bf16.mxu0 0
    %2347 = vmatpush2.bf16.msra.mxu0 0
    %2348 = vmatprep.subr.bf16.mxu0 0
    %2349 = vmatpush2.bf16.msra.mxu0 0
    %2350 = vmatprep.subr.bf16.mxu0 0
    %2351 = vmatpush2.bf16.msra.mxu0 0
    %2352 = vmatprep.subr.bf16.mxu0 0
    %2353 = vmatpush2.bf16.msra.mxu0 0
    %2354 = vmatprep.mubr.bf16.mxu0 0
    %2355 = vmatmul.mubr.bf16.gmra.mxu0 %v2317
    %v2356 = vpop.f32.mrf.mxu0
    %v2357 = vadd.f32 0.0, %v2356
    %v2358 = vpop.f32.mrf.mxu0
    %v2359 = vpop.f32.mrf.mxu0
    %v2360 = vpop.f32.mrf.mxu0
    %2361 = vdwg.mxu0
    %2362 = vrot.lane.b32.xlu0 %v1537, 64
    %v2363 = vpop.permute.xlu0 %2362
    %v2365 = vsel %vm216, %v2025, 0
    %v2368 = vsel %vm707, %v2363, 0
    %2370 = vmatprep.subr.bf16.mxu0 0
    %2371 = vmatpush1.bf16.msra.mxu0 0
    %2372 = vmatprep.subr.bf16.mxu0 0
    %2373 = vmatpush1.bf16.msra.mxu0 0
    %2374 = vmatprep.subr.bf16.mxu0 0
    %2375 = vmatpush1.bf16.msra.mxu0 0
    %2376 = vmatprep.subr.bf16.mxu0 0
    %2377 = vmatpush1.bf16.msra.mxu0 0
    %2378 = vmatprep.subr.bf16.mxu0 0
    %2379 = vmatpush1.bf16.msra.mxu0 0
    %2380 = vmatprep.subr.bf16.mxu0 0
    %2381 = vmatpush1.bf16.msra.mxu0 0
    %2382 = vmatprep.subr.bf16.mxu0 0
    %2383 = vmatpush1.bf16.msra.mxu0 0
    %2384 = vmatprep.subr.bf16.mxu0 0
    %2385 = vmatpush1.bf16.msra.mxu0 %v2368
    %2386 = vmatprep.subr.bf16.mxu0 0
    %2387 = vmatpush2.bf16.msra.mxu0 0
    %2388 = vmatprep.subr.bf16.mxu0 0
    %2389 = vmatpush2.bf16.msra.mxu0 0
    %2390 = vmatprep.subr.bf16.mxu0 0
    %2391 = vmatpush2.bf16.msra.mxu0 0
    %2392 = vmatprep.subr.bf16.mxu0 0
    %2393 = vmatpush2.bf16.msra.mxu0 0
    %2394 = vmatprep.subr.bf16.mxu0 0
    %2395 = vmatpush2.bf16.msra.mxu0 0
    %2396 = vmatprep.subr.bf16.mxu0 0
    %2397 = vmatpush2.bf16.msra.mxu0 0
    %2398 = vmatprep.subr.bf16.mxu0 0
    %2399 = vmatpush2.bf16.msra.mxu0 0
    %2400 = vmatprep.subr.bf16.mxu0 0
    %2401 = vmatpush2.bf16.msra.mxu0 0
    %2402 = vmatprep.mubr.bf16.mxu0 0
    %2403 = vmatmul.mubr.bf16.gmra.mxu0 %v2365
    %v2404 = vpop.f32.mrf.mxu0
    %v2405 = vadd.f32 0.0, %v2404
    %v2406 = vpop.f32.mrf.mxu0
    %v2407 = vpop.f32.mrf.mxu0
    %v2408 = vpop.f32.mrf.mxu0
    %2409 = vdwg.mxu0
    %2412 = vrot.lane.b32.xlu0 %v2165, 8
    %v2413 = vpop.permute.xlu0 %2412
    %2414 = vrot.lane.b32.xlu0 %v2213, 8
    %v2415 = vpop.permute.xlu0 %2414
    %2420 = vrot.lane.b32.xlu0 %v2261, 16
    %v2421 = vpop.permute.xlu0 %2420
    %2422 = vrot.lane.b32.xlu0 %v2309, 16
    %v2423 = vpop.permute.xlu0 %2422
    %2428 = vrot.lane.b32.xlu0 %v2357, 24
    %v2429 = vpop.permute.xlu0 %2428
    %2430 = vrot.lane.b32.xlu0 %v2405, 24
    %v2431 = vpop.permute.xlu0 %2430
    %v2434 = vsel %vm216, %v2069, %v2413
    %v2435 = vsel %vm216, %v2117, %v2415
    %v2436 = vsel %vm1113, %v2434, %v2421
    %v2437 = vsel %vm1113, %v2435, %v2423
    %v2438 = vsel %vm1116, %v2436, %v2429
    %v2439 = vsel %vm1116, %v2437, %v2431
    %v2440 = vpack.c.bf16 %v2439, %v2438
    %v2441 = vlaneseq
    %v2442 = vshrl.u32 %v2441, 7
    %v2443 = vsub.s32 2, %v2442
    %v2444 = vrot.slane %v1448, %v2443
    %v2449 = vunpack.c.l.b16 %v1423
    %v2450 = vunpack.c.l.b16 %v1424
    %v2451 = vunpack.c.l.b16 %v1425
    %v2452 = vunpack.c.l.b16 %v1426
    %v2453 = vpack.c.b16 %v2450, %v2449
    %v2454 = vpack.c.b16 %v2452, %v2451
    %v2458 = vsel %vm140, %v2440, 0
    %2460 = vmatprep.subr.bf16.mxu0 0
    %2461 = vmatpush1.bf16.msra.mxu0 0
    %2462 = vmatprep.subr.bf16.mxu0 0
    %2463 = vmatpush1.bf16.msra.mxu0 0
    %2464 = vmatprep.subr.bf16.mxu0 0
    %2465 = vmatpush1.bf16.msra.mxu0 0
    %2466 = vmatprep.subr.bf16.mxu0 0
    %2467 = vmatpush1.bf16.msra.mxu0 0
    %2468 = vmatprep.subr.bf16.mxu0 0
    %2469 = vmatpush1.bf16.msra.mxu0 0
    %2470 = vmatprep.subr.bf16.mxu0 0
    %2471 = vmatpush1.bf16.msra.mxu0 0
    %2472 = vmatprep.subr.bf16.mxu0 0
    %2473 = vmatpush1.bf16.msra.mxu0 %v2454
    %2474 = vmatprep.subr.bf16.mxu0 0
    %2475 = vmatpush1.bf16.msra.mxu0 %v2453
    %2476 = vmatprep.subr.bf16.mxu0 0
    %2477 = vmatpush2.bf16.msra.mxu0 0
    %2478 = vmatprep.subr.bf16.mxu0 0
    %2479 = vmatpush2.bf16.msra.mxu0 0
    %2480 = vmatprep.subr.bf16.mxu0 0
    %2481 = vmatpush2.bf16.msra.mxu0 0
    %2482 = vmatprep.subr.bf16.mxu0 0
    %2483 = vmatpush2.bf16.msra.mxu0 0
    %2484 = vmatprep.subr.bf16.mxu0 0
    %2485 = vmatpush2.bf16.msra.mxu0 0
    %2486 = vmatprep.subr.bf16.mxu0 0
    %2487 = vmatpush2.bf16.msra.mxu0 0
    %2488 = vmatprep.subr.bf16.mxu0 0
    %2489 = vmatpush2.bf16.msra.mxu0 0
    %2490 = vmatprep.subr.bf16.mxu0 0
    %2491 = vmatpush2.bf16.msra.mxu0 0
    %2492 = vmatprep.mubr.bf16.mxu0 0
    %2493 = vmatmul.mubr.bf16.gmra.mxu0 %v2458
    %v2494 = vpop.f32.mrf.mxu0
    %v2495 = vadd.f32 %v2444, %v2494
    %v2496 = vpop.f32.mrf.mxu0
    %v2497 = vpop.f32.mrf.mxu0
    %v2498 = vadd.f32 %v2444, %v2497
    %v2499 = vpop.f32.mrf.mxu0
    %2500 = vdwg.mxu0
    %v2501 = vadd.f32 %v1416, %v2495
    %v2502 = vadd.f32 %v1417, %v2498
    %v2503 = vsel %vm140, %v2501, 0.0
    %2504 = vadd.xlane.f32.xlu0 %v2503
    %v2505 = vpop.xlane.xlu0 %2504
    %v2506 = vsel %vm140, %v2502, 0.0
    %2507 = vadd.xlane.f32.xlu0 %v2506
    %v2508 = vpop.xlane.xlu0 %2507
    %v2509 = vmul.f32 %v2505, %v1188
    %v2510 = vmul.f32 %v2508, %v1188
    %v2511 = vsub.f32 %v2501, %v2509
    %v2512 = vsub.f32 %v2502, %v2510
    %v2513 = vmul.f32 %v2511, %v2511
    %v2514 = vmul.f32 %v2512, %v2512
    %v2515 = vsel %vm140, %v2513, 0.0
    %2516 = vadd.xlane.f32.xlu0 %v2515
    %v2517 = vpop.xlane.xlu0 %2516
    %v2518 = vsel %vm140, %v2514, 0.0
    %2519 = vadd.xlane.f32.xlu0 %v2518
    %v2520 = vpop.xlane.xlu0 %2519
    %v2521 = vmul.f32 %v2517, %v1188
    %v2522 = vmul.f32 %v2520, %v1188
    %v2523 = vadd.f32 %v2521, 1e-05
    %v2524 = vadd.f32 %v2522, 1e-05
    %v2525 = vrsqrt.pop %v2523
    %v2526 = vrsqrt.pop %v2524
    %v2527 = vmul.f32 %v2511, %v2525
    %v2528 = vmul.f32 %v2512, %v2526
    %v2529 = vlaneseq
    %v2530 = vshrl.u32 %v2529, 7
    %v2531 = vsub.s32 3, %v2530
    %v2532 = vrot.slane %v1448, %v2531
    %v2533 = vmul.f32 %v2527, %v2532
    %v2534 = vmul.f32 %v2528, %v2532
    %v2535 = vlaneseq
    %v2536 = vshrl.u32 %v2535, 7
    %v2537 = vsub.s32 4, %v2536
    %v2538 = vrot.slane %v1448, %v2537
    %v2539 = vadd.f32 %v2533, %v2538
    %v2540 = vadd.f32 %v2534, %v2538
    %v2541 = vpack.c.bf16 %v2540, %v2539
    %v2542 = vlaneseq
    %v2543 = vshrl.u32 %v2542, 7
    %v2544 = vsub.s32 1, %v2543
    %v2545 = vrot.slane %v1448, %v2544
    %v2550 = vunpack.c.l.b16 %v1427
    %v2551 = vunpack.c.l.b16 %v1428
    %v2552 = vunpack.c.l.b16 %v1429
    %v2553 = vunpack.c.l.b16 %v1430
    %v2554 = vpack.c.b16 %v2551, %v2550
    %v2555 = vpack.c.b16 %v2553, %v2552
    %v2559 = vsel %vm140, %v2541, 0
    %2561 = vmatprep.subr.bf16.mxu0 0
    %2562 = vmatpush1.bf16.msra.mxu0 0
    %2563 = vmatprep.subr.bf16.mxu0 0
    %2564 = vmatpush1.bf16.msra.mxu0 0
    %2565 = vmatprep.subr.bf16.mxu0 0
    %2566 = vmatpush1.bf16.msra.mxu0 0
    %2567 = vmatprep.subr.bf16.mxu0 0
    %2568 = vmatpush1.bf16.msra.mxu0 0
    %2569 = vmatprep.subr.bf16.mxu0 0
    %2570 = vmatpush1.bf16.msra.mxu0 0
    %2571 = vmatprep.subr.bf16.mxu0 0
    %2572 = vmatpush1.bf16.msra.mxu0 0
    %2573 = vmatprep.subr.bf16.mxu0 0
    %2574 = vmatpush1.bf16.msra.mxu0 %v2555
    %2575 = vmatprep.subr.bf16.mxu0 0
    %2576 = vmatpush1.bf16.msra.mxu0 %v2554
    %2577 = vmatprep.subr.bf16.mxu0 0
    %2578 = vmatpush2.bf16.msra.mxu0 0
    %2579 = vmatprep.subr.bf16.mxu0 0
    %2580 = vmatpush2.bf16.msra.mxu0 0
    %2581 = vmatprep.subr.bf16.mxu0 0
    %2582 = vmatpush2.bf16.msra.mxu0 0
    %2583 = vmatprep.subr.bf16.mxu0 0
    %2584 = vmatpush2.bf16.msra.mxu0 0
    %2585 = vmatprep.subr.bf16.mxu0 0
    %2586 = vmatpush2.bf16.msra.mxu0 0
    %2587 = vmatprep.subr.bf16.mxu0 0
    %2588 = vmatpush2.bf16.msra.mxu0 0
    %2589 = vmatprep.subr.bf16.mxu0 0
    %2590 = vmatpush2.bf16.msra.mxu0 0
    %2591 = vmatprep.subr.bf16.mxu0 0
    %2592 = vmatpush2.bf16.msra.mxu0 0
    %2593 = vmatprep.mubr.bf16.mxu0 0
    %2594 = vmatmul.mubr.bf16.gmra.mxu0 %v2559
    %v2595 = vpop.f32.mrf.mxu0
    %v2596 = vadd.f32 %v2545, %v2595
    %v2597 = vpop.f32.mrf.mxu0
    %v2598 = vpop.f32.mrf.mxu0
    %v2599 = vadd.f32 %v2545, %v2598
    %v2600 = vpop.f32.mrf.mxu0
    %2601 = vdwg.mxu0
    %v2602 = vmax.f32 %v2596, 0.0
    %v2603 = vmax.f32 %v2599, 0.0
    %v2604 = vpack.c.bf16 %v2603, %v2602
    %v2605 = vlaneseq
    %v2606 = vshrl.u32 %v2605, 7
    %v2607 = vsub.s32 7, %v2606
    %v2608 = vrot.slane %v1448, %v2607
    %v2625 = vunpack.c.l.b16 %v1431
    %v2626 = vunpack.c.l.b16 %v1432
    %v2627 = vunpack.c.l.b16 %v1433
    %v2628 = vunpack.c.l.b16 %v1434
    %v2629 = vunpack.c.l.b16 %v1435
    %v2630 = vunpack.c.l.b16 %v1436
    %v2631 = vunpack.c.l.b16 %v1437
    %v2632 = vunpack.c.l.b16 %v1438
    %v2633 = vunpack.c.l.b16 %v1439
    %v2634 = vunpack.c.l.b16 %v1440
    %v2635 = vunpack.c.l.b16 %v1441
    %v2636 = vunpack.c.l.b16 %v1442
    %v2637 = vunpack.c.l.b16 %v1443
    %v2638 = vunpack.c.l.b16 %v1444
    %v2639 = vunpack.c.l.b16 %v1445
    %v2640 = vunpack.c.l.b16 %v1446
    %v2641 = vpack.c.b16 %v2626, %v2625
    %v2642 = vpack.c.b16 %v2628, %v2627
    %v2643 = vpack.c.b16 %v2630, %v2629
    %v2644 = vpack.c.b16 %v2632, %v2631
    %v2645 = vpack.c.b16 %v2634, %v2633
    %v2646 = vpack.c.b16 %v2636, %v2635
    %v2647 = vpack.c.b16 %v2638, %v2637
    %v2648 = vpack.c.b16 %v2640, %v2639
    %2657 = vmatprep.subr.bf16.mxu0 0
    %2658 = vmatpush1.bf16.msra.mxu0 %v2648
    %2659 = vmatprep.subr.bf16.mxu0 0
    %2660 = vmatpush1.bf16.msra.mxu0 %v2647
    %2661 = vmatprep.subr.bf16.mxu0 0
    %2662 = vmatpush1.bf16.msra.mxu0 %v2646
    %2663 = vmatprep.subr.bf16.mxu0 0
    %2664 = vmatpush1.bf16.msra.mxu0 %v2645
    %2665 = vmatprep.subr.bf16.mxu0 0
    %2666 = vmatpush1.bf16.msra.mxu0 %v2644
    %2667 = vmatprep.subr.bf16.mxu0 0
    %2668 = vmatpush1.bf16.msra.mxu0 %v2643
    %2669 = vmatprep.subr.bf16.mxu0 0
    %2670 = vmatpush1.bf16.msra.mxu0 %v2642
    %2671 = vmatprep.subr.bf16.mxu0 0
    %2672 = vmatpush1.bf16.msra.mxu0 %v2641
    %2673 = vmatprep.subr.bf16.mxu0 0
    %2674 = vmatpush2.bf16.msra.mxu0 0
    %2675 = vmatprep.subr.bf16.mxu0 0
    %2676 = vmatpush2.bf16.msra.mxu0 0
    %2677 = vmatprep.subr.bf16.mxu0 0
    %2678 = vmatpush2.bf16.msra.mxu0 0
    %2679 = vmatprep.subr.bf16.mxu0 0
    %2680 = vmatpush2.bf16.msra.mxu0 0
    %2681 = vmatprep.subr.bf16.mxu0 0
    %2682 = vmatpush2.bf16.msra.mxu0 0
    %2683 = vmatprep.subr.bf16.mxu0 0
    %2684 = vmatpush2.bf16.msra.mxu0 0
    %2685 = vmatprep.subr.bf16.mxu0 0
    %2686 = vmatpush2.bf16.msra.mxu0 0
    %2687 = vmatprep.subr.bf16.mxu0 0
    %2688 = vmatpush2.bf16.msra.mxu0 0
    %2689 = vmatprep.mubr.bf16.mxu0 0
    %2690 = vmatmul.mubr.bf16.gmra.mxu0 %v2604
    %v2691 = vpop.f32.mrf.mxu0
    %v2692 = vadd.f32 %v2608, %v2691
    %v2693 = vpop.f32.mrf.mxu0
    %v2694 = vpop.f32.mrf.mxu0
    %v2695 = vadd.f32 %v2608, %v2694
    %v2696 = vpop.f32.mrf.mxu0
    %2697 = vdwg.mxu0
    %v2698 = vadd.f32 %v2539, %v2692
    %v2699 = vadd.f32 %v2540, %v2695
    %v2700 = vsel %vm140, %v2698, 0.0
    %2701 = vadd.xlane.f32.xlu0 %v2700
    %v2702 = vpop.xlane.xlu0 %2701
    %v2703 = vsel %vm140, %v2699, 0.0
    %2704 = vadd.xlane.f32.xlu0 %v2703
    %v2705 = vpop.xlane.xlu0 %2704
    %v2706 = vmul.f32 %v2702, %v1188
    %v2707 = vmul.f32 %v2705, %v1188
    %v2708 = vsub.f32 %v2698, %v2706
    %v2709 = vsub.f32 %v2699, %v2707
    %v2710 = vmul.f32 %v2708, %v2708
    %v2711 = vmul.f32 %v2709, %v2709
    %v2712 = vsel %vm140, %v2710, 0.0
    %2713 = vadd.xlane.f32.xlu0 %v2712
    %v2714 = vpop.xlane.xlu0 %2713
    %v2715 = vsel %vm140, %v2711, 0.0
    %2716 = vadd.xlane.f32.xlu0 %v2715
    %v2717 = vpop.xlane.xlu0 %2716
    %v2718 = vmul.f32 %v2714, %v1188
    %v2719 = vmul.f32 %v2717, %v1188
    %v2720 = vadd.f32 %v2718, 1e-05
    %v2721 = vadd.f32 %v2719, 1e-05
    %v2722 = vrsqrt.pop %v2720
    %v2723 = vrsqrt.pop %v2721
    %v2724 = vmul.f32 %v2708, %v2722
    %v2725 = vmul.f32 %v2709, %v2723
    %v2726 = vlaneseq
    %v2727 = vshrl.u32 %v2726, 7
    %v2728 = vsub.s32 5, %v2727
    %v2729 = vrot.slane %v1448, %v2728
    %v2730 = vmul.f32 %v2724, %v2729
    %v2731 = vmul.f32 %v2725, %v2729
    %v2732 = vlaneseq
    %v2733 = vshrl.u32 %v2732, 7
    %v2734 = vsub.s32 6, %v2733
    %v2735 = vrot.slane %v1448, %v2734
    %v2736 = vadd.f32 %v2730, %v2735
    %v2737 = vadd.f32 %v2731, %v2735
    %2738 = vst.msk [vmem:[#allocation8] sm:$0xff] %vm140, %v2736
    %2739 = vst.msk [vmem:[#allocation8 + $0x8] sm:$0xff] %vm140, %v2737
    // Predicated region
    $region26: #{tpu_custom_call.1} parent=1 // pred_check
      _
    $region27: #{tpu_custom_call.1} parent=1 // pred_check_branch
      %2741 = sbr.rel (0) target = $region29
    $region28: #{tpu_custom_call.1} parent=1 // pred_region
      %s2743 = ssub.s32 256, 256
      %2744 = vsyncadd [#allocation4], %s2743
      %s2745 = sshll.u32 [#allocation8], 4
      %s2746 = int_to_ptr.vmem [resolvable:$true] %s2745
      %2751 = dma.vmem_to_hbm [thread:$0]  %s2746, 256, %s3, [#allocation4], 128, 128, 8
    $region29: #{tpu_custom_call.1} parent=1 // pred_fallthru
      _
    // Predicated region
    $region30: #{tpu_custom_call.1} parent=1 // pred_check
      _
    $region31: #{tpu_custom_call.1} parent=1 // pred_check_branch
      %2753 = sbr.rel (0) target = $region33
    $region32: #{tpu_custom_call.1} parent=1 // pred_region
      %2754 = dma.done [#allocation4], 256
    $region33: #{tpu_custom_call.1} parent=1 // pred_fallthru
      _
    %2755 = vsyncpa [#allocation3], 1
    %2756 = vsyncpa [#allocation6], 1
    %2757 = vsyncpa [#allocation4], 1

</llo_original>
